<compile_context>
chip_gen: v7x
topology: tpu7x:2x2x1
jax: 0.10.0
libtpu: 0.0.40
codegen_flags: <defaults>
</compile_context>

<pallas_src>
import functools

import numpy as np
import jax
import jax.numpy as jnp
from jax import lax
from jax.experimental import pallas as pl
from jax.experimental.pallas import tpu as pltpu


# --------------------------------------------------------------------------
# Fused Pallas kernel: (conv3x3 -> ReLU -> GroupNorm(1)) x 2 on channel-major
# activations.  One grid step == the whole batch.
# --------------------------------------------------------------------------
def _decoder_kernel(x_ref, m_ref, w1_ref, p1_ref, w2_ref, p2_ref, o_ref,
                    *, We, P, N, C1, C2, eps):
    # x_ref : (Cin1, N*P)   concat([enc, x_up]) channel-major, pixels flattened
    # m_ref : (9, N*P)      per-tap halo-validity masks (1.0 valid / 0.0 halo)
    # w1_ref: (9, C1, Cin1) conv1 weights, tap-major, transposed (Cout, Cin)
    # p1_ref: (C1, 3)       columns = [bias, gamma, beta]
    # w2_ref: (9, C2, C1)
    # p2_ref: (C2, 3)
    # o_ref : (N, C2, P)    lane-dense output (reshapes to NCHW for free)
    PT = N * P
    m = m_ref[...]                                   # (9, PT)

    def conv_relu_gn(x_cm, w_ref, p_ref, cout):
        # 3x3 conv (pad=1) as 9 lane-rolled matmuls; halo handled by masks on
        # the (cout, PT) partial products.  Centre tap (offset 0) needs neither
        # a roll nor a mask and initialises the accumulator.
        acc = jnp.dot(w_ref[4], x_cm, preferred_element_type=jnp.float32)
        for t in (0, 1, 2, 3, 5, 6, 7, 8):
            kh, kw = t // 3, t % 3
            off = (kh - 1) * We + (kw - 1)           # flat pixel offset
            shifted = pltpu.roll(x_cm, (-off) % PT, axis=1)   # XLU lane rotate
            part = jnp.dot(w_ref[t], shifted, preferred_element_type=jnp.float32)
            acc = acc + part * m[t:t + 1, :]
        prm = p_ref[...]                              # (cout, 3)
        y = jnp.maximum(acc + prm[:, 0:1], 0.0)       # bias + ReLU, (cout, PT)

        # GroupNorm(num_groups=1, affine): per-SAMPLE stats over (C, H, W);
        # samples are lane-aligned P-wide segments of the folded pixel axis.
        inv_cnt = 1.0 / (cout * P)
        segs = []
        for n in range(N):
            seg = y[:, n * P:(n + 1) * P]
            mean = jnp.sum(seg) * inv_cnt
            var = jnp.sum(seg * seg) * inv_cnt - mean * mean   # biased var
            segs.append((seg - mean) * lax.rsqrt(var + eps))
        yn = segs[0] if N == 1 else jnp.concatenate(segs, axis=1)
        return yn * prm[:, 1:2] + prm[:, 2:3]         # gamma, beta

    h1 = conv_relu_gn(x_ref[...], w1_ref, p1_ref, C1)  # (C1, PT), stays in vregs
    h2 = conv_relu_gn(h1, w2_ref, p2_ref, C2)          # (C2, PT)

    for n in range(N):                                 # dense (C2, P) stores
        o_ref[n] = h2[:, n * P:(n + 1) * P]


# --------------------------------------------------------------------------
# Wrapper: layout plumbing (all tiny, stays in XLA) + single pallas_call
# --------------------------------------------------------------------------
def decoder_forward(params, encoder_features, x, *, eps=1e-5):
    """encoder_features, x are NCHW float32; returns NCHW float32."""
    N, Ce, He, We = encoder_features.shape
    _, Cx, Hx, Wx = x.shape
    C1 = params["w1"].shape[-1]
    C2 = params["w2"].shape[-1]
    Cin1 = Ce + Cx
    P = He * We
    PT = N * P

    enc = encoder_features.astype(jnp.float32)
    xf = x.astype(jnp.float32)

    # nearest-neighbour upsample with static indices (PyTorch: src = dst*in//out)
    h_idx = np.asarray((np.arange(He) * Hx) // He, dtype=np.int32)
    w_idx = np.asarray((np.arange(We) * Wx) // We, dtype=np.int32)
    x_up = xf[:, :, h_idx, :][:, :, :, w_idx]                 # (N, Cx, He, We)
    # pad-to-match is a no-op after exact-size interpolation (X_diff=Y_diff=0)

    # channel concat, then channel-major / batch-folded pixel axis: (Cin1, N*P)
    cat = jnp.concatenate([enc, x_up], axis=1)                # (N, Cin1, He, We)
    x_cm = jnp.transpose(cat.reshape(N, Cin1, P), (1, 0, 2)).reshape(Cin1, PT)

    # weights: HWIO (3,3,Cin,Cout) -> tap-major, transposed (9, Cout, Cin)
    w1 = jnp.transpose(params["w1"].reshape(9, Cin1, C1), (0, 2, 1)).astype(jnp.float32)
    w2 = jnp.transpose(params["w2"].reshape(9, C1, C2), (0, 2, 1)).astype(jnp.float32)
    p1 = jnp.stack([params["b1"], params["g1"], params["bt1"]], axis=1).astype(jnp.float32)
    p2 = jnp.stack([params["b2"], params["g2"], params["bt2"]], axis=1).astype(jnp.float32)

    # host-precomputed per-tap halo masks (replaces in-kernel iota/div/mod work)
    pidx = np.arange(P)
    hh, ww = pidx // We, pidx % We
    masks_np = np.zeros((9, P), np.float32)
    for t in range(9):
        kh, kw = t // 3, t % 3
        valid = ((hh + kh - 1 >= 0) & (hh + kh - 1 < He) &
                 (ww + kw - 1 >= 0) & (ww + kw - 1 < We))
        masks_np[t] = valid.astype(np.float32)
    masks = jnp.asarray(np.tile(masks_np, (1, N)))            # (9, N*P)

    kernel = functools.partial(_decoder_kernel, We=We, P=P, N=N,
                               C1=C1, C2=C2, eps=eps)

    out = pl.pallas_call(
        kernel,
        out_shape=jax.ShapeDtypeStruct((N, C2, P), jnp.float32),
        grid_spec=pltpu.PrefetchScalarGridSpec(
            num_scalar_prefetch=0,
            grid=(1,),
            in_specs=[
                pl.BlockSpec((Cin1, PT), lambda i: (0, 0)),
                pl.BlockSpec((9, PT), lambda i: (0, 0)),
                pl.BlockSpec((9, C1, Cin1), lambda i: (0, 0, 0)),
                pl.BlockSpec((C1, 3), lambda i: (0, 0)),
                pl.BlockSpec((9, C2, C1), lambda i: (0, 0, 0)),
                pl.BlockSpec((C2, 3), lambda i: (0, 0)),
            ],
            out_specs=pl.BlockSpec((N, C2, P), lambda i: (0, 0, 0)),
        ),
        compiler_params=pltpu.CompilerParams(
            dimension_semantics=("arbitrary",)),
    )(x_cm, masks, w1, p1, w2, p2)

    # (N, C2, He*We) -> (N, C2, He, We): free reshape, already NCHW order
    return out.reshape(N, C2, He, We)


# --------------------------------------------------------------------------
# Parameter init (deterministic, mimics PyTorch Conv2d / GroupNorm defaults)
# --------------------------------------------------------------------------
def init_conv_params(key, cin, cout, k=3):
    fan_in = cin * k * k
    bound = 1.0 / jnp.sqrt(fan_in)
    kw, kb = jax.random.split(key)
    w = jax.random.uniform(kw, (k, k, cin, cout), jnp.float32, -bound, bound)
    b = jax.random.uniform(kb, (cout,), jnp.float32, -bound, bound)
    return w, b


def init_decoder_params(key, in_channels, out_channels):
    # DoubleConv channel plan
    if in_channels < out_channels:
        c1_in, c1_out = in_channels, out_channels // 2
        c2_in, c2_out = c1_out, out_channels
    else:
        c1_in, c1_out = in_channels, out_channels
        c2_in, c2_out = out_channels, out_channels
    k1, k2 = jax.random.split(key)
    w1, b1 = init_conv_params(k1, c1_in, c1_out)
    w2, b2 = init_conv_params(k2, c2_in, c2_out)
    return {
        "w1": w1, "b1": b1,
        "g1": jnp.ones((c1_out,), jnp.float32),
        "bt1": jnp.zeros((c1_out,), jnp.float32),
        "w2": w2, "b2": b2,
        "g2": jnp.ones((c2_out,), jnp.float32),
        "bt2": jnp.zeros((c2_out,), jnp.float32),
    }


# --------------------------------------------------------------------------
if __name__ == "__main__":
    key = jax.random.PRNGKey(0)
    k_enc, k_x, k_params = jax.random.split(key, 3)

    # Small UNet-decoder-consistent shapes:
    #   encoder_features: (N=2, C_e=8, 16, 16)
    #   x (coarser path): (N=2, C_x=16, 8, 8)  -> in_channels = 24, out = 8
    N, Ce, Cx = 2, 8, 16
    He = We = 16
    Hx = Wx = 8
    out_channels = 8
    in_channels = Ce + Cx

    encoder_features = jax.random.normal(k_enc, (N, Ce, He, We), jnp.float32)
    x = jax.random.normal(k_x, (N, Cx, Hx, Wx), jnp.float32)

    params = init_decoder_params(k_params, in_channels, out_channels)

    out = jax.jit(decoder_forward)(params, encoder_features, x)
    out = jax.block_until_ready(out)

    assert out.shape == (N, out_channels, He, We), out.shape
    assert out.dtype == jnp.float32
    print("KERNEL_OK")
</pallas_src>

<mosaic_0001>
module attributes {stable_mosaic.version = 11 : i64} {
  func.func @_decoder_kernel(%arg0: i32, %arg1: memref<24x512xf32, #tpu.memory_space<vmem>>, %arg2: memref<9x512xf32, #tpu.memory_space<vmem>>, %arg3: memref<9x8x24xf32, #tpu.memory_space<vmem>>, %arg4: memref<8x3xf32, #tpu.memory_space<vmem>>, %arg5: memref<9x8x8xf32, #tpu.memory_space<vmem>>, %arg6: memref<8x3xf32, #tpu.memory_space<vmem>>, %arg7: memref<2x8x256xf32, #tpu.memory_space<vmem>>) attributes {dimension_semantics = [#tpu.dimension_semantics<arbitrary>], iteration_bounds = array<i64: 1>, scalar_prefetch = 0 : i64, scratch_operands = 0 : i64, tpu.core_type = #tpu.core_type<tc>, window_params = [{pipeline_mode = #tpu.pipeline_mode<synchronous>, transform_indices = @transform_0, window_bounds = array<i64: 24, 512>}, {pipeline_mode = #tpu.pipeline_mode<synchronous>, transform_indices = @transform_1, window_bounds = array<i64: 9, 512>}, {pipeline_mode = #tpu.pipeline_mode<synchronous>, transform_indices = @transform_2, window_bounds = array<i64: 9, 8, 24>}, {pipeline_mode = #tpu.pipeline_mode<synchronous>, transform_indices = @transform_3, window_bounds = array<i64: 8, 3>}, {pipeline_mode = #tpu.pipeline_mode<synchronous>, transform_indices = @transform_4, window_bounds = array<i64: 9, 8, 8>}, {pipeline_mode = #tpu.pipeline_mode<synchronous>, transform_indices = @transform_5, window_bounds = array<i64: 8, 3>}, {pipeline_mode = #tpu.pipeline_mode<synchronous>, transform_indices = @transform_6, window_bounds = array<i64: 2, 8, 256>}]} {
    %c0 = arith.constant 0 : index
    %c0_0 = arith.constant 0 : index
    %0 = vector.load %arg2[%c0, %c0_0] : memref<9x512xf32, #tpu.memory_space<vmem>>, vector<9x512xf32>
    %c0_1 = arith.constant 0 : index
    %c0_2 = arith.constant 0 : index
    %1 = vector.load %arg1[%c0_1, %c0_2] : memref<24x512xf32, #tpu.memory_space<vmem>>, vector<24x512xf32>
    %c4 = arith.constant 4 : index
    %c0_3 = arith.constant 0 : index
    %c0_4 = arith.constant 0 : index
    %2 = vector.load %arg3[%c4, %c0_3, %c0_4] : memref<9x8x24xf32, #tpu.memory_space<vmem>>, vector<1x8x24xf32>
    %3 = vector.shape_cast %2 : vector<1x8x24xf32> to vector<8x24xf32>
    %cst = arith.constant dense<0.000000e+00> : vector<8x512xf32>
    %4 = tpu.matmul %3, %1, %cst {dimension_numbers = #tpu.dot_dimension_numbers<[1], [0], [0], [1], [0, 0, 1, 1], [], []>} : vector<8x24xf32>, vector<24x512xf32>, vector<8x512xf32> -> vector<8x512xf32>
    %c17_i32 = arith.constant 17 : i32
    %5 = tpu.dynamic_rotate %1 by %c17_i32 dim 1 : vector<24x512xf32>, i32 -> vector<24x512xf32>
    %c0_5 = arith.constant 0 : index
    %c0_6 = arith.constant 0 : index
    %c0_7 = arith.constant 0 : index
    %6 = vector.load %arg3[%c0_5, %c0_6, %c0_7] : memref<9x8x24xf32, #tpu.memory_space<vmem>>, vector<1x8x24xf32>
    %7 = vector.shape_cast %6 : vector<1x8x24xf32> to vector<8x24xf32>
    %cst_8 = arith.constant dense<0.000000e+00> : vector<8x512xf32>
    %8 = tpu.matmul %7, %5, %cst_8 {dimension_numbers = #tpu.dot_dimension_numbers<[1], [0], [0], [1], [0, 0, 1, 1], [], []>} : vector<8x24xf32>, vector<24x512xf32>, vector<8x512xf32> -> vector<8x512xf32>
    %9 = vector.extract_strided_slice %0 {offsets = [0, 0], sizes = [1, 512], strides = [1, 1]} : vector<9x512xf32> to vector<1x512xf32>
    %10 = vector.broadcast %9 : vector<1x512xf32> to vector<8x512xf32>
    %11 = arith.mulf %8, %10 : vector<8x512xf32>
    %12 = arith.addf %4, %11 : vector<8x512xf32>
    %c16_i32 = arith.constant 16 : i32
    %13 = tpu.dynamic_rotate %1 by %c16_i32 dim 1 : vector<24x512xf32>, i32 -> vector<24x512xf32>
    %c1 = arith.constant 1 : index
    %c0_9 = arith.constant 0 : index
    %c0_10 = arith.constant 0 : index
    %14 = vector.load %arg3[%c1, %c0_9, %c0_10] : memref<9x8x24xf32, #tpu.memory_space<vmem>>, vector<1x8x24xf32>
    %15 = vector.shape_cast %14 : vector<1x8x24xf32> to vector<8x24xf32>
    %cst_11 = arith.constant dense<0.000000e+00> : vector<8x512xf32>
    %16 = tpu.matmul %15, %13, %cst_11 {dimension_numbers = #tpu.dot_dimension_numbers<[1], [0], [0], [1], [0, 0, 1, 1], [], []>} : vector<8x24xf32>, vector<24x512xf32>, vector<8x512xf32> -> vector<8x512xf32>
    %17 = vector.extract_strided_slice %0 {offsets = [1, 0], sizes = [1, 512], strides = [1, 1]} : vector<9x512xf32> to vector<1x512xf32>
    %18 = vector.broadcast %17 : vector<1x512xf32> to vector<8x512xf32>
    %19 = arith.mulf %16, %18 : vector<8x512xf32>
    %20 = arith.addf %12, %19 : vector<8x512xf32>
    %c15_i32 = arith.constant 15 : i32
    %21 = tpu.dynamic_rotate %1 by %c15_i32 dim 1 : vector<24x512xf32>, i32 -> vector<24x512xf32>
    %c2 = arith.constant 2 : index
    %c0_12 = arith.constant 0 : index
    %c0_13 = arith.constant 0 : index
    %22 = vector.load %arg3[%c2, %c0_12, %c0_13] : memref<9x8x24xf32, #tpu.memory_space<vmem>>, vector<1x8x24xf32>
    %23 = vector.shape_cast %22 : vector<1x8x24xf32> to vector<8x24xf32>
    %cst_14 = arith.constant dense<0.000000e+00> : vector<8x512xf32>
    %24 = tpu.matmul %23, %21, %cst_14 {dimension_numbers = #tpu.dot_dimension_numbers<[1], [0], [0], [1], [0, 0, 1, 1], [], []>} : vector<8x24xf32>, vector<24x512xf32>, vector<8x512xf32> -> vector<8x512xf32>
    %25 = vector.extract_strided_slice %0 {offsets = [2, 0], sizes = [1, 512], strides = [1, 1]} : vector<9x512xf32> to vector<1x512xf32>
    %26 = vector.broadcast %25 : vector<1x512xf32> to vector<8x512xf32>
    %27 = arith.mulf %24, %26 : vector<8x512xf32>
    %28 = arith.addf %20, %27 : vector<8x512xf32>
    %c1_i32 = arith.constant 1 : i32
    %29 = tpu.dynamic_rotate %1 by %c1_i32 dim 1 : vector<24x512xf32>, i32 -> vector<24x512xf32>
    %c3 = arith.constant 3 : index
    %c0_15 = arith.constant 0 : index
    %c0_16 = arith.constant 0 : index
    %30 = vector.load %arg3[%c3, %c0_15, %c0_16] : memref<9x8x24xf32, #tpu.memory_space<vmem>>, vector<1x8x24xf32>
    %31 = vector.shape_cast %30 : vector<1x8x24xf32> to vector<8x24xf32>
    %cst_17 = arith.constant dense<0.000000e+00> : vector<8x512xf32>
    %32 = tpu.matmul %31, %29, %cst_17 {dimension_numbers = #tpu.dot_dimension_numbers<[1], [0], [0], [1], [0, 0, 1, 1], [], []>} : vector<8x24xf32>, vector<24x512xf32>, vector<8x512xf32> -> vector<8x512xf32>
    %33 = vector.extract_strided_slice %0 {offsets = [3, 0], sizes = [1, 512], strides = [1, 1]} : vector<9x512xf32> to vector<1x512xf32>
    %34 = vector.broadcast %33 : vector<1x512xf32> to vector<8x512xf32>
    %35 = arith.mulf %32, %34 : vector<8x512xf32>
    %36 = arith.addf %28, %35 : vector<8x512xf32>
    %c511_i32 = arith.constant 511 : i32
    %37 = tpu.dynamic_rotate %1 by %c511_i32 dim 1 : vector<24x512xf32>, i32 -> vector<24x512xf32>
    %c5 = arith.constant 5 : index
    %c0_18 = arith.constant 0 : index
    %c0_19 = arith.constant 0 : index
    %38 = vector.load %arg3[%c5, %c0_18, %c0_19] : memref<9x8x24xf32, #tpu.memory_space<vmem>>, vector<1x8x24xf32>
    %39 = vector.shape_cast %38 : vector<1x8x24xf32> to vector<8x24xf32>
    %cst_20 = arith.constant dense<0.000000e+00> : vector<8x512xf32>
    %40 = tpu.matmul %39, %37, %cst_20 {dimension_numbers = #tpu.dot_dimension_numbers<[1], [0], [0], [1], [0, 0, 1, 1], [], []>} : vector<8x24xf32>, vector<24x512xf32>, vector<8x512xf32> -> vector<8x512xf32>
    %41 = vector.extract_strided_slice %0 {offsets = [5, 0], sizes = [1, 512], strides = [1, 1]} : vector<9x512xf32> to vector<1x512xf32>
    %42 = vector.broadcast %41 : vector<1x512xf32> to vector<8x512xf32>
    %43 = arith.mulf %40, %42 : vector<8x512xf32>
    %44 = arith.addf %36, %43 : vector<8x512xf32>
    %c497_i32 = arith.constant 497 : i32
    %45 = tpu.dynamic_rotate %1 by %c497_i32 dim 1 : vector<24x512xf32>, i32 -> vector<24x512xf32>
    %c6 = arith.constant 6 : index
    %c0_21 = arith.constant 0 : index
    %c0_22 = arith.constant 0 : index
    %46 = vector.load %arg3[%c6, %c0_21, %c0_22] : memref<9x8x24xf32, #tpu.memory_space<vmem>>, vector<1x8x24xf32>
    %47 = vector.shape_cast %46 : vector<1x8x24xf32> to vector<8x24xf32>
    %cst_23 = arith.constant dense<0.000000e+00> : vector<8x512xf32>
    %48 = tpu.matmul %47, %45, %cst_23 {dimension_numbers = #tpu.dot_dimension_numbers<[1], [0], [0], [1], [0, 0, 1, 1], [], []>} : vector<8x24xf32>, vector<24x512xf32>, vector<8x512xf32> -> vector<8x512xf32>
    %49 = vector.extract_strided_slice %0 {offsets = [6, 0], sizes = [1, 512], strides = [1, 1]} : vector<9x512xf32> to vector<1x512xf32>
    %50 = vector.broadcast %49 : vector<1x512xf32> to vector<8x512xf32>
    %51 = arith.mulf %48, %50 : vector<8x512xf32>
    %52 = arith.addf %44, %51 : vector<8x512xf32>
    %c496_i32 = arith.constant 496 : i32
    %53 = tpu.dynamic_rotate %1 by %c496_i32 dim 1 : vector<24x512xf32>, i32 -> vector<24x512xf32>
    %c7 = arith.constant 7 : index
    %c0_24 = arith.constant 0 : index
    %c0_25 = arith.constant 0 : index
    %54 = vector.load %arg3[%c7, %c0_24, %c0_25] : memref<9x8x24xf32, #tpu.memory_space<vmem>>, vector<1x8x24xf32>
    %55 = vector.shape_cast %54 : vector<1x8x24xf32> to vector<8x24xf32>
    %cst_26 = arith.constant dense<0.000000e+00> : vector<8x512xf32>
    %56 = tpu.matmul %55, %53, %cst_26 {dimension_numbers = #tpu.dot_dimension_numbers<[1], [0], [0], [1], [0, 0, 1, 1], [], []>} : vector<8x24xf32>, vector<24x512xf32>, vector<8x512xf32> -> vector<8x512xf32>
    %57 = vector.extract_strided_slice %0 {offsets = [7, 0], sizes = [1, 512], strides = [1, 1]} : vector<9x512xf32> to vector<1x512xf32>
    %58 = vector.broadcast %57 : vector<1x512xf32> to vector<8x512xf32>
    %59 = arith.mulf %56, %58 : vector<8x512xf32>
    %60 = arith.addf %52, %59 : vector<8x512xf32>
    %c495_i32 = arith.constant 495 : i32
    %61 = tpu.dynamic_rotate %1 by %c495_i32 dim 1 : vector<24x512xf32>, i32 -> vector<24x512xf32>
    %c8 = arith.constant 8 : index
    %c0_27 = arith.constant 0 : index
    %c0_28 = arith.constant 0 : index
    %62 = vector.load %arg3[%c8, %c0_27, %c0_28] : memref<9x8x24xf32, #tpu.memory_space<vmem>>, vector<1x8x24xf32>
    %63 = vector.shape_cast %62 : vector<1x8x24xf32> to vector<8x24xf32>
    %cst_29 = arith.constant dense<0.000000e+00> : vector<8x512xf32>
    %64 = tpu.matmul %63, %61, %cst_29 {dimension_numbers = #tpu.dot_dimension_numbers<[1], [0], [0], [1], [0, 0, 1, 1], [], []>} : vector<8x24xf32>, vector<24x512xf32>, vector<8x512xf32> -> vector<8x512xf32>
    %65 = vector.extract_strided_slice %0 {offsets = [8, 0], sizes = [1, 512], strides = [1, 1]} : vector<9x512xf32> to vector<1x512xf32>
    %66 = vector.broadcast %65 : vector<1x512xf32> to vector<8x512xf32>
    %67 = arith.mulf %64, %66 : vector<8x512xf32>
    %68 = arith.addf %60, %67 : vector<8x512xf32>
    %c0_30 = arith.constant 0 : index
    %c0_31 = arith.constant 0 : index
    %69 = vector.load %arg4[%c0_30, %c0_31] : memref<8x3xf32, #tpu.memory_space<vmem>>, vector<8x3xf32>
    %70 = vector.extract_strided_slice %69 {offsets = [0, 0], sizes = [8, 1], strides = [1, 1]} : vector<8x3xf32> to vector<8x1xf32>
    %71 = vector.broadcast %70 : vector<8x1xf32> to vector<8x512xf32>
    %72 = arith.addf %68, %71 : vector<8x512xf32>
    %cst_32 = arith.constant 0.000000e+00 : f32
    %73 = vector.broadcast %cst_32 : f32 to vector<8x512xf32>
    %74 = arith.maximumf %72, %73 : vector<8x512xf32>
    %75 = vector.extract_strided_slice %74 {offsets = [0, 0], sizes = [8, 256], strides = [1, 1]} : vector<8x512xf32> to vector<8x256xf32>
    %76 = vector.shape_cast %75 : vector<8x256xf32> to vector<1x8x256xf32>
    %cst_33 = arith.constant dense<0.000000e+00> : vector<1xf32>
    %77 = vector.multi_reduction <add>, %76, %cst_33 [1, 2] : vector<1x8x256xf32> to vector<1xf32>
    %78 = vector.shape_cast %77 : vector<1xf32> to vector<1x1x1xf32>
    %79 = vector.extract %78[0, 0, 0] : f32 from vector<1x1x1xf32>
    %cst_34 = arith.constant 4.8828125E-4 : f32
    %80 = arith.mulf %79, %cst_34 : f32
    %81 = arith.mulf %75, %75 : vector<8x256xf32>
    %82 = vector.shape_cast %81 : vector<8x256xf32> to vector<1x8x256xf32>
    %cst_35 = arith.constant dense<0.000000e+00> : vector<1xf32>
    %83 = vector.multi_reduction <add>, %82, %cst_35 [1, 2] : vector<1x8x256xf32> to vector<1xf32>
    %84 = vector.shape_cast %83 : vector<1xf32> to vector<1x1x1xf32>
    %85 = vector.extract %84[0, 0, 0] : f32 from vector<1x1x1xf32>
    %cst_36 = arith.constant 4.8828125E-4 : f32
    %86 = arith.mulf %85, %cst_36 : f32
    %87 = arith.mulf %80, %80 : f32
    %88 = arith.subf %86, %87 : f32
    %89 = vector.broadcast %80 : f32 to vector<8x256xf32>
    %90 = arith.subf %75, %89 : vector<8x256xf32>
    %cst_37 = arith.constant 9.99999974E-6 : f32
    %91 = arith.addf %88, %cst_37 : f32
    %92 = math.rsqrt %91 : f32
    %93 = vector.broadcast %92 : f32 to vector<8x256xf32>
    %94 = arith.mulf %90, %93 : vector<8x256xf32>
    %95 = vector.extract_strided_slice %74 {offsets = [0, 256], sizes = [8, 256], strides = [1, 1]} : vector<8x512xf32> to vector<8x256xf32>
    %96 = vector.shape_cast %95 : vector<8x256xf32> to vector<1x8x256xf32>
    %cst_38 = arith.constant dense<0.000000e+00> : vector<1xf32>
    %97 = vector.multi_reduction <add>, %96, %cst_38 [1, 2] : vector<1x8x256xf32> to vector<1xf32>
    %98 = vector.shape_cast %97 : vector<1xf32> to vector<1x1x1xf32>
    %99 = vector.extract %98[0, 0, 0] : f32 from vector<1x1x1xf32>
    %cst_39 = arith.constant 4.8828125E-4 : f32
    %100 = arith.mulf %99, %cst_39 : f32
    %101 = arith.mulf %95, %95 : vector<8x256xf32>
    %102 = vector.shape_cast %101 : vector<8x256xf32> to vector<1x8x256xf32>
    %cst_40 = arith.constant dense<0.000000e+00> : vector<1xf32>
    %103 = vector.multi_reduction <add>, %102, %cst_40 [1, 2] : vector<1x8x256xf32> to vector<1xf32>
    %104 = vector.shape_cast %103 : vector<1xf32> to vector<1x1x1xf32>
    %105 = vector.extract %104[0, 0, 0] : f32 from vector<1x1x1xf32>
    %cst_41 = arith.constant 4.8828125E-4 : f32
    %106 = arith.mulf %105, %cst_41 : f32
    %107 = arith.mulf %100, %100 : f32
    %108 = arith.subf %106, %107 : f32
    %109 = vector.broadcast %100 : f32 to vector<8x256xf32>
    %110 = arith.subf %95, %109 : vector<8x256xf32>
    %cst_42 = arith.constant 9.99999974E-6 : f32
    %111 = arith.addf %108, %cst_42 : f32
    %112 = math.rsqrt %111 : f32
    %113 = vector.broadcast %112 : f32 to vector<8x256xf32>
    %114 = arith.mulf %110, %113 : vector<8x256xf32>
    %115 = tpu.concatenate %94, %114 in 1 : vector<8x256xf32>, vector<8x256xf32> -> vector<8x512xf32>
    %116 = vector.extract_strided_slice %69 {offsets = [0, 1], sizes = [8, 1], strides = [1, 1]} : vector<8x3xf32> to vector<8x1xf32>
    %117 = vector.broadcast %116 : vector<8x1xf32> to vector<8x512xf32>
    %118 = arith.mulf %115, %117 : vector<8x512xf32>
    %119 = vector.extract_strided_slice %69 {offsets = [0, 2], sizes = [8, 1], strides = [1, 1]} : vector<8x3xf32> to vector<8x1xf32>
    %120 = vector.broadcast %119 : vector<8x1xf32> to vector<8x512xf32>
    %121 = arith.addf %118, %120 : vector<8x512xf32>
    %c4_43 = arith.constant 4 : index
    %c0_44 = arith.constant 0 : index
    %c0_45 = arith.constant 0 : index
    %122 = vector.load %arg5[%c4_43, %c0_44, %c0_45] : memref<9x8x8xf32, #tpu.memory_space<vmem>>, vector<1x8x8xf32>
    %123 = vector.shape_cast %122 : vector<1x8x8xf32> to vector<8x8xf32>
    %cst_46 = arith.constant dense<0.000000e+00> : vector<8x512xf32>
    %124 = tpu.matmul %123, %121, %cst_46 {dimension_numbers = #tpu.dot_dimension_numbers<[1], [0], [0], [1], [0, 0, 1, 1], [], []>} : vector<8x8xf32>, vector<8x512xf32>, vector<8x512xf32> -> vector<8x512xf32>
    %c17_i32_47 = arith.constant 17 : i32
    %125 = tpu.dynamic_rotate %121 by %c17_i32_47 dim 1 : vector<8x512xf32>, i32 -> vector<8x512xf32>
    %c0_48 = arith.constant 0 : index
    %c0_49 = arith.constant 0 : index
    %c0_50 = arith.constant 0 : index
    %126 = vector.load %arg5[%c0_48, %c0_49, %c0_50] : memref<9x8x8xf32, #tpu.memory_space<vmem>>, vector<1x8x8xf32>
    %127 = vector.shape_cast %126 : vector<1x8x8xf32> to vector<8x8xf32>
    %cst_51 = arith.constant dense<0.000000e+00> : vector<8x512xf32>
    %128 = tpu.matmul %127, %125, %cst_51 {dimension_numbers = #tpu.dot_dimension_numbers<[1], [0], [0], [1], [0, 0, 1, 1], [], []>} : vector<8x8xf32>, vector<8x512xf32>, vector<8x512xf32> -> vector<8x512xf32>
    %129 = vector.extract_strided_slice %0 {offsets = [0, 0], sizes = [1, 512], strides = [1, 1]} : vector<9x512xf32> to vector<1x512xf32>
    %130 = vector.broadcast %129 : vector<1x512xf32> to vector<8x512xf32>
    %131 = arith.mulf %128, %130 : vector<8x512xf32>
    %132 = arith.addf %124, %131 : vector<8x512xf32>
    %c16_i32_52 = arith.constant 16 : i32
    %133 = tpu.dynamic_rotate %121 by %c16_i32_52 dim 1 : vector<8x512xf32>, i32 -> vector<8x512xf32>
    %c1_53 = arith.constant 1 : index
    %c0_54 = arith.constant 0 : index
    %c0_55 = arith.constant 0 : index
    %134 = vector.load %arg5[%c1_53, %c0_54, %c0_55] : memref<9x8x8xf32, #tpu.memory_space<vmem>>, vector<1x8x8xf32>
    %135 = vector.shape_cast %134 : vector<1x8x8xf32> to vector<8x8xf32>
    %cst_56 = arith.constant dense<0.000000e+00> : vector<8x512xf32>
    %136 = tpu.matmul %135, %133, %cst_56 {dimension_numbers = #tpu.dot_dimension_numbers<[1], [0], [0], [1], [0, 0, 1, 1], [], []>} : vector<8x8xf32>, vector<8x512xf32>, vector<8x512xf32> -> vector<8x512xf32>
    %137 = vector.extract_strided_slice %0 {offsets = [1, 0], sizes = [1, 512], strides = [1, 1]} : vector<9x512xf32> to vector<1x512xf32>
    %138 = vector.broadcast %137 : vector<1x512xf32> to vector<8x512xf32>
    %139 = arith.mulf %136, %138 : vector<8x512xf32>
    %140 = arith.addf %132, %139 : vector<8x512xf32>
    %c15_i32_57 = arith.constant 15 : i32
    %141 = tpu.dynamic_rotate %121 by %c15_i32_57 dim 1 : vector<8x512xf32>, i32 -> vector<8x512xf32>
    %c2_58 = arith.constant 2 : index
    %c0_59 = arith.constant 0 : index
    %c0_60 = arith.constant 0 : index
    %142 = vector.load %arg5[%c2_58, %c0_59, %c0_60] : memref<9x8x8xf32, #tpu.memory_space<vmem>>, vector<1x8x8xf32>
    %143 = vector.shape_cast %142 : vector<1x8x8xf32> to vector<8x8xf32>
    %cst_61 = arith.constant dense<0.000000e+00> : vector<8x512xf32>
    %144 = tpu.matmul %143, %141, %cst_61 {dimension_numbers = #tpu.dot_dimension_numbers<[1], [0], [0], [1], [0, 0, 1, 1], [], []>} : vector<8x8xf32>, vector<8x512xf32>, vector<8x512xf32> -> vector<8x512xf32>
    %145 = vector.extract_strided_slice %0 {offsets = [2, 0], sizes = [1, 512], strides = [1, 1]} : vector<9x512xf32> to vector<1x512xf32>
    %146 = vector.broadcast %145 : vector<1x512xf32> to vector<8x512xf32>
    %147 = arith.mulf %144, %146 : vector<8x512xf32>
    %148 = arith.addf %140, %147 : vector<8x512xf32>
    %c1_i32_62 = arith.constant 1 : i32
    %149 = tpu.dynamic_rotate %121 by %c1_i32_62 dim 1 : vector<8x512xf32>, i32 -> vector<8x512xf32>
    %c3_63 = arith.constant 3 : index
    %c0_64 = arith.constant 0 : index
    %c0_65 = arith.constant 0 : index
    %150 = vector.load %arg5[%c3_63, %c0_64, %c0_65] : memref<9x8x8xf32, #tpu.memory_space<vmem>>, vector<1x8x8xf32>
    %151 = vector.shape_cast %150 : vector<1x8x8xf32> to vector<8x8xf32>
    %cst_66 = arith.constant dense<0.000000e+00> : vector<8x512xf32>
    %152 = tpu.matmul %151, %149, %cst_66 {dimension_numbers = #tpu.dot_dimension_numbers<[1], [0], [0], [1], [0, 0, 1, 1], [], []>} : vector<8x8xf32>, vector<8x512xf32>, vector<8x512xf32> -> vector<8x512xf32>
    %153 = vector.extract_strided_slice %0 {offsets = [3, 0], sizes = [1, 512], strides = [1, 1]} : vector<9x512xf32> to vector<1x512xf32>
    %154 = vector.broadcast %153 : vector<1x512xf32> to vector<8x512xf32>
    %155 = arith.mulf %152, %154 : vector<8x512xf32>
    %156 = arith.addf %148, %155 : vector<8x512xf32>
    %c511_i32_67 = arith.constant 511 : i32
    %157 = tpu.dynamic_rotate %121 by %c511_i32_67 dim 1 : vector<8x512xf32>, i32 -> vector<8x512xf32>
    %c5_68 = arith.constant 5 : index
    %c0_69 = arith.constant 0 : index
    %c0_70 = arith.constant 0 : index
    %158 = vector.load %arg5[%c5_68, %c0_69, %c0_70] : memref<9x8x8xf32, #tpu.memory_space<vmem>>, vector<1x8x8xf32>
    %159 = vector.shape_cast %158 : vector<1x8x8xf32> to vector<8x8xf32>
    %cst_71 = arith.constant dense<0.000000e+00> : vector<8x512xf32>
    %160 = tpu.matmul %159, %157, %cst_71 {dimension_numbers = #tpu.dot_dimension_numbers<[1], [0], [0], [1], [0, 0, 1, 1], [], []>} : vector<8x8xf32>, vector<8x512xf32>, vector<8x512xf32> -> vector<8x512xf32>
    %161 = vector.extract_strided_slice %0 {offsets = [5, 0], sizes = [1, 512], strides = [1, 1]} : vector<9x512xf32> to vector<1x512xf32>
    %162 = vector.broadcast %161 : vector<1x512xf32> to vector<8x512xf32>
    %163 = arith.mulf %160, %162 : vector<8x512xf32>
    %164 = arith.addf %156, %163 : vector<8x512xf32>
    %c497_i32_72 = arith.constant 497 : i32
    %165 = tpu.dynamic_rotate %121 by %c497_i32_72 dim 1 : vector<8x512xf32>, i32 -> vector<8x512xf32>
    %c6_73 = arith.constant 6 : index
    %c0_74 = arith.constant 0 : index
    %c0_75 = arith.constant 0 : index
    %166 = vector.load %arg5[%c6_73, %c0_74, %c0_75] : memref<9x8x8xf32, #tpu.memory_space<vmem>>, vector<1x8x8xf32>
    %167 = vector.shape_cast %166 : vector<1x8x8xf32> to vector<8x8xf32>
    %cst_76 = arith.constant dense<0.000000e+00> : vector<8x512xf32>
    %168 = tpu.matmul %167, %165, %cst_76 {dimension_numbers = #tpu.dot_dimension_numbers<[1], [0], [0], [1], [0, 0, 1, 1], [], []>} : vector<8x8xf32>, vector<8x512xf32>, vector<8x512xf32> -> vector<8x512xf32>
    %169 = vector.extract_strided_slice %0 {offsets = [6, 0], sizes = [1, 512], strides = [1, 1]} : vector<9x512xf32> to vector<1x512xf32>
    %170 = vector.broadcast %169 : vector<1x512xf32> to vector<8x512xf32>
    %171 = arith.mulf %168, %170 : vector<8x512xf32>
    %172 = arith.addf %164, %171 : vector<8x512xf32>
    %c496_i32_77 = arith.constant 496 : i32
    %173 = tpu.dynamic_rotate %121 by %c496_i32_77 dim 1 : vector<8x512xf32>, i32 -> vector<8x512xf32>
    %c7_78 = arith.constant 7 : index
    %c0_79 = arith.constant 0 : index
    %c0_80 = arith.constant 0 : index
    %174 = vector.load %arg5[%c7_78, %c0_79, %c0_80] : memref<9x8x8xf32, #tpu.memory_space<vmem>>, vector<1x8x8xf32>
    %175 = vector.shape_cast %174 : vector<1x8x8xf32> to vector<8x8xf32>
    %cst_81 = arith.constant dense<0.000000e+00> : vector<8x512xf32>
    %176 = tpu.matmul %175, %173, %cst_81 {dimension_numbers = #tpu.dot_dimension_numbers<[1], [0], [0], [1], [0, 0, 1, 1], [], []>} : vector<8x8xf32>, vector<8x512xf32>, vector<8x512xf32> -> vector<8x512xf32>
    %177 = vector.extract_strided_slice %0 {offsets = [7, 0], sizes = [1, 512], strides = [1, 1]} : vector<9x512xf32> to vector<1x512xf32>
    %178 = vector.broadcast %177 : vector<1x512xf32> to vector<8x512xf32>
    %179 = arith.mulf %176, %178 : vector<8x512xf32>
    %180 = arith.addf %172, %179 : vector<8x512xf32>
    %c495_i32_82 = arith.constant 495 : i32
    %181 = tpu.dynamic_rotate %121 by %c495_i32_82 dim 1 : vector<8x512xf32>, i32 -> vector<8x512xf32>
    %c8_83 = arith.constant 8 : index
    %c0_84 = arith.constant 0 : index
    %c0_85 = arith.constant 0 : index
    %182 = vector.load %arg5[%c8_83, %c0_84, %c0_85] : memref<9x8x8xf32, #tpu.memory_space<vmem>>, vector<1x8x8xf32>
    %183 = vector.shape_cast %182 : vector<1x8x8xf32> to vector<8x8xf32>
    %cst_86 = arith.constant dense<0.000000e+00> : vector<8x512xf32>
    %184 = tpu.matmul %183, %181, %cst_86 {dimension_numbers = #tpu.dot_dimension_numbers<[1], [0], [0], [1], [0, 0, 1, 1], [], []>} : vector<8x8xf32>, vector<8x512xf32>, vector<8x512xf32> -> vector<8x512xf32>
    %185 = vector.extract_strided_slice %0 {offsets = [8, 0], sizes = [1, 512], strides = [1, 1]} : vector<9x512xf32> to vector<1x512xf32>
    %186 = vector.broadcast %185 : vector<1x512xf32> to vector<8x512xf32>
    %187 = arith.mulf %184, %186 : vector<8x512xf32>
    %188 = arith.addf %180, %187 : vector<8x512xf32>
    %c0_87 = arith.constant 0 : index
    %c0_88 = arith.constant 0 : index
    %189 = vector.load %arg6[%c0_87, %c0_88] : memref<8x3xf32, #tpu.memory_space<vmem>>, vector<8x3xf32>
    %190 = vector.extract_strided_slice %189 {offsets = [0, 0], sizes = [8, 1], strides = [1, 1]} : vector<8x3xf32> to vector<8x1xf32>
    %191 = vector.broadcast %190 : vector<8x1xf32> to vector<8x512xf32>
    %192 = arith.addf %188, %191 : vector<8x512xf32>
    %cst_89 = arith.constant 0.000000e+00 : f32
    %193 = vector.broadcast %cst_89 : f32 to vector<8x512xf32>
    %194 = arith.maximumf %192, %193 : vector<8x512xf32>
    %195 = vector.extract_strided_slice %194 {offsets = [0, 0], sizes = [8, 256], strides = [1, 1]} : vector<8x512xf32> to vector<8x256xf32>
    %196 = vector.shape_cast %195 : vector<8x256xf32> to vector<1x8x256xf32>
    %cst_90 = arith.constant dense<0.000000e+00> : vector<1xf32>
    %197 = vector.multi_reduction <add>, %196, %cst_90 [1, 2] : vector<1x8x256xf32> to vector<1xf32>
    %198 = vector.shape_cast %197 : vector<1xf32> to vector<1x1x1xf32>
    %199 = vector.extract %198[0, 0, 0] : f32 from vector<1x1x1xf32>
    %cst_91 = arith.constant 4.8828125E-4 : f32
    %200 = arith.mulf %199, %cst_91 : f32
    %201 = arith.mulf %195, %195 : vector<8x256xf32>
    %202 = vector.shape_cast %201 : vector<8x256xf32> to vector<1x8x256xf32>
    %cst_92 = arith.constant dense<0.000000e+00> : vector<1xf32>
    %203 = vector.multi_reduction <add>, %202, %cst_92 [1, 2] : vector<1x8x256xf32> to vector<1xf32>
    %204 = vector.shape_cast %203 : vector<1xf32> to vector<1x1x1xf32>
    %205 = vector.extract %204[0, 0, 0] : f32 from vector<1x1x1xf32>
    %cst_93 = arith.constant 4.8828125E-4 : f32
    %206 = arith.mulf %205, %cst_93 : f32
    %207 = arith.mulf %200, %200 : f32
    %208 = arith.subf %206, %207 : f32
    %209 = vector.broadcast %200 : f32 to vector<8x256xf32>
    %210 = arith.subf %195, %209 : vector<8x256xf32>
    %cst_94 = arith.constant 9.99999974E-6 : f32
    %211 = arith.addf %208, %cst_94 : f32
    %212 = math.rsqrt %211 : f32
    %213 = vector.broadcast %212 : f32 to vector<8x256xf32>
    %214 = arith.mulf %210, %213 : vector<8x256xf32>
    %215 = vector.extract_strided_slice %194 {offsets = [0, 256], sizes = [8, 256], strides = [1, 1]} : vector<8x512xf32> to vector<8x256xf32>
    %216 = vector.shape_cast %215 : vector<8x256xf32> to vector<1x8x256xf32>
    %cst_95 = arith.constant dense<0.000000e+00> : vector<1xf32>
    %217 = vector.multi_reduction <add>, %216, %cst_95 [1, 2] : vector<1x8x256xf32> to vector<1xf32>
    %218 = vector.shape_cast %217 : vector<1xf32> to vector<1x1x1xf32>
    %219 = vector.extract %218[0, 0, 0] : f32 from vector<1x1x1xf32>
    %cst_96 = arith.constant 4.8828125E-4 : f32
    %220 = arith.mulf %219, %cst_96 : f32
    %221 = arith.mulf %215, %215 : vector<8x256xf32>
    %222 = vector.shape_cast %221 : vector<8x256xf32> to vector<1x8x256xf32>
    %cst_97 = arith.constant dense<0.000000e+00> : vector<1xf32>
    %223 = vector.multi_reduction <add>, %222, %cst_97 [1, 2] : vector<1x8x256xf32> to vector<1xf32>
    %224 = vector.shape_cast %223 : vector<1xf32> to vector<1x1x1xf32>
    %225 = vector.extract %224[0, 0, 0] : f32 from vector<1x1x1xf32>
    %cst_98 = arith.constant 4.8828125E-4 : f32
    %226 = arith.mulf %225, %cst_98 : f32
    %227 = arith.mulf %220, %220 : f32
    %228 = arith.subf %226, %227 : f32
    %229 = vector.broadcast %220 : f32 to vector<8x256xf32>
    %230 = arith.subf %215, %229 : vector<8x256xf32>
    %cst_99 = arith.constant 9.99999974E-6 : f32
    %231 = arith.addf %228, %cst_99 : f32
    %232 = math.rsqrt %231 : f32
    %233 = vector.broadcast %232 : f32 to vector<8x256xf32>
    %234 = arith.mulf %230, %233 : vector<8x256xf32>
    %235 = tpu.concatenate %214, %234 in 1 : vector<8x256xf32>, vector<8x256xf32> -> vector<8x512xf32>
    %236 = vector.extract_strided_slice %189 {offsets = [0, 1], sizes = [8, 1], strides = [1, 1]} : vector<8x3xf32> to vector<8x1xf32>
    %237 = vector.broadcast %236 : vector<8x1xf32> to vector<8x512xf32>
    %238 = arith.mulf %235, %237 : vector<8x512xf32>
    %239 = vector.extract_strided_slice %189 {offsets = [0, 2], sizes = [8, 1], strides = [1, 1]} : vector<8x3xf32> to vector<8x1xf32>
    %240 = vector.broadcast %239 : vector<8x1xf32> to vector<8x512xf32>
    %241 = arith.addf %238, %240 : vector<8x512xf32>
    %242 = vector.extract_strided_slice %241 {offsets = [0, 0], sizes = [8, 256], strides = [1, 1]} : vector<8x512xf32> to vector<8x256xf32>
    %c0_100 = arith.constant 0 : index
    %c0_101 = arith.constant 0 : index
    %c0_102 = arith.constant 0 : index
    %243 = vector.load %arg7[%c0_100, %c0_101, %c0_102] : memref<2x8x256xf32, #tpu.memory_space<vmem>>, vector<1x8x256xf32>
    %244 = vector.shape_cast %243 : vector<1x8x256xf32> to vector<8x256xf32>
    %245 = vector.shape_cast %242 : vector<8x256xf32> to vector<1x8x256xf32>
    tpu.vector_store %arg7[%c0_100, %c0_101, %c0_102], %245 {strides = array<i32>} : memref<2x8x256xf32, #tpu.memory_space<vmem>>, vector<1x8x256xf32>,
    %246 = vector.extract_strided_slice %241 {offsets = [0, 256], sizes = [8, 256], strides = [1, 1]} : vector<8x512xf32> to vector<8x256xf32>
    %c1_103 = arith.constant 1 : index
    %c0_104 = arith.constant 0 : index
    %c0_105 = arith.constant 0 : index
    %247 = vector.load %arg7[%c1_103, %c0_104, %c0_105] : memref<2x8x256xf32, #tpu.memory_space<vmem>>, vector<1x8x256xf32>
    %248 = vector.shape_cast %247 : vector<1x8x256xf32> to vector<8x256xf32>
    %249 = vector.shape_cast %246 : vector<8x256xf32> to vector<1x8x256xf32>
    tpu.vector_store %arg7[%c1_103, %c0_104, %c0_105], %249 {strides = array<i32>} : memref<2x8x256xf32, #tpu.memory_space<vmem>>, vector<1x8x256xf32>,
    return
  }
  func.func @transform_0(%arg0: i32) -> (i32, i32) {
    %c0_i32 = arith.constant 0 : i32
    %c0_i32_0 = arith.constant 0 : i32
    %c0_i32_1 = arith.constant 0 : i32
    return %c0_i32, %c0_i32_0 : i32, i32
  }
  func.func @transform_1(%arg0: i32) -> (i32, i32) {
    %c0_i32 = arith.constant 0 : i32
    %c0_i32_0 = arith.constant 0 : i32
    %c0_i32_1 = arith.constant 0 : i32
    return %c0_i32, %c0_i32_0 : i32, i32
  }
  func.func @transform_2(%arg0: i32) -> (i32, i32, i32) {
    %c0_i32 = arith.constant 0 : i32
    %c0_i32_0 = arith.constant 0 : i32
    %c0_i32_1 = arith.constant 0 : i32
    %c0_i32_2 = arith.constant 0 : i32
    return %c0_i32, %c0_i32_0, %c0_i32_1 : i32, i32, i32
  }
  func.func @transform_3(%arg0: i32) -> (i32, i32) {
    %c0_i32 = arith.constant 0 : i32
    %c0_i32_0 = arith.constant 0 : i32
    %c0_i32_1 = arith.constant 0 : i32
    return %c0_i32, %c0_i32_0 : i32, i32
  }
  func.func @transform_4(%arg0: i32) -> (i32, i32, i32) {
    %c0_i32 = arith.constant 0 : i32
    %c0_i32_0 = arith.constant 0 : i32
    %c0_i32_1 = arith.constant 0 : i32
    %c0_i32_2 = arith.constant 0 : i32
    return %c0_i32, %c0_i32_0, %c0_i32_1 : i32, i32, i32
  }
  func.func @transform_5(%arg0: i32) -> (i32, i32) {
    %c0_i32 = arith.constant 0 : i32
    %c0_i32_0 = arith.constant 0 : i32
    %c0_i32_1 = arith.constant 0 : i32
    return %c0_i32, %c0_i32_0 : i32, i32
  }
  func.func @transform_6(%arg0: i32) -> (i32, i32, i32) {
    %c0_i32 = arith.constant 0 : i32
    %c0_i32_0 = arith.constant 0 : i32
    %c0_i32_1 = arith.constant 0 : i32
    %c0_i32_2 = arith.constant 0 : i32
    return %c0_i32, %c0_i32_0, %c0_i32_1 : i32, i32, i32
  }
}

</mosaic_0001>

<llo_original>
// kernel: decoder_forward.1
$region0: #{decoder_forward.1}
  #allocation0 [shape = 'u32[]', space=smem, size = 0x4, offset = 0x4, fixed_abs, tag = 'smem constant byte address 0x4 - core index']
  #allocation1 [shape = 'u32[144,128]{1,0:T(1,128)}', space=vmem, size = 0x12000, scoped, tag = 'internal scratch']
  %s0 = inlined_call_operand.vmem [shape: f32[24,512], index: 0, kind: input, shape index: {}]
  %s1 = inlined_call_operand.vmem [shape: f32[9,512], index: 1, kind: input, shape index: {}]
  %s2 = inlined_call_operand.vmem [shape: f32[9,8,24], index: 2, kind: input, shape index: {}]
  %s3 = inlined_call_operand.vmem [shape: f32[8,3], index: 3, kind: input, shape index: {}]
  %s4 = inlined_call_operand.vmem [shape: f32[9,8,8], index: 4, kind: input, shape index: {}]
  %s5 = inlined_call_operand.vmem [shape: f32[8,3], index: 5, kind: input, shape index: {}]
  %s6 = inlined_call_operand.vmem [shape: f32[2,8,256], index: 6, kind: output, shape index: {}]
  %s7 = sld [smem:[#allocation0]]
  $region34: #{decoder_forward.1} parent=0
    _
  %s9 = ssub.s32 1, %s7
  %s10 = scalar_select 0, %s9, %s7
  // Predicated region
  $region2: #{decoder_forward.1} parent=0 // pred_check
    _
  $region3: #{decoder_forward.1} parent=0 // pred_check_branch
    %12 = sbr.rel (0) target = $region5
  $region4: #{decoder_forward.1} parent=0 // pred_region
    _
  $region5: #{decoder_forward.1} parent=0 // pred_fallthru
    _
  // Predicated region
  $region6: #{decoder_forward.1} parent=0 // pred_check
    _
  $region7: #{decoder_forward.1} parent=0 // pred_check_branch
    %14 = sbr.rel (0) target = $region9
  $region8: #{decoder_forward.1} parent=0 // pred_region
    _
  $region9: #{decoder_forward.1} parent=0 // pred_fallthru
    _
  // Predicated region
  $region10: #{decoder_forward.1} parent=0 // pred_check
    _
  $region11: #{decoder_forward.1} parent=0 // pred_check_branch
    %16 = sbr.rel (0) target = $region13
  $region12: #{decoder_forward.1} parent=0 // pred_region
    _
  $region13: #{decoder_forward.1} parent=0 // pred_fallthru
    _
  // Predicated region
  $region14: #{decoder_forward.1} parent=0 // pred_check
    _
  $region15: #{decoder_forward.1} parent=0 // pred_check_branch
    %18 = sbr.rel (0) target = $region17
  $region16: #{decoder_forward.1} parent=0 // pred_region
    _
  $region17: #{decoder_forward.1} parent=0 // pred_fallthru
    _
  // Predicated region
  $region18: #{decoder_forward.1} parent=0 // pred_check
    _
  $region19: #{decoder_forward.1} parent=0 // pred_check_branch
    %20 = sbr.rel (0) target = $region21
  $region20: #{decoder_forward.1} parent=0 // pred_region
    _
  $region21: #{decoder_forward.1} parent=0 // pred_fallthru
    _
  // Predicated region
  $region22: #{decoder_forward.1} parent=0 // pred_check
    _
  $region23: #{decoder_forward.1} parent=0 // pred_check_branch
    %22 = sbr.rel (0) target = $region25
  $region24: #{decoder_forward.1} parent=0 // pred_region
    _
  $region25: #{decoder_forward.1} parent=0 // pred_fallthru
    _
  %v23 = vld [vmem:[%s1] sm:$0xff]
  %v24 = vld [vmem:[%s1 + $0x8] sm:$0xff]
  %v25 = vld [vmem:[%s1 + $0x10] sm:$0xff]
  %v26 = vld [vmem:[%s1 + $0x18] sm:$0xff]
  %v27 = vld [vmem:[%s1 + $0x20] sm:$0x1]
  %v28 = vld [vmem:[%s1 + $0x28] sm:$0x1]
  %v29 = vld [vmem:[%s1 + $0x30] sm:$0x1]
  %v30 = vld [vmem:[%s1 + $0x38] sm:$0x1]
  %v31 = vld [vmem:[%s0] sm:$0xff]
  %v32 = vld [vmem:[%s0 + $0x8] sm:$0xff]
  %v33 = vld [vmem:[%s0 + $0x10] sm:$0xff]
  %v34 = vld [vmem:[%s0 + $0x18] sm:$0xff]
  %v35 = vld [vmem:[%s0 + $0x20] sm:$0xff]
  %v36 = vld [vmem:[%s0 + $0x28] sm:$0xff]
  %v37 = vld [vmem:[%s0 + $0x30] sm:$0xff]
  %v38 = vld [vmem:[%s0 + $0x38] sm:$0xff]
  %v39 = vld [vmem:[%s0 + $0x40] sm:$0xff]
  %v40 = vld [vmem:[%s0 + $0x48] sm:$0xff]
  %v41 = vld [vmem:[%s0 + $0x50] sm:$0xff]
  %v42 = vld [vmem:[%s0 + $0x58] sm:$0xff]
  %s43 = scalar_lea.vmem %s2, 32
  %v44 = vld [vmem:[%s43] sm:$0xff]
  %45 = vrot.lane.b32.xlu0 %v31, 17
  %v46 = vpop.permute.xlu0 %45
  %47 = vrot.lane.b32.xlu0 %v35, 17
  %v48 = vpop.permute.xlu0 %47
  %49 = vrot.lane.b32.xlu0 %v39, 17
  %v50 = vpop.permute.xlu0 %49
  %51 = vrot.lane.b32.xlu0 %v32, 17
  %v52 = vpop.permute.xlu0 %51
  %53 = vrot.lane.b32.xlu0 %v36, 17
  %v54 = vpop.permute.xlu0 %53
  %55 = vrot.lane.b32.xlu0 %v40, 17
  %v56 = vpop.permute.xlu0 %55
  %57 = vrot.lane.b32.xlu0 %v33, 17
  %v58 = vpop.permute.xlu0 %57
  %59 = vrot.lane.b32.xlu0 %v37, 17
  %v60 = vpop.permute.xlu0 %59
  %61 = vrot.lane.b32.xlu0 %v41, 17
  %v62 = vpop.permute.xlu0 %61
  %63 = vrot.lane.b32.xlu0 %v34, 17
  %v64 = vpop.permute.xlu0 %63
  %65 = vrot.lane.b32.xlu0 %v38, 17
  %v66 = vpop.permute.xlu0 %65
  %67 = vrot.lane.b32.xlu0 %v42, 17
  %v68 = vpop.permute.xlu0 %67
  %v69 = vlaneseq
  %v70 = vand.u32 %v69, 127
  %vm71 = vcmp.lt.s32.totalorder %v70, 17
  %v72 = vsel %vm71, %v58, %v64
  %v73 = vsel %vm71, %v60, %v66
  %v74 = vsel %vm71, %v62, %v68
  %v75 = vsel %vm71, %v52, %v58
  %v76 = vsel %vm71, %v54, %v60
  %v77 = vsel %vm71, %v56, %v62
  %v78 = vsel %vm71, %v46, %v52
  %v79 = vsel %vm71, %v48, %v54
  %v80 = vsel %vm71, %v50, %v56
  %v81 = vsel %vm71, %v64, %v46
  %v82 = vsel %vm71, %v66, %v48
  %v83 = vsel %vm71, %v68, %v50
  %v84 = vld [vmem:[%s2] sm:$0xff]
  %vm85 = vcmask 195584
  %v87 = vsel %vm85, %v84, 0
  %89 = vmatprep.subr.mxu0 %v78
  %90 = vmatpush1.msra.mxu0 %v81
  %91 = vmatprep.subr.mxu0 %v79
  %92 = vmatpush1.msra.mxu0 %v82
  %93 = vmatprep.subr.mxu0 %v80
  %94 = vmatpush1.msra.mxu0 %v83
  %95 = vmatprep.subr.mxu0 0.0
  %96 = vmatpush1.msra.mxu0 0.0
  %97 = vmatprep.subr.mxu0 0.0
  %98 = vmatpush1.msra.mxu0 0.0
  %99 = vmatprep.subr.mxu0 0.0
  %100 = vmatpush1.msra.mxu0 0.0
  %101 = vmatprep.subr.mxu0 0.0
  %102 = vmatpush1.msra.mxu0 0.0
  %103 = vmatprep.subr.mxu0 0.0
  %104 = vmatpush1.msra.mxu0 0.0
  %105 = vmatprep.subr.mxu0 0.0
  %106 = vmatpush1.msra.mxu0 0.0
  %107 = vmatprep.subr.mxu0 0.0
  %108 = vmatpush1.msra.mxu0 0.0
  %109 = vmatprep.subr.mxu0 0.0
  %110 = vmatpush1.msra.mxu0 0.0
  %111 = vmatprep.subr.mxu0 0.0
  %112 = vmatpush1.msra.mxu0 0.0
  %113 = vmatprep.subr.mxu0 0.0
  %114 = vmatpush1.msra.mxu0 0.0
  %115 = vmatprep.subr.mxu0 0.0
  %116 = vmatpush1.msra.mxu0 0.0
  %117 = vmatprep.subr.mxu0 0.0
  %118 = vmatpush1.msra.mxu0 0.0
  %119 = vmatprep.subr.mxu0 0.0
  %120 = vmatpush1.msra.mxu0 0.0
  %121 = vmatprep.subr.mxu0 0.0
  %122 = vmatpush1.msra.mxu0 0.0
  %123 = vmatprep.subr.mxu0 0.0
  %124 = vmatpush1.msra.mxu0 0.0
  %125 = vmatprep.subr.mxu0 0.0
  %126 = vmatpush1.msra.mxu0 0.0
  %127 = vmatprep.subr.mxu0 0.0
  %128 = vmatpush1.msra.mxu0 0.0
  %129 = vmatprep.subr.mxu0 0.0
  %130 = vmatpush1.msra.mxu0 0.0
  %131 = vmatprep.subr.mxu0 0.0
  %132 = vmatpush1.msra.mxu0 0.0
  %133 = vmatprep.subr.mxu0 0.0
  %134 = vmatpush1.msra.mxu0 0.0
  %135 = vmatprep.subr.mxu0 0.0
  %136 = vmatpush1.msra.mxu0 0.0
  %137 = vmatprep.subr.mxu0 0.0
  %138 = vmatpush1.msra.mxu0 0.0
  %139 = vmatprep.subr.mxu0 0.0
  %140 = vmatpush1.msra.mxu0 0.0
  %141 = vmatprep.subr.mxu0 0.0
  %142 = vmatpush1.msra.mxu0 0.0
  %143 = vmatprep.subr.mxu0 0.0
  %144 = vmatpush1.msra.mxu0 0.0
  %145 = vmatprep.subr.mxu0 0.0
  %146 = vmatpush1.msra.mxu0 0.0
  %147 = vmatprep.subr.mxu0 0.0
  %148 = vmatpush1.msra.mxu0 0.0
  %149 = vmatprep.subr.mxu0 0.0
  %150 = vmatpush1.msra.mxu0 0.0
  %151 = vmatprep.subr.mxu0 0.0
  %152 = vmatpush1.msra.mxu0 0.0
  %153 = vmatprep.mubr.f32.mxu0 0.0
  %154 = vmatmul.mubr.f32.gmra.mrb[0].mxu0 %v87
  %v155 = vpop.f32.mrb[0].mxu0
  %v156 = vadd.f32 0.0, %v155
  %v157 = vpop.f32.mrb[0].mxu0
  %v158 = vadd.f32 0.0, %v157
  %159 = vdwg.mxu0
  %160 = vmatprep.subr.mxu0 %v72
  %161 = vmatpush1.msra.mxu0 %v75
  %162 = vmatprep.subr.mxu0 %v73
  %163 = vmatpush1.msra.mxu0 %v76
  %164 = vmatprep.subr.mxu0 %v74
  %165 = vmatpush1.msra.mxu0 %v77
  %166 = vmatprep.subr.mxu0 0.0
  %167 = vmatpush1.msra.mxu0 0.0
  %168 = vmatprep.subr.mxu0 0.0
  %169 = vmatpush1.msra.mxu0 0.0
  %170 = vmatprep.subr.mxu0 0.0
  %171 = vmatpush1.msra.mxu0 0.0
  %172 = vmatprep.subr.mxu0 0.0
  %173 = vmatpush1.msra.mxu0 0.0
  %174 = vmatprep.subr.mxu0 0.0
  %175 = vmatpush1.msra.mxu0 0.0
  %176 = vmatprep.subr.mxu0 0.0
  %177 = vmatpush1.msra.mxu0 0.0
  %178 = vmatprep.subr.mxu0 0.0
  %179 = vmatpush1.msra.mxu0 0.0
  %180 = vmatprep.subr.mxu0 0.0
  %181 = vmatpush1.msra.mxu0 0.0
  %182 = vmatprep.subr.mxu0 0.0
  %183 = vmatpush1.msra.mxu0 0.0
  %184 = vmatprep.subr.mxu0 0.0
  %185 = vmatpush1.msra.mxu0 0.0
  %186 = vmatprep.subr.mxu0 0.0
  %187 = vmatpush1.msra.mxu0 0.0
  %188 = vmatprep.subr.mxu0 0.0
  %189 = vmatpush1.msra.mxu0 0.0
  %190 = vmatprep.subr.mxu0 0.0
  %191 = vmatpush1.msra.mxu0 0.0
  %192 = vmatprep.subr.mxu0 0.0
  %193 = vmatpush1.msra.mxu0 0.0
  %194 = vmatprep.subr.mxu0 0.0
  %195 = vmatpush1.msra.mxu0 0.0
  %196 = vmatprep.subr.mxu0 0.0
  %197 = vmatpush1.msra.mxu0 0.0
  %198 = vmatprep.subr.mxu0 0.0
  %199 = vmatpush1.msra.mxu0 0.0
  %200 = vmatprep.subr.mxu0 0.0
  %201 = vmatpush1.msra.mxu0 0.0
  %202 = vmatprep.subr.mxu0 0.0
  %203 = vmatpush1.msra.mxu0 0.0
  %204 = vmatprep.subr.mxu0 0.0
  %205 = vmatpush1.msra.mxu0 0.0
  %206 = vmatprep.subr.mxu0 0.0
  %207 = vmatpush1.msra.mxu0 0.0
  %208 = vmatprep.subr.mxu0 0.0
  %209 = vmatpush1.msra.mxu0 0.0
  %210 = vmatprep.subr.mxu0 0.0
  %211 = vmatpush1.msra.mxu0 0.0
  %212 = vmatprep.subr.mxu0 0.0
  %213 = vmatpush1.msra.mxu0 0.0
  %214 = vmatprep.subr.mxu0 0.0
  %215 = vmatpush1.msra.mxu0 0.0
  %216 = vmatprep.subr.mxu0 0.0
  %217 = vmatpush1.msra.mxu0 0.0
  %218 = vmatprep.subr.mxu0 0.0
  %219 = vmatpush1.msra.mxu0 0.0
  %220 = vmatprep.subr.mxu0 0.0
  %221 = vmatpush1.msra.mxu0 0.0
  %222 = vmatprep.subr.mxu0 0.0
  %223 = vmatpush1.msra.mxu0 0.0
  %224 = vmatprep.mubr.f32.mxu0 0.0
  %225 = vmatmul.mubr.f32.gmra.mrb[0].mxu0 %v87
  %v226 = vpop.f32.mrb[0].mxu0
  %v227 = vadd.f32 0.0, %v226
  %v228 = vpop.f32.mrb[0].mxu0
  %v229 = vadd.f32 0.0, %v228
  %230 = vdwg.mxu0
  %v231 = vlaneseq
  %v232 = vshrl.u32 %v231, 7
  %v233 = vsub.s32 0, %v232
  %v234 = vrot.slane %v23, %v233
  %v235 = vlaneseq
  %v236 = vshrl.u32 %v235, 7
  %v237 = vsub.s32 0, %v236
  %v238 = vrot.slane %v24, %v237
  %v239 = vlaneseq
  %v240 = vshrl.u32 %v239, 7
  %v241 = vsub.s32 0, %v240
  %v242 = vrot.slane %v25, %v241
  %v243 = vlaneseq
  %v244 = vshrl.u32 %v243, 7
  %v245 = vsub.s32 0, %v244
  %v246 = vrot.slane %v26, %v245
  %v247 = vmul.f32 %v156, %v234
  %v248 = vmul.f32 %v158, %v238
  %v249 = vmul.f32 %v227, %v242
  %v250 = vmul.f32 %v229, %v246
  %v252 = vsel %vm85, %v44, 0
  %254 = vmatprep.subr.mxu0 %v32
  %255 = vmatpush1.msra.mxu0 %v31
  %256 = vmatprep.subr.mxu0 %v36
  %257 = vmatpush1.msra.mxu0 %v35
  %258 = vmatprep.subr.mxu0 %v40
  %259 = vmatpush1.msra.mxu0 %v39
  %260 = vmatprep.subr.mxu0 0.0
  %261 = vmatpush1.msra.mxu0 0.0
  %262 = vmatprep.subr.mxu0 0.0
  %263 = vmatpush1.msra.mxu0 0.0
  %264 = vmatprep.subr.mxu0 0.0
  %265 = vmatpush1.msra.mxu0 0.0
  %266 = vmatprep.subr.mxu0 0.0
  %267 = vmatpush1.msra.mxu0 0.0
  %268 = vmatprep.subr.mxu0 0.0
  %269 = vmatpush1.msra.mxu0 0.0
  %270 = vmatprep.subr.mxu0 0.0
  %271 = vmatpush1.msra.mxu0 0.0
  %272 = vmatprep.subr.mxu0 0.0
  %273 = vmatpush1.msra.mxu0 0.0
  %274 = vmatprep.subr.mxu0 0.0
  %275 = vmatpush1.msra.mxu0 0.0
  %276 = vmatprep.subr.mxu0 0.0
  %277 = vmatpush1.msra.mxu0 0.0
  %278 = vmatprep.subr.mxu0 0.0
  %279 = vmatpush1.msra.mxu0 0.0
  %280 = vmatprep.subr.mxu0 0.0
  %281 = vmatpush1.msra.mxu0 0.0
  %282 = vmatprep.subr.mxu0 0.0
  %283 = vmatpush1.msra.mxu0 0.0
  %284 = vmatprep.subr.mxu0 0.0
  %285 = vmatpush1.msra.mxu0 0.0
  %286 = vmatprep.subr.mxu0 0.0
  %287 = vmatpush1.msra.mxu0 0.0
  %288 = vmatprep.subr.mxu0 0.0
  %289 = vmatpush1.msra.mxu0 0.0
  %290 = vmatprep.subr.mxu0 0.0
  %291 = vmatpush1.msra.mxu0 0.0
  %292 = vmatprep.subr.mxu0 0.0
  %293 = vmatpush1.msra.mxu0 0.0
  %294 = vmatprep.subr.mxu0 0.0
  %295 = vmatpush1.msra.mxu0 0.0
  %296 = vmatprep.subr.mxu0 0.0
  %297 = vmatpush1.msra.mxu0 0.0
  %298 = vmatprep.subr.mxu0 0.0
  %299 = vmatpush1.msra.mxu0 0.0
  %300 = vmatprep.subr.mxu0 0.0
  %301 = vmatpush1.msra.mxu0 0.0
  %302 = vmatprep.subr.mxu0 0.0
  %303 = vmatpush1.msra.mxu0 0.0
  %304 = vmatprep.subr.mxu0 0.0
  %305 = vmatpush1.msra.mxu0 0.0
  %306 = vmatprep.subr.mxu0 0.0
  %307 = vmatpush1.msra.mxu0 0.0
  %308 = vmatprep.subr.mxu0 0.0
  %309 = vmatpush1.msra.mxu0 0.0
  %310 = vmatprep.subr.mxu0 0.0
  %311 = vmatpush1.msra.mxu0 0.0
  %312 = vmatprep.subr.mxu0 0.0
  %313 = vmatpush1.msra.mxu0 0.0
  %314 = vmatprep.subr.mxu0 0.0
  %315 = vmatpush1.msra.mxu0 0.0
  %316 = vmatprep.subr.mxu0 0.0
  %317 = vmatpush1.msra.mxu0 0.0
  %318 = vmatprep.mubr.f32.mxu0 0.0
  %319 = vmatmul.mubr.f32.gmra.mrb[0].mxu0 %v252
  %v320 = vpop.f32.mrb[0].mxu0
  %v321 = vadd.f32 %v247, %v320
  %v322 = vpop.f32.mrb[0].mxu0
  %v323 = vadd.f32 %v248, %v322
  %324 = vdwg.mxu0
  %325 = vmatprep.subr.mxu0 %v34
  %326 = vmatpush1.msra.mxu0 %v33
  %327 = vmatprep.subr.mxu0 %v38
  %328 = vmatpush1.msra.mxu0 %v37
  %329 = vmatprep.subr.mxu0 %v42
  %330 = vmatpush1.msra.mxu0 %v41
  %331 = vmatprep.subr.mxu0 0.0
  %332 = vmatpush1.msra.mxu0 0.0
  %333 = vmatprep.subr.mxu0 0.0
  %334 = vmatpush1.msra.mxu0 0.0
  %335 = vmatprep.subr.mxu0 0.0
  %336 = vmatpush1.msra.mxu0 0.0
  %337 = vmatprep.subr.mxu0 0.0
  %338 = vmatpush1.msra.mxu0 0.0
  %339 = vmatprep.subr.mxu0 0.0
  %340 = vmatpush1.msra.mxu0 0.0
  %341 = vmatprep.subr.mxu0 0.0
  %342 = vmatpush1.msra.mxu0 0.0
  %343 = vmatprep.subr.mxu0 0.0
  %344 = vmatpush1.msra.mxu0 0.0
  %345 = vmatprep.subr.mxu0 0.0
  %346 = vmatpush1.msra.mxu0 0.0
  %347 = vmatprep.subr.mxu0 0.0
  %348 = vmatpush1.msra.mxu0 0.0
  %349 = vmatprep.subr.mxu0 0.0
  %350 = vmatpush1.msra.mxu0 0.0
  %351 = vmatprep.subr.mxu0 0.0
  %352 = vmatpush1.msra.mxu0 0.0
  %353 = vmatprep.subr.mxu0 0.0
  %354 = vmatpush1.msra.mxu0 0.0
  %355 = vmatprep.subr.mxu0 0.0
  %356 = vmatpush1.msra.mxu0 0.0
  %357 = vmatprep.subr.mxu0 0.0
  %358 = vmatpush1.msra.mxu0 0.0
  %359 = vmatprep.subr.mxu0 0.0
  %360 = vmatpush1.msra.mxu0 0.0
  %361 = vmatprep.subr.mxu0 0.0
  %362 = vmatpush1.msra.mxu0 0.0
  %363 = vmatprep.subr.mxu0 0.0
  %364 = vmatpush1.msra.mxu0 0.0
  %365 = vmatprep.subr.mxu0 0.0
  %366 = vmatpush1.msra.mxu0 0.0
  %367 = vmatprep.subr.mxu0 0.0
  %368 = vmatpush1.msra.mxu0 0.0
  %369 = vmatprep.subr.mxu0 0.0
  %370 = vmatpush1.msra.mxu0 0.0
  %371 = vmatprep.subr.mxu0 0.0
  %372 = vmatpush1.msra.mxu0 0.0
  %373 = vmatprep.subr.mxu0 0.0
  %374 = vmatpush1.msra.mxu0 0.0
  %375 = vmatprep.subr.mxu0 0.0
  %376 = vmatpush1.msra.mxu0 0.0
  %377 = vmatprep.subr.mxu0 0.0
  %378 = vmatpush1.msra.mxu0 0.0
  %379 = vmatprep.subr.mxu0 0.0
  %380 = vmatpush1.msra.mxu0 0.0
  %381 = vmatprep.subr.mxu0 0.0
  %382 = vmatpush1.msra.mxu0 0.0
  %383 = vmatprep.subr.mxu0 0.0
  %384 = vmatpush1.msra.mxu0 0.0
  %385 = vmatprep.subr.mxu0 0.0
  %386 = vmatpush1.msra.mxu0 0.0
  %387 = vmatprep.subr.mxu0 0.0
  %388 = vmatpush1.msra.mxu0 0.0
  %389 = vmatprep.mubr.f32.mxu0 0.0
  %390 = vmatmul.mubr.f32.gmra.mrb[0].mxu0 %v252
  %v391 = vpop.f32.mrb[0].mxu0
  %v392 = vadd.f32 %v249, %v391
  %v393 = vpop.f32.mrb[0].mxu0
  %v394 = vadd.f32 %v250, %v393
  %395 = vdwg.mxu0
  %396 = vrot.lane.b32.xlu0 %v31, 16
  %v397 = vpop.permute.xlu0 %396
  %398 = vrot.lane.b32.xlu0 %v35, 16
  %v399 = vpop.permute.xlu0 %398
  %400 = vrot.lane.b32.xlu0 %v39, 16
  %v401 = vpop.permute.xlu0 %400
  %402 = vrot.lane.b32.xlu0 %v32, 16
  %v403 = vpop.permute.xlu0 %402
  %404 = vrot.lane.b32.xlu0 %v36, 16
  %v405 = vpop.permute.xlu0 %404
  %406 = vrot.lane.b32.xlu0 %v40, 16
  %v407 = vpop.permute.xlu0 %406
  %408 = vrot.lane.b32.xlu0 %v33, 16
  %v409 = vpop.permute.xlu0 %408
  %410 = vrot.lane.b32.xlu0 %v37, 16
  %v411 = vpop.permute.xlu0 %410
  %412 = vrot.lane.b32.xlu0 %v41, 16
  %v413 = vpop.permute.xlu0 %412
  %414 = vrot.lane.b32.xlu0 %v34, 16
  %v415 = vpop.permute.xlu0 %414
  %416 = vrot.lane.b32.xlu0 %v38, 16
  %v417 = vpop.permute.xlu0 %416
  %418 = vrot.lane.b32.xlu0 %v42, 16
  %v419 = vpop.permute.xlu0 %418
  %vm420 = vcmp.lt.s32.totalorder %v70, 16
  %v421 = vsel %vm420, %v409, %v415
  %v422 = vsel %vm420, %v411, %v417
  %v423 = vsel %vm420, %v413, %v419
  %v424 = vsel %vm420, %v403, %v409
  %v425 = vsel %vm420, %v405, %v411
  %v426 = vsel %vm420, %v407, %v413
  %v427 = vsel %vm420, %v397, %v403
  %v428 = vsel %vm420, %v399, %v405
  %v429 = vsel %vm420, %v401, %v407
  %v430 = vsel %vm420, %v415, %v397
  %v431 = vsel %vm420, %v417, %v399
  %v432 = vsel %vm420, %v419, %v401
  %s433 = scalar_lea.vmem %s2, 8
  %v434 = vld [vmem:[%s433] sm:$0xff]
  %v436 = vsel %vm85, %v434, 0
  %438 = vmatprep.subr.mxu0 %v427
  %439 = vmatpush1.msra.mxu0 %v430
  %440 = vmatprep.subr.mxu0 %v428
  %441 = vmatpush1.msra.mxu0 %v431
  %442 = vmatprep.subr.mxu0 %v429
  %443 = vmatpush1.msra.mxu0 %v432
  %444 = vmatprep.subr.mxu0 0.0
  %445 = vmatpush1.msra.mxu0 0.0
  %446 = vmatprep.subr.mxu0 0.0
  %447 = vmatpush1.msra.mxu0 0.0
  %448 = vmatprep.subr.mxu0 0.0
  %449 = vmatpush1.msra.mxu0 0.0
  %450 = vmatprep.subr.mxu0 0.0
  %451 = vmatpush1.msra.mxu0 0.0
  %452 = vmatprep.subr.mxu0 0.0
  %453 = vmatpush1.msra.mxu0 0.0
  %454 = vmatprep.subr.mxu0 0.0
  %455 = vmatpush1.msra.mxu0 0.0
  %456 = vmatprep.subr.mxu0 0.0
  %457 = vmatpush1.msra.mxu0 0.0
  %458 = vmatprep.subr.mxu0 0.0
  %459 = vmatpush1.msra.mxu0 0.0
  %460 = vmatprep.subr.mxu0 0.0
  %461 = vmatpush1.msra.mxu0 0.0
  %462 = vmatprep.subr.mxu0 0.0
  %463 = vmatpush1.msra.mxu0 0.0
  %464 = vmatprep.subr.mxu0 0.0
  %465 = vmatpush1.msra.mxu0 0.0
  %466 = vmatprep.subr.mxu0 0.0
  %467 = vmatpush1.msra.mxu0 0.0
  %468 = vmatprep.subr.mxu0 0.0
  %469 = vmatpush1.msra.mxu0 0.0
  %470 = vmatprep.subr.mxu0 0.0
  %471 = vmatpush1.msra.mxu0 0.0
  %472 = vmatprep.subr.mxu0 0.0
  %473 = vmatpush1.msra.mxu0 0.0
  %474 = vmatprep.subr.mxu0 0.0
  %475 = vmatpush1.msra.mxu0 0.0
  %476 = vmatprep.subr.mxu0 0.0
  %477 = vmatpush1.msra.mxu0 0.0
  %478 = vmatprep.subr.mxu0 0.0
  %479 = vmatpush1.msra.mxu0 0.0
  %480 = vmatprep.subr.mxu0 0.0
  %481 = vmatpush1.msra.mxu0 0.0
  %482 = vmatprep.subr.mxu0 0.0
  %483 = vmatpush1.msra.mxu0 0.0
  %484 = vmatprep.subr.mxu0 0.0
  %485 = vmatpush1.msra.mxu0 0.0
  %486 = vmatprep.subr.mxu0 0.0
  %487 = vmatpush1.msra.mxu0 0.0
  %488 = vmatprep.subr.mxu0 0.0
  %489 = vmatpush1.msra.mxu0 0.0
  %490 = vmatprep.subr.mxu0 0.0
  %491 = vmatpush1.msra.mxu0 0.0
  %492 = vmatprep.subr.mxu0 0.0
  %493 = vmatpush1.msra.mxu0 0.0
  %494 = vmatprep.subr.mxu0 0.0
  %495 = vmatpush1.msra.mxu0 0.0
  %496 = vmatprep.subr.mxu0 0.0
  %497 = vmatpush1.msra.mxu0 0.0
  %498 = vmatprep.subr.mxu0 0.0
  %499 = vmatpush1.msra.mxu0 0.0
  %500 = vmatprep.subr.mxu0 0.0
  %501 = vmatpush1.msra.mxu0 0.0
  %502 = vmatprep.mubr.f32.mxu0 0.0
  %503 = vmatmul.mubr.f32.gmra.mrb[0].mxu0 %v436
  %v504 = vpop.f32.mrb[0].mxu0
  %v505 = vadd.f32 0.0, %v504
  %v506 = vpop.f32.mrb[0].mxu0
  %v507 = vadd.f32 0.0, %v506
  %508 = vdwg.mxu0
  %509 = vmatprep.subr.mxu0 %v421
  %510 = vmatpush1.msra.mxu0 %v424
  %511 = vmatprep.subr.mxu0 %v422
  %512 = vmatpush1.msra.mxu0 %v425
  %513 = vmatprep.subr.mxu0 %v423
  %514 = vmatpush1.msra.mxu0 %v426
  %515 = vmatprep.subr.mxu0 0.0
  %516 = vmatpush1.msra.mxu0 0.0
  %517 = vmatprep.subr.mxu0 0.0
  %518 = vmatpush1.msra.mxu0 0.0
  %519 = vmatprep.subr.mxu0 0.0
  %520 = vmatpush1.msra.mxu0 0.0
  %521 = vmatprep.subr.mxu0 0.0
  %522 = vmatpush1.msra.mxu0 0.0
  %523 = vmatprep.subr.mxu0 0.0
  %524 = vmatpush1.msra.mxu0 0.0
  %525 = vmatprep.subr.mxu0 0.0
  %526 = vmatpush1.msra.mxu0 0.0
  %527 = vmatprep.subr.mxu0 0.0
  %528 = vmatpush1.msra.mxu0 0.0
  %529 = vmatprep.subr.mxu0 0.0
  %530 = vmatpush1.msra.mxu0 0.0
  %531 = vmatprep.subr.mxu0 0.0
  %532 = vmatpush1.msra.mxu0 0.0
  %533 = vmatprep.subr.mxu0 0.0
  %534 = vmatpush1.msra.mxu0 0.0
  %535 = vmatprep.subr.mxu0 0.0
  %536 = vmatpush1.msra.mxu0 0.0
  %537 = vmatprep.subr.mxu0 0.0
  %538 = vmatpush1.msra.mxu0 0.0
  %539 = vmatprep.subr.mxu0 0.0
  %540 = vmatpush1.msra.mxu0 0.0
  %541 = vmatprep.subr.mxu0 0.0
  %542 = vmatpush1.msra.mxu0 0.0
  %543 = vmatprep.subr.mxu0 0.0
  %544 = vmatpush1.msra.mxu0 0.0
  %545 = vmatprep.subr.mxu0 0.0
  %546 = vmatpush1.msra.mxu0 0.0
  %547 = vmatprep.subr.mxu0 0.0
  %548 = vmatpush1.msra.mxu0 0.0
  %549 = vmatprep.subr.mxu0 0.0
  %550 = vmatpush1.msra.mxu0 0.0
  %551 = vmatprep.subr.mxu0 0.0
  %552 = vmatpush1.msra.mxu0 0.0
  %553 = vmatprep.subr.mxu0 0.0
  %554 = vmatpush1.msra.mxu0 0.0
  %555 = vmatprep.subr.mxu0 0.0
  %556 = vmatpush1.msra.mxu0 0.0
  %557 = vmatprep.subr.mxu0 0.0
  %558 = vmatpush1.msra.mxu0 0.0
  %559 = vmatprep.subr.mxu0 0.0
  %560 = vmatpush1.msra.mxu0 0.0
  %561 = vmatprep.subr.mxu0 0.0
  %562 = vmatpush1.msra.mxu0 0.0
  %563 = vmatprep.subr.mxu0 0.0
  %564 = vmatpush1.msra.mxu0 0.0
  %565 = vmatprep.subr.mxu0 0.0
  %566 = vmatpush1.msra.mxu0 0.0
  %567 = vmatprep.subr.mxu0 0.0
  %568 = vmatpush1.msra.mxu0 0.0
  %569 = vmatprep.subr.mxu0 0.0
  %570 = vmatpush1.msra.mxu0 0.0
  %571 = vmatprep.subr.mxu0 0.0
  %572 = vmatpush1.msra.mxu0 0.0
  %573 = vmatprep.mubr.f32.mxu0 0.0
  %574 = vmatmul.mubr.f32.gmra.mrb[0].mxu0 %v436
  %v575 = vpop.f32.mrb[0].mxu0
  %v576 = vadd.f32 0.0, %v575
  %v577 = vpop.f32.mrb[0].mxu0
  %v578 = vadd.f32 0.0, %v577
  %579 = vdwg.mxu0
  %v580 = vlaneseq
  %v581 = vshrl.u32 %v580, 7
  %v582 = vsub.s32 1, %v581
  %v583 = vrot.slane %v23, %v582
  %v584 = vlaneseq
  %v585 = vshrl.u32 %v584, 7
  %v586 = vsub.s32 1, %v585
  %v587 = vrot.slane %v24, %v586
  %v588 = vlaneseq
  %v589 = vshrl.u32 %v588, 7
  %v590 = vsub.s32 1, %v589
  %v591 = vrot.slane %v25, %v590
  %v592 = vlaneseq
  %v593 = vshrl.u32 %v592, 7
  %v594 = vsub.s32 1, %v593
  %v595 = vrot.slane %v26, %v594
  %v596 = vmul.f32 %v505, %v583
  %v597 = vmul.f32 %v507, %v587
  %v598 = vmul.f32 %v576, %v591
  %v599 = vmul.f32 %v578, %v595
  %v600 = vadd.f32 %v321, %v596
  %v601 = vadd.f32 %v323, %v597
  %v602 = vadd.f32 %v392, %v598
  %v603 = vadd.f32 %v394, %v599
  %604 = vrot.lane.b32.xlu0 %v31, 15
  %v605 = vpop.permute.xlu0 %604
  %606 = vrot.lane.b32.xlu0 %v35, 15
  %v607 = vpop.permute.xlu0 %606
  %608 = vrot.lane.b32.xlu0 %v39, 15
  %v609 = vpop.permute.xlu0 %608
  %610 = vrot.lane.b32.xlu0 %v32, 15
  %v611 = vpop.permute.xlu0 %610
  %612 = vrot.lane.b32.xlu0 %v36, 15
  %v613 = vpop.permute.xlu0 %612
  %614 = vrot.lane.b32.xlu0 %v40, 15
  %v615 = vpop.permute.xlu0 %614
  %616 = vrot.lane.b32.xlu0 %v33, 15
  %v617 = vpop.permute.xlu0 %616
  %618 = vrot.lane.b32.xlu0 %v37, 15
  %v619 = vpop.permute.xlu0 %618
  %620 = vrot.lane.b32.xlu0 %v41, 15
  %v621 = vpop.permute.xlu0 %620
  %622 = vrot.lane.b32.xlu0 %v34, 15
  %v623 = vpop.permute.xlu0 %622
  %624 = vrot.lane.b32.xlu0 %v38, 15
  %v625 = vpop.permute.xlu0 %624
  %626 = vrot.lane.b32.xlu0 %v42, 15
  %v627 = vpop.permute.xlu0 %626
  %vm628 = vcmp.lt.s32.totalorder %v70, 15
  %v629 = vsel %vm628, %v617, %v623
  %v630 = vsel %vm628, %v619, %v625
  %v631 = vsel %vm628, %v621, %v627
  %v632 = vsel %vm628, %v611, %v617
  %v633 = vsel %vm628, %v613, %v619
  %v634 = vsel %vm628, %v615, %v621
  %v635 = vsel %vm628, %v605, %v611
  %v636 = vsel %vm628, %v607, %v613
  %v637 = vsel %vm628, %v609, %v615
  %v638 = vsel %vm628, %v623, %v605
  %v639 = vsel %vm628, %v625, %v607
  %v640 = vsel %vm628, %v627, %v609
  %s641 = scalar_lea.vmem %s2, 16
  %v642 = vld [vmem:[%s641] sm:$0xff]
  %v644 = vsel %vm85, %v642, 0
  %646 = vmatprep.subr.mxu0 %v635
  %647 = vmatpush1.msra.mxu0 %v638
  %648 = vmatprep.subr.mxu0 %v636
  %649 = vmatpush1.msra.mxu0 %v639
  %650 = vmatprep.subr.mxu0 %v637
  %651 = vmatpush1.msra.mxu0 %v640
  %652 = vmatprep.subr.mxu0 0.0
  %653 = vmatpush1.msra.mxu0 0.0
  %654 = vmatprep.subr.mxu0 0.0
  %655 = vmatpush1.msra.mxu0 0.0
  %656 = vmatprep.subr.mxu0 0.0
  %657 = vmatpush1.msra.mxu0 0.0
  %658 = vmatprep.subr.mxu0 0.0
  %659 = vmatpush1.msra.mxu0 0.0
  %660 = vmatprep.subr.mxu0 0.0
  %661 = vmatpush1.msra.mxu0 0.0
  %662 = vmatprep.subr.mxu0 0.0
  %663 = vmatpush1.msra.mxu0 0.0
  %664 = vmatprep.subr.mxu0 0.0
  %665 = vmatpush1.msra.mxu0 0.0
  %666 = vmatprep.subr.mxu0 0.0
  %667 = vmatpush1.msra.mxu0 0.0
  %668 = vmatprep.subr.mxu0 0.0
  %669 = vmatpush1.msra.mxu0 0.0
  %670 = vmatprep.subr.mxu0 0.0
  %671 = vmatpush1.msra.mxu0 0.0
  %672 = vmatprep.subr.mxu0 0.0
  %673 = vmatpush1.msra.mxu0 0.0
  %674 = vmatprep.subr.mxu0 0.0
  %675 = vmatpush1.msra.mxu0 0.0
  %676 = vmatprep.subr.mxu0 0.0
  %677 = vmatpush1.msra.mxu0 0.0
  %678 = vmatprep.subr.mxu0 0.0
  %679 = vmatpush1.msra.mxu0 0.0
  %680 = vmatprep.subr.mxu0 0.0
  %681 = vmatpush1.msra.mxu0 0.0
  %682 = vmatprep.subr.mxu0 0.0
  %683 = vmatpush1.msra.mxu0 0.0
  %684 = vmatprep.subr.mxu0 0.0
  %685 = vmatpush1.msra.mxu0 0.0
  %686 = vmatprep.subr.mxu0 0.0
  %687 = vmatpush1.msra.mxu0 0.0
  %688 = vmatprep.subr.mxu0 0.0
  %689 = vmatpush1.msra.mxu0 0.0
  %690 = vmatprep.subr.mxu0 0.0
  %691 = vmatpush1.msra.mxu0 0.0
  %692 = vmatprep.subr.mxu0 0.0
  %693 = vmatpush1.msra.mxu0 0.0
  %694 = vmatprep.subr.mxu0 0.0
  %695 = vmatpush1.msra.mxu0 0.0
  %696 = vmatprep.subr.mxu0 0.0
  %697 = vmatpush1.msra.mxu0 0.0
  %698 = vmatprep.subr.mxu0 0.0
  %699 = vmatpush1.msra.mxu0 0.0
  %700 = vmatprep.subr.mxu0 0.0
  %701 = vmatpush1.msra.mxu0 0.0
  %702 = vmatprep.subr.mxu0 0.0
  %703 = vmatpush1.msra.mxu0 0.0
  %704 = vmatprep.subr.mxu0 0.0
  %705 = vmatpush1.msra.mxu0 0.0
  %706 = vmatprep.subr.mxu0 0.0
  %707 = vmatpush1.msra.mxu0 0.0
  %708 = vmatprep.subr.mxu0 0.0
  %709 = vmatpush1.msra.mxu0 0.0
  %710 = vmatprep.mubr.f32.mxu0 0.0
  %711 = vmatmul.mubr.f32.gmra.mrb[0].mxu0 %v644
  %v712 = vpop.f32.mrb[0].mxu0
  %v713 = vadd.f32 0.0, %v712
  %v714 = vpop.f32.mrb[0].mxu0
  %v715 = vadd.f32 0.0, %v714
  %716 = vdwg.mxu0
  %717 = vmatprep.subr.mxu0 %v629
  %718 = vmatpush1.msra.mxu0 %v632
  %719 = vmatprep.subr.mxu0 %v630
  %720 = vmatpush1.msra.mxu0 %v633
  %721 = vmatprep.subr.mxu0 %v631
  %722 = vmatpush1.msra.mxu0 %v634
  %723 = vmatprep.subr.mxu0 0.0
  %724 = vmatpush1.msra.mxu0 0.0
  %725 = vmatprep.subr.mxu0 0.0
  %726 = vmatpush1.msra.mxu0 0.0
  %727 = vmatprep.subr.mxu0 0.0
  %728 = vmatpush1.msra.mxu0 0.0
  %729 = vmatprep.subr.mxu0 0.0
  %730 = vmatpush1.msra.mxu0 0.0
  %731 = vmatprep.subr.mxu0 0.0
  %732 = vmatpush1.msra.mxu0 0.0
  %733 = vmatprep.subr.mxu0 0.0
  %734 = vmatpush1.msra.mxu0 0.0
  %735 = vmatprep.subr.mxu0 0.0
  %736 = vmatpush1.msra.mxu0 0.0
  %737 = vmatprep.subr.mxu0 0.0
  %738 = vmatpush1.msra.mxu0 0.0
  %739 = vmatprep.subr.mxu0 0.0
  %740 = vmatpush1.msra.mxu0 0.0
  %741 = vmatprep.subr.mxu0 0.0
  %742 = vmatpush1.msra.mxu0 0.0
  %743 = vmatprep.subr.mxu0 0.0
  %744 = vmatpush1.msra.mxu0 0.0
  %745 = vmatprep.subr.mxu0 0.0
  %746 = vmatpush1.msra.mxu0 0.0
  %747 = vmatprep.subr.mxu0 0.0
  %748 = vmatpush1.msra.mxu0 0.0
  %749 = vmatprep.subr.mxu0 0.0
  %750 = vmatpush1.msra.mxu0 0.0
  %751 = vmatprep.subr.mxu0 0.0
  %752 = vmatpush1.msra.mxu0 0.0
  %753 = vmatprep.subr.mxu0 0.0
  %754 = vmatpush1.msra.mxu0 0.0
  %755 = vmatprep.subr.mxu0 0.0
  %756 = vmatpush1.msra.mxu0 0.0
  %757 = vmatprep.subr.mxu0 0.0
  %758 = vmatpush1.msra.mxu0 0.0
  %759 = vmatprep.subr.mxu0 0.0
  %760 = vmatpush1.msra.mxu0 0.0
  %761 = vmatprep.subr.mxu0 0.0
  %762 = vmatpush1.msra.mxu0 0.0
  %763 = vmatprep.subr.mxu0 0.0
  %764 = vmatpush1.msra.mxu0 0.0
  %765 = vmatprep.subr.mxu0 0.0
  %766 = vmatpush1.msra.mxu0 0.0
  %767 = vmatprep.subr.mxu0 0.0
  %768 = vmatpush1.msra.mxu0 0.0
  %769 = vmatprep.subr.mxu0 0.0
  %770 = vmatpush1.msra.mxu0 0.0
  %771 = vmatprep.subr.mxu0 0.0
  %772 = vmatpush1.msra.mxu0 0.0
  %773 = vmatprep.subr.mxu0 0.0
  %774 = vmatpush1.msra.mxu0 0.0
  %775 = vmatprep.subr.mxu0 0.0
  %776 = vmatpush1.msra.mxu0 0.0
  %777 = vmatprep.subr.mxu0 0.0
  %778 = vmatpush1.msra.mxu0 0.0
  %779 = vmatprep.subr.mxu0 0.0
  %780 = vmatpush1.msra.mxu0 0.0
  %781 = vmatprep.mubr.f32.mxu0 0.0
  %782 = vmatmul.mubr.f32.gmra.mrb[0].mxu0 %v644
  %v783 = vpop.f32.mrb[0].mxu0
  %v784 = vadd.f32 0.0, %v783
  %v785 = vpop.f32.mrb[0].mxu0
  %v786 = vadd.f32 0.0, %v785
  %787 = vdwg.mxu0
  %v788 = vlaneseq
  %v789 = vshrl.u32 %v788, 7
  %v790 = vsub.s32 2, %v789
  %v791 = vrot.slane %v23, %v790
  %v792 = vlaneseq
  %v793 = vshrl.u32 %v792, 7
  %v794 = vsub.s32 2, %v793
  %v795 = vrot.slane %v24, %v794
  %v796 = vlaneseq
  %v797 = vshrl.u32 %v796, 7
  %v798 = vsub.s32 2, %v797
  %v799 = vrot.slane %v25, %v798
  %v800 = vlaneseq
  %v801 = vshrl.u32 %v800, 7
  %v802 = vsub.s32 2, %v801
  %v803 = vrot.slane %v26, %v802
  %v804 = vmul.f32 %v713, %v791
  %v805 = vmul.f32 %v715, %v795
  %v806 = vmul.f32 %v784, %v799
  %v807 = vmul.f32 %v786, %v803
  %v808 = vadd.f32 %v600, %v804
  %v809 = vadd.f32 %v601, %v805
  %v810 = vadd.f32 %v602, %v806
  %v811 = vadd.f32 %v603, %v807
  %812 = vrot.lane.b32.xlu0 %v31, 1
  %v813 = vpop.permute.xlu0 %812
  %814 = vrot.lane.b32.xlu0 %v35, 1
  %v815 = vpop.permute.xlu0 %814
  %816 = vrot.lane.b32.xlu0 %v39, 1
  %v817 = vpop.permute.xlu0 %816
  %818 = vrot.lane.b32.xlu0 %v32, 1
  %v819 = vpop.permute.xlu0 %818
  %820 = vrot.lane.b32.xlu0 %v36, 1
  %v821 = vpop.permute.xlu0 %820
  %822 = vrot.lane.b32.xlu0 %v40, 1
  %v823 = vpop.permute.xlu0 %822
  %824 = vrot.lane.b32.xlu0 %v33, 1
  %v825 = vpop.permute.xlu0 %824
  %826 = vrot.lane.b32.xlu0 %v37, 1
  %v827 = vpop.permute.xlu0 %826
  %828 = vrot.lane.b32.xlu0 %v41, 1
  %v829 = vpop.permute.xlu0 %828
  %830 = vrot.lane.b32.xlu0 %v34, 1
  %v831 = vpop.permute.xlu0 %830
  %832 = vrot.lane.b32.xlu0 %v38, 1
  %v833 = vpop.permute.xlu0 %832
  %834 = vrot.lane.b32.xlu0 %v42, 1
  %v835 = vpop.permute.xlu0 %834
  %vm836 = vcmp.lt.s32.totalorder %v70, 1
  %v837 = vsel %vm836, %v825, %v831
  %v838 = vsel %vm836, %v827, %v833
  %v839 = vsel %vm836, %v829, %v835
  %v840 = vsel %vm836, %v819, %v825
  %v841 = vsel %vm836, %v821, %v827
  %v842 = vsel %vm836, %v823, %v829
  %v843 = vsel %vm836, %v813, %v819
  %v844 = vsel %vm836, %v815, %v821
  %v845 = vsel %vm836, %v817, %v823
  %v846 = vsel %vm836, %v831, %v813
  %v847 = vsel %vm836, %v833, %v815
  %v848 = vsel %vm836, %v835, %v817
  %s849 = scalar_lea.vmem %s2, 24
  %v850 = vld [vmem:[%s849] sm:$0xff]
  %v852 = vsel %vm85, %v850, 0
  %854 = vmatprep.subr.mxu0 %v843
  %855 = vmatpush1.msra.mxu0 %v846
  %856 = vmatprep.subr.mxu0 %v844
  %857 = vmatpush1.msra.mxu0 %v847
  %858 = vmatprep.subr.mxu0 %v845
  %859 = vmatpush1.msra.mxu0 %v848
  %860 = vmatprep.subr.mxu0 0.0
  %861 = vmatpush1.msra.mxu0 0.0
  %862 = vmatprep.subr.mxu0 0.0
  %863 = vmatpush1.msra.mxu0 0.0
  %864 = vmatprep.subr.mxu0 0.0
  %865 = vmatpush1.msra.mxu0 0.0
  %866 = vmatprep.subr.mxu0 0.0
  %867 = vmatpush1.msra.mxu0 0.0
  %868 = vmatprep.subr.mxu0 0.0
  %869 = vmatpush1.msra.mxu0 0.0
  %870 = vmatprep.subr.mxu0 0.0
  %871 = vmatpush1.msra.mxu0 0.0
  %872 = vmatprep.subr.mxu0 0.0
  %873 = vmatpush1.msra.mxu0 0.0
  %874 = vmatprep.subr.mxu0 0.0
  %875 = vmatpush1.msra.mxu0 0.0
  %876 = vmatprep.subr.mxu0 0.0
  %877 = vmatpush1.msra.mxu0 0.0
  %878 = vmatprep.subr.mxu0 0.0
  %879 = vmatpush1.msra.mxu0 0.0
  %880 = vmatprep.subr.mxu0 0.0
  %881 = vmatpush1.msra.mxu0 0.0
  %882 = vmatprep.subr.mxu0 0.0
  %883 = vmatpush1.msra.mxu0 0.0
  %884 = vmatprep.subr.mxu0 0.0
  %885 = vmatpush1.msra.mxu0 0.0
  %886 = vmatprep.subr.mxu0 0.0
  %887 = vmatpush1.msra.mxu0 0.0
  %888 = vmatprep.subr.mxu0 0.0
  %889 = vmatpush1.msra.mxu0 0.0
  %890 = vmatprep.subr.mxu0 0.0
  %891 = vmatpush1.msra.mxu0 0.0
  %892 = vmatprep.subr.mxu0 0.0
  %893 = vmatpush1.msra.mxu0 0.0
  %894 = vmatprep.subr.mxu0 0.0
  %895 = vmatpush1.msra.mxu0 0.0
  %896 = vmatprep.subr.mxu0 0.0
  %897 = vmatpush1.msra.mxu0 0.0
  %898 = vmatprep.subr.mxu0 0.0
  %899 = vmatpush1.msra.mxu0 0.0
  %900 = vmatprep.subr.mxu0 0.0
  %901 = vmatpush1.msra.mxu0 0.0
  %902 = vmatprep.subr.mxu0 0.0
  %903 = vmatpush1.msra.mxu0 0.0
  %904 = vmatprep.subr.mxu0 0.0
  %905 = vmatpush1.msra.mxu0 0.0
  %906 = vmatprep.subr.mxu0 0.0
  %907 = vmatpush1.msra.mxu0 0.0
  %908 = vmatprep.subr.mxu0 0.0
  %909 = vmatpush1.msra.mxu0 0.0
  %910 = vmatprep.subr.mxu0 0.0
  %911 = vmatpush1.msra.mxu0 0.0
  %912 = vmatprep.subr.mxu0 0.0
  %913 = vmatpush1.msra.mxu0 0.0
  %914 = vmatprep.subr.mxu0 0.0
  %915 = vmatpush1.msra.mxu0 0.0
  %916 = vmatprep.subr.mxu0 0.0
  %917 = vmatpush1.msra.mxu0 0.0
  %918 = vmatprep.mubr.f32.mxu0 0.0
  %919 = vmatmul.mubr.f32.gmra.mrb[0].mxu0 %v852
  %v920 = vpop.f32.mrb[0].mxu0
  %v921 = vadd.f32 0.0, %v920
  %v922 = vpop.f32.mrb[0].mxu0
  %v923 = vadd.f32 0.0, %v922
  %924 = vdwg.mxu0
  %925 = vmatprep.subr.mxu0 %v837
  %926 = vmatpush1.msra.mxu0 %v840
  %927 = vmatprep.subr.mxu0 %v838
  %928 = vmatpush1.msra.mxu0 %v841
  %929 = vmatprep.subr.mxu0 %v839
  %930 = vmatpush1.msra.mxu0 %v842
  %931 = vmatprep.subr.mxu0 0.0
  %932 = vmatpush1.msra.mxu0 0.0
  %933 = vmatprep.subr.mxu0 0.0
  %934 = vmatpush1.msra.mxu0 0.0
  %935 = vmatprep.subr.mxu0 0.0
  %936 = vmatpush1.msra.mxu0 0.0
  %937 = vmatprep.subr.mxu0 0.0
  %938 = vmatpush1.msra.mxu0 0.0
  %939 = vmatprep.subr.mxu0 0.0
  %940 = vmatpush1.msra.mxu0 0.0
  %941 = vmatprep.subr.mxu0 0.0
  %942 = vmatpush1.msra.mxu0 0.0
  %943 = vmatprep.subr.mxu0 0.0
  %944 = vmatpush1.msra.mxu0 0.0
  %945 = vmatprep.subr.mxu0 0.0
  %946 = vmatpush1.msra.mxu0 0.0
  %947 = vmatprep.subr.mxu0 0.0
  %948 = vmatpush1.msra.mxu0 0.0
  %949 = vmatprep.subr.mxu0 0.0
  %950 = vmatpush1.msra.mxu0 0.0
  %951 = vmatprep.subr.mxu0 0.0
  %952 = vmatpush1.msra.mxu0 0.0
  %953 = vmatprep.subr.mxu0 0.0
  %954 = vmatpush1.msra.mxu0 0.0
  %955 = vmatprep.subr.mxu0 0.0
  %956 = vmatpush1.msra.mxu0 0.0
  %957 = vmatprep.subr.mxu0 0.0
  %958 = vmatpush1.msra.mxu0 0.0
  %959 = vmatprep.subr.mxu0 0.0
  %960 = vmatpush1.msra.mxu0 0.0
  %961 = vmatprep.subr.mxu0 0.0
  %962 = vmatpush1.msra.mxu0 0.0
  %963 = vmatprep.subr.mxu0 0.0
  %964 = vmatpush1.msra.mxu0 0.0
  %965 = vmatprep.subr.mxu0 0.0
  %966 = vmatpush1.msra.mxu0 0.0
  %967 = vmatprep.subr.mxu0 0.0
  %968 = vmatpush1.msra.mxu0 0.0
  %969 = vmatprep.subr.mxu0 0.0
  %970 = vmatpush1.msra.mxu0 0.0
  %971 = vmatprep.subr.mxu0 0.0
  %972 = vmatpush1.msra.mxu0 0.0
  %973 = vmatprep.subr.mxu0 0.0
  %974 = vmatpush1.msra.mxu0 0.0
  %975 = vmatprep.subr.mxu0 0.0
  %976 = vmatpush1.msra.mxu0 0.0
  %977 = vmatprep.subr.mxu0 0.0
  %978 = vmatpush1.msra.mxu0 0.0
  %979 = vmatprep.subr.mxu0 0.0
  %980 = vmatpush1.msra.mxu0 0.0
  %981 = vmatprep.subr.mxu0 0.0
  %982 = vmatpush1.msra.mxu0 0.0
  %983 = vmatprep.subr.mxu0 0.0
  %984 = vmatpush1.msra.mxu0 0.0
  %985 = vmatprep.subr.mxu0 0.0
  %986 = vmatpush1.msra.mxu0 0.0
  %987 = vmatprep.subr.mxu0 0.0
  %988 = vmatpush1.msra.mxu0 0.0
  %989 = vmatprep.mubr.f32.mxu0 0.0
  %990 = vmatmul.mubr.f32.gmra.mrb[0].mxu0 %v852
  %v991 = vpop.f32.mrb[0].mxu0
  %v992 = vadd.f32 0.0, %v991
  %v993 = vpop.f32.mrb[0].mxu0
  %v994 = vadd.f32 0.0, %v993
  %995 = vdwg.mxu0
  %v996 = vlaneseq
  %v997 = vshrl.u32 %v996, 7
  %v998 = vsub.s32 3, %v997
  %v999 = vrot.slane %v23, %v998
  %v1000 = vlaneseq
  %v1001 = vshrl.u32 %v1000, 7
  %v1002 = vsub.s32 3, %v1001
  %v1003 = vrot.slane %v24, %v1002
  %v1004 = vlaneseq
  %v1005 = vshrl.u32 %v1004, 7
  %v1006 = vsub.s32 3, %v1005
  %v1007 = vrot.slane %v25, %v1006
  %v1008 = vlaneseq
  %v1009 = vshrl.u32 %v1008, 7
  %v1010 = vsub.s32 3, %v1009
  %v1011 = vrot.slane %v26, %v1010
  %v1012 = vmul.f32 %v921, %v999
  %v1013 = vmul.f32 %v923, %v1003
  %v1014 = vmul.f32 %v992, %v1007
  %v1015 = vmul.f32 %v994, %v1011
  %v1016 = vadd.f32 %v808, %v1012
  %v1017 = vadd.f32 %v809, %v1013
  %v1018 = vadd.f32 %v810, %v1014
  %v1019 = vadd.f32 %v811, %v1015
  %1020 = vrot.lane.b32.xlu0 %v31, 127
  %v1021 = vpop.permute.xlu0 %1020
  %1022 = vrot.lane.b32.xlu0 %v35, 127
  %v1023 = vpop.permute.xlu0 %1022
  %1024 = vrot.lane.b32.xlu0 %v39, 127
  %v1025 = vpop.permute.xlu0 %1024
  %1026 = vrot.lane.b32.xlu0 %v32, 127
  %v1027 = vpop.permute.xlu0 %1026
  %1028 = vrot.lane.b32.xlu0 %v36, 127
  %v1029 = vpop.permute.xlu0 %1028
  %1030 = vrot.lane.b32.xlu0 %v40, 127
  %v1031 = vpop.permute.xlu0 %1030
  %1032 = vrot.lane.b32.xlu0 %v33, 127
  %v1033 = vpop.permute.xlu0 %1032
  %1034 = vrot.lane.b32.xlu0 %v37, 127
  %v1035 = vpop.permute.xlu0 %1034
  %1036 = vrot.lane.b32.xlu0 %v41, 127
  %v1037 = vpop.permute.xlu0 %1036
  %1038 = vrot.lane.b32.xlu0 %v34, 127
  %v1039 = vpop.permute.xlu0 %1038
  %1040 = vrot.lane.b32.xlu0 %v38, 127
  %v1041 = vpop.permute.xlu0 %1040
  %1042 = vrot.lane.b32.xlu0 %v42, 127
  %v1043 = vpop.permute.xlu0 %1042
  %vm1044 = vcmp.lt.s32.totalorder %v70, 127
  %v1045 = vsel %vm1044, %v1033, %v1039
  %v1046 = vsel %vm1044, %v1035, %v1041
  %v1047 = vsel %vm1044, %v1037, %v1043
  %v1048 = vsel %vm1044, %v1027, %v1033
  %v1049 = vsel %vm1044, %v1029, %v1035
  %v1050 = vsel %vm1044, %v1031, %v1037
  %v1051 = vsel %vm1044, %v1021, %v1027
  %v1052 = vsel %vm1044, %v1023, %v1029
  %v1053 = vsel %vm1044, %v1025, %v1031
  %v1054 = vsel %vm1044, %v1039, %v1021
  %v1055 = vsel %vm1044, %v1041, %v1023
  %v1056 = vsel %vm1044, %v1043, %v1025
  %s1057 = scalar_lea.vmem %s2, 40
  %v1058 = vld [vmem:[%s1057] sm:$0xff]
  %v1060 = vsel %vm85, %v1058, 0
  %1062 = vmatprep.subr.mxu0 %v1048
  %1063 = vmatpush1.msra.mxu0 %v1051
  %1064 = vmatprep.subr.mxu0 %v1049
  %1065 = vmatpush1.msra.mxu0 %v1052
  %1066 = vmatprep.subr.mxu0 %v1050
  %1067 = vmatpush1.msra.mxu0 %v1053
  %1068 = vmatprep.subr.mxu0 0.0
  %1069 = vmatpush1.msra.mxu0 0.0
  %1070 = vmatprep.subr.mxu0 0.0
  %1071 = vmatpush1.msra.mxu0 0.0
  %1072 = vmatprep.subr.mxu0 0.0
  %1073 = vmatpush1.msra.mxu0 0.0
  %1074 = vmatprep.subr.mxu0 0.0
  %1075 = vmatpush1.msra.mxu0 0.0
  %1076 = vmatprep.subr.mxu0 0.0
  %1077 = vmatpush1.msra.mxu0 0.0
  %1078 = vmatprep.subr.mxu0 0.0
  %1079 = vmatpush1.msra.mxu0 0.0
  %1080 = vmatprep.subr.mxu0 0.0
  %1081 = vmatpush1.msra.mxu0 0.0
  %1082 = vmatprep.subr.mxu0 0.0
  %1083 = vmatpush1.msra.mxu0 0.0
  %1084 = vmatprep.subr.mxu0 0.0
  %1085 = vmatpush1.msra.mxu0 0.0
  %1086 = vmatprep.subr.mxu0 0.0
  %1087 = vmatpush1.msra.mxu0 0.0
  %1088 = vmatprep.subr.mxu0 0.0
  %1089 = vmatpush1.msra.mxu0 0.0
  %1090 = vmatprep.subr.mxu0 0.0
  %1091 = vmatpush1.msra.mxu0 0.0
  %1092 = vmatprep.subr.mxu0 0.0
  %1093 = vmatpush1.msra.mxu0 0.0
  %1094 = vmatprep.subr.mxu0 0.0
  %1095 = vmatpush1.msra.mxu0 0.0
  %1096 = vmatprep.subr.mxu0 0.0
  %1097 = vmatpush1.msra.mxu0 0.0
  %1098 = vmatprep.subr.mxu0 0.0
  %1099 = vmatpush1.msra.mxu0 0.0
  %1100 = vmatprep.subr.mxu0 0.0
  %1101 = vmatpush1.msra.mxu0 0.0
  %1102 = vmatprep.subr.mxu0 0.0
  %1103 = vmatpush1.msra.mxu0 0.0
  %1104 = vmatprep.subr.mxu0 0.0
  %1105 = vmatpush1.msra.mxu0 0.0
  %1106 = vmatprep.subr.mxu0 0.0
  %1107 = vmatpush1.msra.mxu0 0.0
  %1108 = vmatprep.subr.mxu0 0.0
  %1109 = vmatpush1.msra.mxu0 0.0
  %1110 = vmatprep.subr.mxu0 0.0
  %1111 = vmatpush1.msra.mxu0 0.0
  %1112 = vmatprep.subr.mxu0 0.0
  %1113 = vmatpush1.msra.mxu0 0.0
  %1114 = vmatprep.subr.mxu0 0.0
  %1115 = vmatpush1.msra.mxu0 0.0
  %1116 = vmatprep.subr.mxu0 0.0
  %1117 = vmatpush1.msra.mxu0 0.0
  %1118 = vmatprep.subr.mxu0 0.0
  %1119 = vmatpush1.msra.mxu0 0.0
  %1120 = vmatprep.subr.mxu0 0.0
  %1121 = vmatpush1.msra.mxu0 0.0
  %1122 = vmatprep.subr.mxu0 0.0
  %1123 = vmatpush1.msra.mxu0 0.0
  %1124 = vmatprep.subr.mxu0 0.0
  %1125 = vmatpush1.msra.mxu0 0.0
  %1126 = vmatprep.mubr.f32.mxu0 0.0
  %1127 = vmatmul.mubr.f32.gmra.mrb[0].mxu0 %v1060
  %v1128 = vpop.f32.mrb[0].mxu0
  %v1129 = vadd.f32 0.0, %v1128
  %v1130 = vpop.f32.mrb[0].mxu0
  %v1131 = vadd.f32 0.0, %v1130
  %1132 = vdwg.mxu0
  %1133 = vmatprep.subr.mxu0 %v1054
  %1134 = vmatpush1.msra.mxu0 %v1045
  %1135 = vmatprep.subr.mxu0 %v1055
  %1136 = vmatpush1.msra.mxu0 %v1046
  %1137 = vmatprep.subr.mxu0 %v1056
  %1138 = vmatpush1.msra.mxu0 %v1047
  %1139 = vmatprep.subr.mxu0 0.0
  %1140 = vmatpush1.msra.mxu0 0.0
  %1141 = vmatprep.subr.mxu0 0.0
  %1142 = vmatpush1.msra.mxu0 0.0
  %1143 = vmatprep.subr.mxu0 0.0
  %1144 = vmatpush1.msra.mxu0 0.0
  %1145 = vmatprep.subr.mxu0 0.0
  %1146 = vmatpush1.msra.mxu0 0.0
  %1147 = vmatprep.subr.mxu0 0.0
  %1148 = vmatpush1.msra.mxu0 0.0
  %1149 = vmatprep.subr.mxu0 0.0
  %1150 = vmatpush1.msra.mxu0 0.0
  %1151 = vmatprep.subr.mxu0 0.0
  %1152 = vmatpush1.msra.mxu0 0.0
  %1153 = vmatprep.subr.mxu0 0.0
  %1154 = vmatpush1.msra.mxu0 0.0
  %1155 = vmatprep.subr.mxu0 0.0
  %1156 = vmatpush1.msra.mxu0 0.0
  %1157 = vmatprep.subr.mxu0 0.0
  %1158 = vmatpush1.msra.mxu0 0.0
  %1159 = vmatprep.subr.mxu0 0.0
  %1160 = vmatpush1.msra.mxu0 0.0
  %1161 = vmatprep.subr.mxu0 0.0
  %1162 = vmatpush1.msra.mxu0 0.0
  %1163 = vmatprep.subr.mxu0 0.0
  %1164 = vmatpush1.msra.mxu0 0.0
  %1165 = vmatprep.subr.mxu0 0.0
  %1166 = vmatpush1.msra.mxu0 0.0
  %1167 = vmatprep.subr.mxu0 0.0
  %1168 = vmatpush1.msra.mxu0 0.0
  %1169 = vmatprep.subr.mxu0 0.0
  %1170 = vmatpush1.msra.mxu0 0.0
  %1171 = vmatprep.subr.mxu0 0.0
  %1172 = vmatpush1.msra.mxu0 0.0
  %1173 = vmatprep.subr.mxu0 0.0
  %1174 = vmatpush1.msra.mxu0 0.0
  %1175 = vmatprep.subr.mxu0 0.0
  %1176 = vmatpush1.msra.mxu0 0.0
  %1177 = vmatprep.subr.mxu0 0.0
  %1178 = vmatpush1.msra.mxu0 0.0
  %1179 = vmatprep.subr.mxu0 0.0
  %1180 = vmatpush1.msra.mxu0 0.0
  %1181 = vmatprep.subr.mxu0 0.0
  %1182 = vmatpush1.msra.mxu0 0.0
  %1183 = vmatprep.subr.mxu0 0.0
  %1184 = vmatpush1.msra.mxu0 0.0
  %1185 = vmatprep.subr.mxu0 0.0
  %1186 = vmatpush1.msra.mxu0 0.0
  %1187 = vmatprep.subr.mxu0 0.0
  %1188 = vmatpush1.msra.mxu0 0.0
  %1189 = vmatprep.subr.mxu0 0.0
  %1190 = vmatpush1.msra.mxu0 0.0
  %1191 = vmatprep.subr.mxu0 0.0
  %1192 = vmatpush1.msra.mxu0 0.0
  %1193 = vmatprep.subr.mxu0 0.0
  %1194 = vmatpush1.msra.mxu0 0.0
  %1195 = vmatprep.subr.mxu0 0.0
  %1196 = vmatpush1.msra.mxu0 0.0
  %1197 = vmatprep.mubr.f32.mxu0 0.0
  %1198 = vmatmul.mubr.f32.gmra.mrb[0].mxu0 %v1060
  %v1199 = vpop.f32.mrb[0].mxu0
  %v1200 = vadd.f32 0.0, %v1199
  %v1201 = vpop.f32.mrb[0].mxu0
  %v1202 = vadd.f32 0.0, %v1201
  %1203 = vdwg.mxu0
  %v1204 = vlaneseq
  %v1205 = vshrl.u32 %v1204, 7
  %v1206 = vsub.s32 5, %v1205
  %v1207 = vrot.slane %v23, %v1206
  %v1208 = vlaneseq
  %v1209 = vshrl.u32 %v1208, 7
  %v1210 = vsub.s32 5, %v1209
  %v1211 = vrot.slane %v24, %v1210
  %v1212 = vlaneseq
  %v1213 = vshrl.u32 %v1212, 7
  %v1214 = vsub.s32 5, %v1213
  %v1215 = vrot.slane %v25, %v1214
  %v1216 = vlaneseq
  %v1217 = vshrl.u32 %v1216, 7
  %v1218 = vsub.s32 5, %v1217
  %v1219 = vrot.slane %v26, %v1218
  %v1220 = vmul.f32 %v1129, %v1207
  %v1221 = vmul.f32 %v1131, %v1211
  %v1222 = vmul.f32 %v1200, %v1215
  %v1223 = vmul.f32 %v1202, %v1219
  %v1224 = vadd.f32 %v1016, %v1220
  %v1225 = vadd.f32 %v1017, %v1221
  %v1226 = vadd.f32 %v1018, %v1222
  %v1227 = vadd.f32 %v1019, %v1223
  %1228 = vrot.lane.b32.xlu0 %v31, 113
  %v1229 = vpop.permute.xlu0 %1228
  %1230 = vrot.lane.b32.xlu0 %v35, 113
  %v1231 = vpop.permute.xlu0 %1230
  %1232 = vrot.lane.b32.xlu0 %v39, 113
  %v1233 = vpop.permute.xlu0 %1232
  %1234 = vrot.lane.b32.xlu0 %v32, 113
  %v1235 = vpop.permute.xlu0 %1234
  %1236 = vrot.lane.b32.xlu0 %v36, 113
  %v1237 = vpop.permute.xlu0 %1236
  %1238 = vrot.lane.b32.xlu0 %v40, 113
  %v1239 = vpop.permute.xlu0 %1238
  %1240 = vrot.lane.b32.xlu0 %v33, 113
  %v1241 = vpop.permute.xlu0 %1240
  %1242 = vrot.lane.b32.xlu0 %v37, 113
  %v1243 = vpop.permute.xlu0 %1242
  %1244 = vrot.lane.b32.xlu0 %v41, 113
  %v1245 = vpop.permute.xlu0 %1244
  %1246 = vrot.lane.b32.xlu0 %v34, 113
  %v1247 = vpop.permute.xlu0 %1246
  %1248 = vrot.lane.b32.xlu0 %v38, 113
  %v1249 = vpop.permute.xlu0 %1248
  %1250 = vrot.lane.b32.xlu0 %v42, 113
  %v1251 = vpop.permute.xlu0 %1250
  %vm1252 = vcmp.lt.s32.totalorder %v70, 113
  %v1253 = vsel %vm1252, %v1241, %v1247
  %v1254 = vsel %vm1252, %v1243, %v1249
  %v1255 = vsel %vm1252, %v1245, %v1251
  %v1256 = vsel %vm1252, %v1235, %v1241
  %v1257 = vsel %vm1252, %v1237, %v1243
  %v1258 = vsel %vm1252, %v1239, %v1245
  %v1259 = vsel %vm1252, %v1229, %v1235
  %v1260 = vsel %vm1252, %v1231, %v1237
  %v1261 = vsel %vm1252, %v1233, %v1239
  %v1262 = vsel %vm1252, %v1247, %v1229
  %v1263 = vsel %vm1252, %v1249, %v1231
  %v1264 = vsel %vm1252, %v1251, %v1233
  %s1265 = scalar_lea.vmem %s2, 48
  %v1266 = vld [vmem:[%s1265] sm:$0xff]
  %v1268 = vsel %vm85, %v1266, 0
  %1270 = vmatprep.subr.mxu0 %v1256
  %1271 = vmatpush1.msra.mxu0 %v1259
  %1272 = vmatprep.subr.mxu0 %v1257
  %1273 = vmatpush1.msra.mxu0 %v1260
  %1274 = vmatprep.subr.mxu0 %v1258
  %1275 = vmatpush1.msra.mxu0 %v1261
  %1276 = vmatprep.subr.mxu0 0.0
  %1277 = vmatpush1.msra.mxu0 0.0
  %1278 = vmatprep.subr.mxu0 0.0
  %1279 = vmatpush1.msra.mxu0 0.0
  %1280 = vmatprep.subr.mxu0 0.0
  %1281 = vmatpush1.msra.mxu0 0.0
  %1282 = vmatprep.subr.mxu0 0.0
  %1283 = vmatpush1.msra.mxu0 0.0
  %1284 = vmatprep.subr.mxu0 0.0
  %1285 = vmatpush1.msra.mxu0 0.0
  %1286 = vmatprep.subr.mxu0 0.0
  %1287 = vmatpush1.msra.mxu0 0.0
  %1288 = vmatprep.subr.mxu0 0.0
  %1289 = vmatpush1.msra.mxu0 0.0
  %1290 = vmatprep.subr.mxu0 0.0
  %1291 = vmatpush1.msra.mxu0 0.0
  %1292 = vmatprep.subr.mxu0 0.0
  %1293 = vmatpush1.msra.mxu0 0.0
  %1294 = vmatprep.subr.mxu0 0.0
  %1295 = vmatpush1.msra.mxu0 0.0
  %1296 = vmatprep.subr.mxu0 0.0
  %1297 = vmatpush1.msra.mxu0 0.0
  %1298 = vmatprep.subr.mxu0 0.0
  %1299 = vmatpush1.msra.mxu0 0.0
  %1300 = vmatprep.subr.mxu0 0.0
  %1301 = vmatpush1.msra.mxu0 0.0
  %1302 = vmatprep.subr.mxu0 0.0
  %1303 = vmatpush1.msra.mxu0 0.0
  %1304 = vmatprep.subr.mxu0 0.0
  %1305 = vmatpush1.msra.mxu0 0.0
  %1306 = vmatprep.subr.mxu0 0.0
  %1307 = vmatpush1.msra.mxu0 0.0
  %1308 = vmatprep.subr.mxu0 0.0
  %1309 = vmatpush1.msra.mxu0 0.0
  %1310 = vmatprep.subr.mxu0 0.0
  %1311 = vmatpush1.msra.mxu0 0.0
  %1312 = vmatprep.subr.mxu0 0.0
  %1313 = vmatpush1.msra.mxu0 0.0
  %1314 = vmatprep.subr.mxu0 0.0
  %1315 = vmatpush1.msra.mxu0 0.0
  %1316 = vmatprep.subr.mxu0 0.0
  %1317 = vmatpush1.msra.mxu0 0.0
  %1318 = vmatprep.subr.mxu0 0.0
  %1319 = vmatpush1.msra.mxu0 0.0
  %1320 = vmatprep.subr.mxu0 0.0
  %1321 = vmatpush1.msra.mxu0 0.0
  %1322 = vmatprep.subr.mxu0 0.0
  %1323 = vmatpush1.msra.mxu0 0.0
  %1324 = vmatprep.subr.mxu0 0.0
  %1325 = vmatpush1.msra.mxu0 0.0
  %1326 = vmatprep.subr.mxu0 0.0
  %1327 = vmatpush1.msra.mxu0 0.0
  %1328 = vmatprep.subr.mxu0 0.0
  %1329 = vmatpush1.msra.mxu0 0.0
  %1330 = vmatprep.subr.mxu0 0.0
  %1331 = vmatpush1.msra.mxu0 0.0
  %1332 = vmatprep.subr.mxu0 0.0
  %1333 = vmatpush1.msra.mxu0 0.0
  %1334 = vmatprep.mubr.f32.mxu0 0.0
  %1335 = vmatmul.mubr.f32.gmra.mrb[0].mxu0 %v1268
  %v1336 = vpop.f32.mrb[0].mxu0
  %v1337 = vadd.f32 0.0, %v1336
  %v1338 = vpop.f32.mrb[0].mxu0
  %v1339 = vadd.f32 0.0, %v1338
  %1340 = vdwg.mxu0
  %1341 = vmatprep.subr.mxu0 %v1262
  %1342 = vmatpush1.msra.mxu0 %v1253
  %1343 = vmatprep.subr.mxu0 %v1263
  %1344 = vmatpush1.msra.mxu0 %v1254
  %1345 = vmatprep.subr.mxu0 %v1264
  %1346 = vmatpush1.msra.mxu0 %v1255
  %1347 = vmatprep.subr.mxu0 0.0
  %1348 = vmatpush1.msra.mxu0 0.0
  %1349 = vmatprep.subr.mxu0 0.0
  %1350 = vmatpush1.msra.mxu0 0.0
  %1351 = vmatprep.subr.mxu0 0.0
  %1352 = vmatpush1.msra.mxu0 0.0
  %1353 = vmatprep.subr.mxu0 0.0
  %1354 = vmatpush1.msra.mxu0 0.0
  %1355 = vmatprep.subr.mxu0 0.0
  %1356 = vmatpush1.msra.mxu0 0.0
  %1357 = vmatprep.subr.mxu0 0.0
  %1358 = vmatpush1.msra.mxu0 0.0
  %1359 = vmatprep.subr.mxu0 0.0
  %1360 = vmatpush1.msra.mxu0 0.0
  %1361 = vmatprep.subr.mxu0 0.0
  %1362 = vmatpush1.msra.mxu0 0.0
  %1363 = vmatprep.subr.mxu0 0.0
  %1364 = vmatpush1.msra.mxu0 0.0
  %1365 = vmatprep.subr.mxu0 0.0
  %1366 = vmatpush1.msra.mxu0 0.0
  %1367 = vmatprep.subr.mxu0 0.0
  %1368 = vmatpush1.msra.mxu0 0.0
  %1369 = vmatprep.subr.mxu0 0.0
  %1370 = vmatpush1.msra.mxu0 0.0
  %1371 = vmatprep.subr.mxu0 0.0
  %1372 = vmatpush1.msra.mxu0 0.0
  %1373 = vmatprep.subr.mxu0 0.0
  %1374 = vmatpush1.msra.mxu0 0.0
  %1375 = vmatprep.subr.mxu0 0.0
  %1376 = vmatpush1.msra.mxu0 0.0
  %1377 = vmatprep.subr.mxu0 0.0
  %1378 = vmatpush1.msra.mxu0 0.0
  %1379 = vmatprep.subr.mxu0 0.0
  %1380 = vmatpush1.msra.mxu0 0.0
  %1381 = vmatprep.subr.mxu0 0.0
  %1382 = vmatpush1.msra.mxu0 0.0
  %1383 = vmatprep.subr.mxu0 0.0
  %1384 = vmatpush1.msra.mxu0 0.0
  %1385 = vmatprep.subr.mxu0 0.0
  %1386 = vmatpush1.msra.mxu0 0.0
  %1387 = vmatprep.subr.mxu0 0.0
  %1388 = vmatpush1.msra.mxu0 0.0
  %1389 = vmatprep.subr.mxu0 0.0
  %1390 = vmatpush1.msra.mxu0 0.0
  %1391 = vmatprep.subr.mxu0 0.0
  %1392 = vmatpush1.msra.mxu0 0.0
  %1393 = vmatprep.subr.mxu0 0.0
  %1394 = vmatpush1.msra.mxu0 0.0
  %1395 = vmatprep.subr.mxu0 0.0
  %1396 = vmatpush1.msra.mxu0 0.0
  %1397 = vmatprep.subr.mxu0 0.0
  %1398 = vmatpush1.msra.mxu0 0.0
  %1399 = vmatprep.subr.mxu0 0.0
  %1400 = vmatpush1.msra.mxu0 0.0
  %1401 = vmatprep.subr.mxu0 0.0
  %1402 = vmatpush1.msra.mxu0 0.0
  %1403 = vmatprep.subr.mxu0 0.0
  %1404 = vmatpush1.msra.mxu0 0.0
  %1405 = vmatprep.mubr.f32.mxu0 0.0
  %1406 = vmatmul.mubr.f32.gmra.mrb[0].mxu0 %v1268
  %v1407 = vpop.f32.mrb[0].mxu0
  %v1408 = vadd.f32 0.0, %v1407
  %v1409 = vpop.f32.mrb[0].mxu0
  %v1410 = vadd.f32 0.0, %v1409
  %1411 = vdwg.mxu0
  %v1412 = vlaneseq
  %v1413 = vshrl.u32 %v1412, 7
  %v1414 = vsub.s32 6, %v1413
  %v1415 = vrot.slane %v23, %v1414
  %v1416 = vlaneseq
  %v1417 = vshrl.u32 %v1416, 7
  %v1418 = vsub.s32 6, %v1417
  %v1419 = vrot.slane %v24, %v1418
  %v1420 = vlaneseq
  %v1421 = vshrl.u32 %v1420, 7
  %v1422 = vsub.s32 6, %v1421
  %v1423 = vrot.slane %v25, %v1422
  %v1424 = vlaneseq
  %v1425 = vshrl.u32 %v1424, 7
  %v1426 = vsub.s32 6, %v1425
  %v1427 = vrot.slane %v26, %v1426
  %v1428 = vmul.f32 %v1337, %v1415
  %v1429 = vmul.f32 %v1339, %v1419
  %v1430 = vmul.f32 %v1408, %v1423
  %v1431 = vmul.f32 %v1410, %v1427
  %v1432 = vadd.f32 %v1224, %v1428
  %v1433 = vadd.f32 %v1225, %v1429
  %v1434 = vadd.f32 %v1226, %v1430
  %v1435 = vadd.f32 %v1227, %v1431
  %1436 = vrot.lane.b32.xlu0 %v31, 112
  %v1437 = vpop.permute.xlu0 %1436
  %1438 = vrot.lane.b32.xlu0 %v35, 112
  %v1439 = vpop.permute.xlu0 %1438
  %1440 = vrot.lane.b32.xlu0 %v39, 112
  %v1441 = vpop.permute.xlu0 %1440
  %1442 = vrot.lane.b32.xlu0 %v32, 112
  %v1443 = vpop.permute.xlu0 %1442
  %1444 = vrot.lane.b32.xlu0 %v36, 112
  %v1445 = vpop.permute.xlu0 %1444
  %1446 = vrot.lane.b32.xlu0 %v40, 112
  %v1447 = vpop.permute.xlu0 %1446
  %1448 = vrot.lane.b32.xlu0 %v33, 112
  %v1449 = vpop.permute.xlu0 %1448
  %1450 = vrot.lane.b32.xlu0 %v37, 112
  %v1451 = vpop.permute.xlu0 %1450
  %1452 = vrot.lane.b32.xlu0 %v41, 112
  %v1453 = vpop.permute.xlu0 %1452
  %1454 = vrot.lane.b32.xlu0 %v34, 112
  %v1455 = vpop.permute.xlu0 %1454
  %1456 = vrot.lane.b32.xlu0 %v38, 112
  %v1457 = vpop.permute.xlu0 %1456
  %1458 = vrot.lane.b32.xlu0 %v42, 112
  %v1459 = vpop.permute.xlu0 %1458
  %vm1460 = vcmp.lt.s32.totalorder %v70, 112
  %v1461 = vsel %vm1460, %v1449, %v1455
  %v1462 = vsel %vm1460, %v1451, %v1457
  %v1463 = vsel %vm1460, %v1453, %v1459
  %v1464 = vsel %vm1460, %v1443, %v1449
  %v1465 = vsel %vm1460, %v1445, %v1451
  %v1466 = vsel %vm1460, %v1447, %v1453
  %v1467 = vsel %vm1460, %v1437, %v1443
  %v1468 = vsel %vm1460, %v1439, %v1445
  %v1469 = vsel %vm1460, %v1441, %v1447
  %v1470 = vsel %vm1460, %v1455, %v1437
  %v1471 = vsel %vm1460, %v1457, %v1439
  %v1472 = vsel %vm1460, %v1459, %v1441
  %s1473 = scalar_lea.vmem %s2, 56
  %v1474 = vld [vmem:[%s1473] sm:$0xff]
  %v1476 = vsel %vm85, %v1474, 0
  %1478 = vmatprep.subr.mxu0 %v1464
  %1479 = vmatpush1.msra.mxu0 %v1467
  %1480 = vmatprep.subr.mxu0 %v1465
  %1481 = vmatpush1.msra.mxu0 %v1468
  %1482 = vmatprep.subr.mxu0 %v1466
  %1483 = vmatpush1.msra.mxu0 %v1469
  %1484 = vmatprep.subr.mxu0 0.0
  %1485 = vmatpush1.msra.mxu0 0.0
  %1486 = vmatprep.subr.mxu0 0.0
  %1487 = vmatpush1.msra.mxu0 0.0
  %1488 = vmatprep.subr.mxu0 0.0
  %1489 = vmatpush1.msra.mxu0 0.0
  %1490 = vmatprep.subr.mxu0 0.0
  %1491 = vmatpush1.msra.mxu0 0.0
  %1492 = vmatprep.subr.mxu0 0.0
  %1493 = vmatpush1.msra.mxu0 0.0
  %1494 = vmatprep.subr.mxu0 0.0
  %1495 = vmatpush1.msra.mxu0 0.0
  %1496 = vmatprep.subr.mxu0 0.0
  %1497 = vmatpush1.msra.mxu0 0.0
  %1498 = vmatprep.subr.mxu0 0.0
  %1499 = vmatpush1.msra.mxu0 0.0
  %1500 = vmatprep.subr.mxu0 0.0
  %1501 = vmatpush1.msra.mxu0 0.0
  %1502 = vmatprep.subr.mxu0 0.0
  %1503 = vmatpush1.msra.mxu0 0.0
  %1504 = vmatprep.subr.mxu0 0.0
  %1505 = vmatpush1.msra.mxu0 0.0
  %1506 = vmatprep.subr.mxu0 0.0
  %1507 = vmatpush1.msra.mxu0 0.0
  %1508 = vmatprep.subr.mxu0 0.0
  %1509 = vmatpush1.msra.mxu0 0.0
  %1510 = vmatprep.subr.mxu0 0.0
  %1511 = vmatpush1.msra.mxu0 0.0
  %1512 = vmatprep.subr.mxu0 0.0
  %1513 = vmatpush1.msra.mxu0 0.0
  %1514 = vmatprep.subr.mxu0 0.0
  %1515 = vmatpush1.msra.mxu0 0.0
  %1516 = vmatprep.subr.mxu0 0.0
  %1517 = vmatpush1.msra.mxu0 0.0
  %1518 = vmatprep.subr.mxu0 0.0
  %1519 = vmatpush1.msra.mxu0 0.0
  %1520 = vmatprep.subr.mxu0 0.0
  %1521 = vmatpush1.msra.mxu0 0.0
  %1522 = vmatprep.subr.mxu0 0.0
  %1523 = vmatpush1.msra.mxu0 0.0
  %1524 = vmatprep.subr.mxu0 0.0
  %1525 = vmatpush1.msra.mxu0 0.0
  %1526 = vmatprep.subr.mxu0 0.0
  %1527 = vmatpush1.msra.mxu0 0.0
  %1528 = vmatprep.subr.mxu0 0.0
  %1529 = vmatpush1.msra.mxu0 0.0
  %1530 = vmatprep.subr.mxu0 0.0
  %1531 = vmatpush1.msra.mxu0 0.0
  %1532 = vmatprep.subr.mxu0 0.0
  %1533 = vmatpush1.msra.mxu0 0.0
  %1534 = vmatprep.subr.mxu0 0.0
  %1535 = vmatpush1.msra.mxu0 0.0
  %1536 = vmatprep.subr.mxu0 0.0
  %1537 = vmatpush1.msra.mxu0 0.0
  %1538 = vmatprep.subr.mxu0 0.0
  %1539 = vmatpush1.msra.mxu0 0.0
  %1540 = vmatprep.subr.mxu0 0.0
  %1541 = vmatpush1.msra.mxu0 0.0
  %1542 = vmatprep.mubr.f32.mxu0 0.0
  %1543 = vmatmul.mubr.f32.gmra.mrb[0].mxu0 %v1476
  %v1544 = vpop.f32.mrb[0].mxu0
  %v1545 = vadd.f32 0.0, %v1544
  %v1546 = vpop.f32.mrb[0].mxu0
  %v1547 = vadd.f32 0.0, %v1546
  %1548 = vdwg.mxu0
  %1549 = vmatprep.subr.mxu0 %v1470
  %1550 = vmatpush1.msra.mxu0 %v1461
  %1551 = vmatprep.subr.mxu0 %v1471
  %1552 = vmatpush1.msra.mxu0 %v1462
  %1553 = vmatprep.subr.mxu0 %v1472
  %1554 = vmatpush1.msra.mxu0 %v1463
  %1555 = vmatprep.subr.mxu0 0.0
  %1556 = vmatpush1.msra.mxu0 0.0
  %1557 = vmatprep.subr.mxu0 0.0
  %1558 = vmatpush1.msra.mxu0 0.0
  %1559 = vmatprep.subr.mxu0 0.0
  %1560 = vmatpush1.msra.mxu0 0.0
  %1561 = vmatprep.subr.mxu0 0.0
  %1562 = vmatpush1.msra.mxu0 0.0
  %1563 = vmatprep.subr.mxu0 0.0
  %1564 = vmatpush1.msra.mxu0 0.0
  %1565 = vmatprep.subr.mxu0 0.0
  %1566 = vmatpush1.msra.mxu0 0.0
  %1567 = vmatprep.subr.mxu0 0.0
  %1568 = vmatpush1.msra.mxu0 0.0
  %1569 = vmatprep.subr.mxu0 0.0
  %1570 = vmatpush1.msra.mxu0 0.0
  %1571 = vmatprep.subr.mxu0 0.0
  %1572 = vmatpush1.msra.mxu0 0.0
  %1573 = vmatprep.subr.mxu0 0.0
  %1574 = vmatpush1.msra.mxu0 0.0
  %1575 = vmatprep.subr.mxu0 0.0
  %1576 = vmatpush1.msra.mxu0 0.0
  %1577 = vmatprep.subr.mxu0 0.0
  %1578 = vmatpush1.msra.mxu0 0.0
  %1579 = vmatprep.subr.mxu0 0.0
  %1580 = vmatpush1.msra.mxu0 0.0
  %1581 = vmatprep.subr.mxu0 0.0
  %1582 = vmatpush1.msra.mxu0 0.0
  %1583 = vmatprep.subr.mxu0 0.0
  %1584 = vmatpush1.msra.mxu0 0.0
  %1585 = vmatprep.subr.mxu0 0.0
  %1586 = vmatpush1.msra.mxu0 0.0
  %1587 = vmatprep.subr.mxu0 0.0
  %1588 = vmatpush1.msra.mxu0 0.0
  %1589 = vmatprep.subr.mxu0 0.0
  %1590 = vmatpush1.msra.mxu0 0.0
  %1591 = vmatprep.subr.mxu0 0.0
  %1592 = vmatpush1.msra.mxu0 0.0
  %1593 = vmatprep.subr.mxu0 0.0
  %1594 = vmatpush1.msra.mxu0 0.0
  %1595 = vmatprep.subr.mxu0 0.0
  %1596 = vmatpush1.msra.mxu0 0.0
  %1597 = vmatprep.subr.mxu0 0.0
  %1598 = vmatpush1.msra.mxu0 0.0
  %1599 = vmatprep.subr.mxu0 0.0
  %1600 = vmatpush1.msra.mxu0 0.0
  %1601 = vmatprep.subr.mxu0 0.0
  %1602 = vmatpush1.msra.mxu0 0.0
  %1603 = vmatprep.subr.mxu0 0.0
  %1604 = vmatpush1.msra.mxu0 0.0
  %1605 = vmatprep.subr.mxu0 0.0
  %1606 = vmatpush1.msra.mxu0 0.0
  %1607 = vmatprep.subr.mxu0 0.0
  %1608 = vmatpush1.msra.mxu0 0.0
  %1609 = vmatprep.subr.mxu0 0.0
  %1610 = vmatpush1.msra.mxu0 0.0
  %1611 = vmatprep.subr.mxu0 0.0
  %1612 = vmatpush1.msra.mxu0 0.0
  %1613 = vmatprep.mubr.f32.mxu0 0.0
  %1614 = vmatmul.mubr.f32.gmra.mrb[0].mxu0 %v1476
  %v1615 = vpop.f32.mrb[0].mxu0
  %v1616 = vadd.f32 0.0, %v1615
  %v1617 = vpop.f32.mrb[0].mxu0
  %v1618 = vadd.f32 0.0, %v1617
  %1619 = vdwg.mxu0
  %v1620 = vlaneseq
  %v1621 = vshrl.u32 %v1620, 7
  %v1622 = vsub.s32 7, %v1621
  %v1623 = vrot.slane %v23, %v1622
  %v1624 = vlaneseq
  %v1625 = vshrl.u32 %v1624, 7
  %v1626 = vsub.s32 7, %v1625
  %v1627 = vrot.slane %v24, %v1626
  %v1628 = vlaneseq
  %v1629 = vshrl.u32 %v1628, 7
  %v1630 = vsub.s32 7, %v1629
  %v1631 = vrot.slane %v25, %v1630
  %v1632 = vlaneseq
  %v1633 = vshrl.u32 %v1632, 7
  %v1634 = vsub.s32 7, %v1633
  %v1635 = vrot.slane %v26, %v1634
  %v1636 = vmul.f32 %v1545, %v1623
  %v1637 = vmul.f32 %v1547, %v1627
  %v1638 = vmul.f32 %v1616, %v1631
  %v1639 = vmul.f32 %v1618, %v1635
  %v1640 = vadd.f32 %v1432, %v1636
  %v1641 = vadd.f32 %v1433, %v1637
  %v1642 = vadd.f32 %v1434, %v1638
  %v1643 = vadd.f32 %v1435, %v1639
  %1644 = vrot.lane.b32.xlu0 %v31, 111
  %v1645 = vpop.permute.xlu0 %1644
  %1646 = vrot.lane.b32.xlu0 %v35, 111
  %v1647 = vpop.permute.xlu0 %1646
  %1648 = vrot.lane.b32.xlu0 %v39, 111
  %v1649 = vpop.permute.xlu0 %1648
  %1650 = vrot.lane.b32.xlu0 %v32, 111
  %v1651 = vpop.permute.xlu0 %1650
  %1652 = vrot.lane.b32.xlu0 %v36, 111
  %v1653 = vpop.permute.xlu0 %1652
  %1654 = vrot.lane.b32.xlu0 %v40, 111
  %v1655 = vpop.permute.xlu0 %1654
  %1656 = vrot.lane.b32.xlu0 %v33, 111
  %v1657 = vpop.permute.xlu0 %1656
  %1658 = vrot.lane.b32.xlu0 %v37, 111
  %v1659 = vpop.permute.xlu0 %1658
  %1660 = vrot.lane.b32.xlu0 %v41, 111
  %v1661 = vpop.permute.xlu0 %1660
  %1662 = vrot.lane.b32.xlu0 %v34, 111
  %v1663 = vpop.permute.xlu0 %1662
  %1664 = vrot.lane.b32.xlu0 %v38, 111
  %v1665 = vpop.permute.xlu0 %1664
  %1666 = vrot.lane.b32.xlu0 %v42, 111
  %v1667 = vpop.permute.xlu0 %1666
  %vm1668 = vcmp.lt.s32.totalorder %v70, 111
  %v1669 = vsel %vm1668, %v1657, %v1663
  %v1670 = vsel %vm1668, %v1659, %v1665
  %v1671 = vsel %vm1668, %v1661, %v1667
  %v1672 = vsel %vm1668, %v1651, %v1657
  %v1673 = vsel %vm1668, %v1653, %v1659
  %v1674 = vsel %vm1668, %v1655, %v1661
  %v1675 = vsel %vm1668, %v1645, %v1651
  %v1676 = vsel %vm1668, %v1647, %v1653
  %v1677 = vsel %vm1668, %v1649, %v1655
  %v1678 = vsel %vm1668, %v1663, %v1645
  %v1679 = vsel %vm1668, %v1665, %v1647
  %v1680 = vsel %vm1668, %v1667, %v1649
  %s1681 = scalar_lea.vmem %s2, 64
  %v1682 = vld [vmem:[%s1681] sm:$0xff]
  %v1684 = vsel %vm85, %v1682, 0
  %1686 = vmatprep.subr.mxu0 %v1672
  %1687 = vmatpush1.msra.mxu0 %v1675
  %1688 = vmatprep.subr.mxu0 %v1673
  %1689 = vmatpush1.msra.mxu0 %v1676
  %1690 = vmatprep.subr.mxu0 %v1674
  %1691 = vmatpush1.msra.mxu0 %v1677
  %1692 = vmatprep.subr.mxu0 0.0
  %1693 = vmatpush1.msra.mxu0 0.0
  %1694 = vmatprep.subr.mxu0 0.0
  %1695 = vmatpush1.msra.mxu0 0.0
  %1696 = vmatprep.subr.mxu0 0.0
  %1697 = vmatpush1.msra.mxu0 0.0
  %1698 = vmatprep.subr.mxu0 0.0
  %1699 = vmatpush1.msra.mxu0 0.0
  %1700 = vmatprep.subr.mxu0 0.0
  %1701 = vmatpush1.msra.mxu0 0.0
  %1702 = vmatprep.subr.mxu0 0.0
  %1703 = vmatpush1.msra.mxu0 0.0
  %1704 = vmatprep.subr.mxu0 0.0
  %1705 = vmatpush1.msra.mxu0 0.0
  %1706 = vmatprep.subr.mxu0 0.0
  %1707 = vmatpush1.msra.mxu0 0.0
  %1708 = vmatprep.subr.mxu0 0.0
  %1709 = vmatpush1.msra.mxu0 0.0
  %1710 = vmatprep.subr.mxu0 0.0
  %1711 = vmatpush1.msra.mxu0 0.0
  %1712 = vmatprep.subr.mxu0 0.0
  %1713 = vmatpush1.msra.mxu0 0.0
  %1714 = vmatprep.subr.mxu0 0.0
  %1715 = vmatpush1.msra.mxu0 0.0
  %1716 = vmatprep.subr.mxu0 0.0
  %1717 = vmatpush1.msra.mxu0 0.0
  %1718 = vmatprep.subr.mxu0 0.0
  %1719 = vmatpush1.msra.mxu0 0.0
  %1720 = vmatprep.subr.mxu0 0.0
  %1721 = vmatpush1.msra.mxu0 0.0
  %1722 = vmatprep.subr.mxu0 0.0
  %1723 = vmatpush1.msra.mxu0 0.0
  %1724 = vmatprep.subr.mxu0 0.0
  %1725 = vmatpush1.msra.mxu0 0.0
  %1726 = vmatprep.subr.mxu0 0.0
  %1727 = vmatpush1.msra.mxu0 0.0
  %1728 = vmatprep.subr.mxu0 0.0
  %1729 = vmatpush1.msra.mxu0 0.0
  %1730 = vmatprep.subr.mxu0 0.0
  %1731 = vmatpush1.msra.mxu0 0.0
  %1732 = vmatprep.subr.mxu0 0.0
  %1733 = vmatpush1.msra.mxu0 0.0
  %1734 = vmatprep.subr.mxu0 0.0
  %1735 = vmatpush1.msra.mxu0 0.0
  %1736 = vmatprep.subr.mxu0 0.0
  %1737 = vmatpush1.msra.mxu0 0.0
  %1738 = vmatprep.subr.mxu0 0.0
  %1739 = vmatpush1.msra.mxu0 0.0
  %1740 = vmatprep.subr.mxu0 0.0
  %1741 = vmatpush1.msra.mxu0 0.0
  %1742 = vmatprep.subr.mxu0 0.0
  %1743 = vmatpush1.msra.mxu0 0.0
  %1744 = vmatprep.subr.mxu0 0.0
  %1745 = vmatpush1.msra.mxu0 0.0
  %1746 = vmatprep.subr.mxu0 0.0
  %1747 = vmatpush1.msra.mxu0 0.0
  %1748 = vmatprep.subr.mxu0 0.0
  %1749 = vmatpush1.msra.mxu0 0.0
  %1750 = vmatprep.mubr.f32.mxu0 0.0
  %1751 = vmatmul.mubr.f32.gmra.mrb[0].mxu0 %v1684
  %v1752 = vpop.f32.mrb[0].mxu0
  %v1753 = vadd.f32 0.0, %v1752
  %v1754 = vpop.f32.mrb[0].mxu0
  %v1755 = vadd.f32 0.0, %v1754
  %1756 = vdwg.mxu0
  %1757 = vmatprep.subr.mxu0 %v1678
  %1758 = vmatpush1.msra.mxu0 %v1669
  %1759 = vmatprep.subr.mxu0 %v1679
  %1760 = vmatpush1.msra.mxu0 %v1670
  %1761 = vmatprep.subr.mxu0 %v1680
  %1762 = vmatpush1.msra.mxu0 %v1671
  %1763 = vmatprep.subr.mxu0 0.0
  %1764 = vmatpush1.msra.mxu0 0.0
  %1765 = vmatprep.subr.mxu0 0.0
  %1766 = vmatpush1.msra.mxu0 0.0
  %1767 = vmatprep.subr.mxu0 0.0
  %1768 = vmatpush1.msra.mxu0 0.0
  %1769 = vmatprep.subr.mxu0 0.0
  %1770 = vmatpush1.msra.mxu0 0.0
  %1771 = vmatprep.subr.mxu0 0.0
  %1772 = vmatpush1.msra.mxu0 0.0
  %1773 = vmatprep.subr.mxu0 0.0
  %1774 = vmatpush1.msra.mxu0 0.0
  %1775 = vmatprep.subr.mxu0 0.0
  %1776 = vmatpush1.msra.mxu0 0.0
  %1777 = vmatprep.subr.mxu0 0.0
  %1778 = vmatpush1.msra.mxu0 0.0
  %1779 = vmatprep.subr.mxu0 0.0
  %1780 = vmatpush1.msra.mxu0 0.0
  %1781 = vmatprep.subr.mxu0 0.0
  %1782 = vmatpush1.msra.mxu0 0.0
  %1783 = vmatprep.subr.mxu0 0.0
  %1784 = vmatpush1.msra.mxu0 0.0
  %1785 = vmatprep.subr.mxu0 0.0
  %1786 = vmatpush1.msra.mxu0 0.0
  %1787 = vmatprep.subr.mxu0 0.0
  %1788 = vmatpush1.msra.mxu0 0.0
  %1789 = vmatprep.subr.mxu0 0.0
  %1790 = vmatpush1.msra.mxu0 0.0
  %1791 = vmatprep.subr.mxu0 0.0
  %1792 = vmatpush1.msra.mxu0 0.0
  %1793 = vmatprep.subr.mxu0 0.0
  %1794 = vmatpush1.msra.mxu0 0.0
  %1795 = vmatprep.subr.mxu0 0.0
  %1796 = vmatpush1.msra.mxu0 0.0
  %1797 = vmatprep.subr.mxu0 0.0
  %1798 = vmatpush1.msra.mxu0 0.0
  %1799 = vmatprep.subr.mxu0 0.0
  %1800 = vmatpush1.msra.mxu0 0.0
  %1801 = vmatprep.subr.mxu0 0.0
  %1802 = vmatpush1.msra.mxu0 0.0
  %1803 = vmatprep.subr.mxu0 0.0
  %1804 = vmatpush1.msra.mxu0 0.0
  %1805 = vmatprep.subr.mxu0 0.0
  %1806 = vmatpush1.msra.mxu0 0.0
  %1807 = vmatprep.subr.mxu0 0.0
  %1808 = vmatpush1.msra.mxu0 0.0
  %1809 = vmatprep.subr.mxu0 0.0
  %1810 = vmatpush1.msra.mxu0 0.0
  %1811 = vmatprep.subr.mxu0 0.0
  %1812 = vmatpush1.msra.mxu0 0.0
  %1813 = vmatprep.subr.mxu0 0.0
  %1814 = vmatpush1.msra.mxu0 0.0
  %1815 = vmatprep.subr.mxu0 0.0
  %1816 = vmatpush1.msra.mxu0 0.0
  %1817 = vmatprep.subr.mxu0 0.0
  %1818 = vmatpush1.msra.mxu0 0.0
  %1819 = vmatprep.subr.mxu0 0.0
  %1820 = vmatpush1.msra.mxu0 0.0
  %1821 = vmatprep.mubr.f32.mxu0 0.0
  %1822 = vmatmul.mubr.f32.gmra.mrb[0].mxu0 %v1684
  %v1823 = vpop.f32.mrb[0].mxu0
  %v1824 = vadd.f32 0.0, %v1823
  %v1825 = vpop.f32.mrb[0].mxu0
  %v1826 = vadd.f32 0.0, %v1825
  %1827 = vdwg.mxu0
  %v1828 = vlaneseq
  %v1829 = vshrl.u32 %v1828, 7
  %v1830 = vsub.s32 0, %v1829
  %v1831 = vrot.slane %v27, %v1830
  %v1832 = vlaneseq
  %v1833 = vshrl.u32 %v1832, 7
  %v1834 = vsub.s32 0, %v1833
  %v1835 = vrot.slane %v28, %v1834
  %v1836 = vlaneseq
  %v1837 = vshrl.u32 %v1836, 7
  %v1838 = vsub.s32 0, %v1837
  %v1839 = vrot.slane %v29, %v1838
  %v1840 = vlaneseq
  %v1841 = vshrl.u32 %v1840, 7
  %v1842 = vsub.s32 0, %v1841
  %v1843 = vrot.slane %v30, %v1842
  %v1844 = vmul.f32 %v1753, %v1831
  %v1845 = vmul.f32 %v1755, %v1835
  %v1846 = vmul.f32 %v1824, %v1839
  %v1847 = vmul.f32 %v1826, %v1843
  %v1848 = vadd.f32 %v1640, %v1844
  %v1849 = vadd.f32 %v1641, %v1845
  %v1850 = vadd.f32 %v1642, %v1846
  %v1851 = vadd.f32 %v1643, %v1847
  %v1852 = vld [vmem:[%s3] sm:$0xff]
  %1854 = vset.pattern.permute.xlu0 0
  %1855 = vperm.xlu0 %1854, %v1852
  %v1856 = vpop.permute.xlu0 %1855
  %v1858 = vadd.f32 %v1848, %v1856
  %v1859 = vadd.f32 %v1849, %v1856
  %v1860 = vadd.f32 %v1850, %v1856
  %v1861 = vadd.f32 %v1851, %v1856
  %v1862 = vmax.f32 %v1858, 0.0
  %v1863 = vmax.f32 %v1859, 0.0
  %v1864 = vmax.f32 %v1860, 0.0
  %v1865 = vmax.f32 %v1861, 0.0
  %v1866 = vadd.f32 %v1862, %v1863
  %1867 = vadd.xlane.f32.xlu0 %v1866
  %v1868 = vpop.xlane.xlu0 %1867
  %v1869 = vrot.slane %v1868, 4
  %v1870 = vadd.f32 %v1868, %v1869
  %v1871 = vrot.slane %v1870, 2
  %v1872 = vadd.f32 %v1870, %v1871
  %v1873 = vrot.slane %v1872, 1
  %v1874 = vadd.f32 %v1872, %v1873
  %s1875 = vtos %v1874
  %s1876 = smul.f32 %s1875, 0.00048828125
  %v1877 = vmul.f32 %v1862, %v1862
  %v1878 = vmul.f32 %v1863, %v1863
  %v1879 = vadd.f32 %v1877, %v1878
  %1880 = vadd.xlane.f32.xlu0 %v1879
  %v1881 = vpop.xlane.xlu0 %1880
  %v1882 = vrot.slane %v1881, 4
  %v1883 = vadd.f32 %v1881, %v1882
  %v1884 = vrot.slane %v1883, 2
  %v1885 = vadd.f32 %v1883, %v1884
  %v1886 = vrot.slane %v1885, 1
  %v1887 = vadd.f32 %v1885, %v1886
  %s1888 = vtos %v1887
  %s1889 = smul.f32 %s1888, 0.00048828125
  %s1890 = smul.f32 %s1876, %s1876
  %s1891 = ssub.f32 %s1889, %s1890
  %v1892 = vstv %s1876
  %v1893 = vsub.f32 %v1862, %v1892
  %v1894 = vsub.f32 %v1863, %v1892
  %s1895 = sadd.f32 %s1891, 1e-05
  %v1896 = vstv %s1895
  %v1897 = vrsqrt.pop %v1896
  %s1898 = vtos %v1897
  %v1899 = vstv %s1898
  %v1900 = vmul.f32 %v1893, %v1899
  %v1901 = vmul.f32 %v1894, %v1899
  %v1902 = vadd.f32 %v1864, %v1865
  %1903 = vadd.xlane.f32.xlu0 %v1902
  %v1904 = vpop.xlane.xlu0 %1903
  %v1905 = vrot.slane %v1904, 4
  %v1906 = vadd.f32 %v1904, %v1905
  %v1907 = vrot.slane %v1906, 2
  %v1908 = vadd.f32 %v1906, %v1907
  %v1909 = vrot.slane %v1908, 1
  %v1910 = vadd.f32 %v1908, %v1909
  %s1911 = vtos %v1910
  %s1912 = smul.f32 %s1911, 0.00048828125
  %v1913 = vmul.f32 %v1864, %v1864
  %v1914 = vmul.f32 %v1865, %v1865
  %v1915 = vadd.f32 %v1913, %v1914
  %1916 = vadd.xlane.f32.xlu0 %v1915
  %v1917 = vpop.xlane.xlu0 %1916
  %v1918 = vrot.slane %v1917, 4
  %v1919 = vadd.f32 %v1917, %v1918
  %v1920 = vrot.slane %v1919, 2
  %v1921 = vadd.f32 %v1919, %v1920
  %v1922 = vrot.slane %v1921, 1
  %v1923 = vadd.f32 %v1921, %v1922
  %s1924 = vtos %v1923
  %s1925 = smul.f32 %s1924, 0.00048828125
  %s1926 = smul.f32 %s1912, %s1912
  %s1927 = ssub.f32 %s1925, %s1926
  %v1928 = vstv %s1912
  %v1929 = vsub.f32 %v1864, %v1928
  %v1930 = vsub.f32 %v1865, %v1928
  %s1931 = sadd.f32 %s1927, 1e-05
  %v1932 = vstv %s1931
  %v1933 = vrsqrt.pop %v1932
  %s1934 = vtos %v1933
  %v1935 = vstv %s1934
  %v1936 = vmul.f32 %v1929, %v1935
  %v1937 = vmul.f32 %v1930, %v1935
  %1938 = vset.pattern.permute.xlu0 1
  %1939 = vperm.xlu0 %1938, %v1852
  %v1940 = vpop.permute.xlu0 %1939
  %v1942 = vmul.f32 %v1900, %v1940
  %v1943 = vmul.f32 %v1901, %v1940
  %v1944 = vmul.f32 %v1936, %v1940
  %v1945 = vmul.f32 %v1937, %v1940
  %1946 = vset.pattern.permute.xlu0 2
  %1947 = vperm.xlu0 %1946, %v1852
  %v1948 = vpop.permute.xlu0 %1947
  %v1950 = vadd.f32 %v1942, %v1948
  %v1951 = vadd.f32 %v1943, %v1948
  %v1952 = vadd.f32 %v1944, %v1948
  %v1953 = vadd.f32 %v1945, %v1948
  %s1954 = scalar_lea.vmem %s4, 32
  %v1955 = vld [vmem:[%s1954] sm:$0xff]
  %1956 = vrot.lane.b32.xlu0 %v1950, 17
  %v1957 = vpop.permute.xlu0 %1956
  %1958 = vrot.lane.b32.xlu0 %v1951, 17
  %v1959 = vpop.permute.xlu0 %1958
  %1960 = vrot.lane.b32.xlu0 %v1952, 17
  %v1961 = vpop.permute.xlu0 %1960
  %1962 = vrot.lane.b32.xlu0 %v1953, 17
  %v1963 = vpop.permute.xlu0 %1962
  %v1964 = vsel %vm71, %v1961, %v1963
  %v1965 = vsel %vm71, %v1959, %v1961
  %v1966 = vsel %vm71, %v1957, %v1959
  %v1967 = vsel %vm71, %v1963, %v1957
  %v1968 = vld [vmem:[%s4] sm:$0xff]
  %vm1969 = vcmask 64512
  %v1971 = vsel %vm1969, %v1968, 0
  %1973 = vmatprep.subr.mxu0 %v1966
  %1974 = vmatpush1.msra.mxu0 %v1967
  %1975 = vmatprep.subr.mxu0 0.0
  %1976 = vmatpush1.msra.mxu0 0.0
  %1977 = vmatprep.subr.mxu0 0.0
  %1978 = vmatpush1.msra.mxu0 0.0
  %1979 = vmatprep.subr.mxu0 0.0
  %1980 = vmatpush1.msra.mxu0 0.0
  %1981 = vmatprep.subr.mxu0 0.0
  %1982 = vmatpush1.msra.mxu0 0.0
  %1983 = vmatprep.subr.mxu0 0.0
  %1984 = vmatpush1.msra.mxu0 0.0
  %1985 = vmatprep.subr.mxu0 0.0
  %1986 = vmatpush1.msra.mxu0 0.0
  %1987 = vmatprep.subr.mxu0 0.0
  %1988 = vmatpush1.msra.mxu0 0.0
  %1989 = vmatprep.subr.mxu0 0.0
  %1990 = vmatpush1.msra.mxu0 0.0
  %1991 = vmatprep.subr.mxu0 0.0
  %1992 = vmatpush1.msra.mxu0 0.0
  %1993 = vmatprep.subr.mxu0 0.0
  %1994 = vmatpush1.msra.mxu0 0.0
  %1995 = vmatprep.subr.mxu0 0.0
  %1996 = vmatpush1.msra.mxu0 0.0
  %1997 = vmatprep.subr.mxu0 0.0
  %1998 = vmatpush1.msra.mxu0 0.0
  %1999 = vmatprep.subr.mxu0 0.0
  %2000 = vmatpush1.msra.mxu0 0.0
  %2001 = vmatprep.subr.mxu0 0.0
  %2002 = vmatpush1.msra.mxu0 0.0
  %2003 = vmatprep.subr.mxu0 0.0
  %2004 = vmatpush1.msra.mxu0 0.0
  %2005 = vmatprep.subr.mxu0 0.0
  %2006 = vmatpush1.msra.mxu0 0.0
  %2007 = vmatprep.subr.mxu0 0.0
  %2008 = vmatpush1.msra.mxu0 0.0
  %2009 = vmatprep.subr.mxu0 0.0
  %2010 = vmatpush1.msra.mxu0 0.0
  %2011 = vmatprep.subr.mxu0 0.0
  %2012 = vmatpush1.msra.mxu0 0.0
  %2013 = vmatprep.subr.mxu0 0.0
  %2014 = vmatpush1.msra.mxu0 0.0
  %2015 = vmatprep.subr.mxu0 0.0
  %2016 = vmatpush1.msra.mxu0 0.0
  %2017 = vmatprep.subr.mxu0 0.0
  %2018 = vmatpush1.msra.mxu0 0.0
  %2019 = vmatprep.subr.mxu0 0.0
  %2020 = vmatpush1.msra.mxu0 0.0
  %2021 = vmatprep.subr.mxu0 0.0
  %2022 = vmatpush1.msra.mxu0 0.0
  %2023 = vmatprep.subr.mxu0 0.0
  %2024 = vmatpush1.msra.mxu0 0.0
  %2025 = vmatprep.subr.mxu0 0.0
  %2026 = vmatpush1.msra.mxu0 0.0
  %2027 = vmatprep.subr.mxu0 0.0
  %2028 = vmatpush1.msra.mxu0 0.0
  %2029 = vmatprep.subr.mxu0 0.0
  %2030 = vmatpush1.msra.mxu0 0.0
  %2031 = vmatprep.subr.mxu0 0.0
  %2032 = vmatpush1.msra.mxu0 0.0
  %2033 = vmatprep.subr.mxu0 0.0
  %2034 = vmatpush1.msra.mxu0 0.0
  %2035 = vmatprep.subr.mxu0 0.0
  %2036 = vmatpush1.msra.mxu0 0.0
  %2037 = vmatprep.mubr.f32.mxu0 0.0
  %2038 = vmatmul.mubr.f32.gmra.mrb[0].mxu0 %v1971
  %v2039 = vpop.f32.mrb[0].mxu0
  %v2040 = vadd.f32 0.0, %v2039
  %v2041 = vpop.f32.mrb[0].mxu0
  %v2042 = vadd.f32 0.0, %v2041
  %2043 = vdwg.mxu0
  %2044 = vmatprep.subr.mxu0 %v1964
  %2045 = vmatpush1.msra.mxu0 %v1965
  %2046 = vmatprep.subr.mxu0 0.0
  %2047 = vmatpush1.msra.mxu0 0.0
  %2048 = vmatprep.subr.mxu0 0.0
  %2049 = vmatpush1.msra.mxu0 0.0
  %2050 = vmatprep.subr.mxu0 0.0
  %2051 = vmatpush1.msra.mxu0 0.0
  %2052 = vmatprep.subr.mxu0 0.0
  %2053 = vmatpush1.msra.mxu0 0.0
  %2054 = vmatprep.subr.mxu0 0.0
  %2055 = vmatpush1.msra.mxu0 0.0
  %2056 = vmatprep.subr.mxu0 0.0
  %2057 = vmatpush1.msra.mxu0 0.0
  %2058 = vmatprep.subr.mxu0 0.0
  %2059 = vmatpush1.msra.mxu0 0.0
  %2060 = vmatprep.subr.mxu0 0.0
  %2061 = vmatpush1.msra.mxu0 0.0
  %2062 = vmatprep.subr.mxu0 0.0
  %2063 = vmatpush1.msra.mxu0 0.0
  %2064 = vmatprep.subr.mxu0 0.0
  %2065 = vmatpush1.msra.mxu0 0.0
  %2066 = vmatprep.subr.mxu0 0.0
  %2067 = vmatpush1.msra.mxu0 0.0
  %2068 = vmatprep.subr.mxu0 0.0
  %2069 = vmatpush1.msra.mxu0 0.0
  %2070 = vmatprep.subr.mxu0 0.0
  %2071 = vmatpush1.msra.mxu0 0.0
  %2072 = vmatprep.subr.mxu0 0.0
  %2073 = vmatpush1.msra.mxu0 0.0
  %2074 = vmatprep.subr.mxu0 0.0
  %2075 = vmatpush1.msra.mxu0 0.0
  %2076 = vmatprep.subr.mxu0 0.0
  %2077 = vmatpush1.msra.mxu0 0.0
  %2078 = vmatprep.subr.mxu0 0.0
  %2079 = vmatpush1.msra.mxu0 0.0
  %2080 = vmatprep.subr.mxu0 0.0
  %2081 = vmatpush1.msra.mxu0 0.0
  %2082 = vmatprep.subr.mxu0 0.0
  %2083 = vmatpush1.msra.mxu0 0.0
  %2084 = vmatprep.subr.mxu0 0.0
  %2085 = vmatpush1.msra.mxu0 0.0
  %2086 = vmatprep.subr.mxu0 0.0
  %2087 = vmatpush1.msra.mxu0 0.0
  %2088 = vmatprep.subr.mxu0 0.0
  %2089 = vmatpush1.msra.mxu0 0.0
  %2090 = vmatprep.subr.mxu0 0.0
  %2091 = vmatpush1.msra.mxu0 0.0
  %2092 = vmatprep.subr.mxu0 0.0
  %2093 = vmatpush1.msra.mxu0 0.0
  %2094 = vmatprep.subr.mxu0 0.0
  %2095 = vmatpush1.msra.mxu0 0.0
  %2096 = vmatprep.subr.mxu0 0.0
  %2097 = vmatpush1.msra.mxu0 0.0
  %2098 = vmatprep.subr.mxu0 0.0
  %2099 = vmatpush1.msra.mxu0 0.0
  %2100 = vmatprep.subr.mxu0 0.0
  %2101 = vmatpush1.msra.mxu0 0.0
  %2102 = vmatprep.subr.mxu0 0.0
  %2103 = vmatpush1.msra.mxu0 0.0
  %2104 = vmatprep.subr.mxu0 0.0
  %2105 = vmatpush1.msra.mxu0 0.0
  %2106 = vmatprep.subr.mxu0 0.0
  %2107 = vmatpush1.msra.mxu0 0.0
  %2108 = vmatprep.mubr.f32.mxu0 0.0
  %2109 = vmatmul.mubr.f32.gmra.mrb[0].mxu0 %v1971
  %v2110 = vpop.f32.mrb[0].mxu0
  %v2111 = vadd.f32 0.0, %v2110
  %v2112 = vpop.f32.mrb[0].mxu0
  %v2113 = vadd.f32 0.0, %v2112
  %2114 = vdwg.mxu0
  %v2115 = vmul.f32 %v2040, %v234
  %v2116 = vmul.f32 %v2042, %v238
  %v2117 = vmul.f32 %v2111, %v242
  %v2118 = vmul.f32 %v2113, %v246
  %v2120 = vsel %vm1969, %v1955, 0
  %2122 = vmatprep.subr.mxu0 %v1951
  %2123 = vmatpush1.msra.mxu0 %v1950
  %2124 = vmatprep.subr.mxu0 0.0
  %2125 = vmatpush1.msra.mxu0 0.0
  %2126 = vmatprep.subr.mxu0 0.0
  %2127 = vmatpush1.msra.mxu0 0.0
  %2128 = vmatprep.subr.mxu0 0.0
  %2129 = vmatpush1.msra.mxu0 0.0
  %2130 = vmatprep.subr.mxu0 0.0
  %2131 = vmatpush1.msra.mxu0 0.0
  %2132 = vmatprep.subr.mxu0 0.0
  %2133 = vmatpush1.msra.mxu0 0.0
  %2134 = vmatprep.subr.mxu0 0.0
  %2135 = vmatpush1.msra.mxu0 0.0
  %2136 = vmatprep.subr.mxu0 0.0
  %2137 = vmatpush1.msra.mxu0 0.0
  %2138 = vmatprep.subr.mxu0 0.0
  %2139 = vmatpush1.msra.mxu0 0.0
  %2140 = vmatprep.subr.mxu0 0.0
  %2141 = vmatpush1.msra.mxu0 0.0
  %2142 = vmatprep.subr.mxu0 0.0
  %2143 = vmatpush1.msra.mxu0 0.0
  %2144 = vmatprep.subr.mxu0 0.0
  %2145 = vmatpush1.msra.mxu0 0.0
  %2146 = vmatprep.subr.mxu0 0.0
  %2147 = vmatpush1.msra.mxu0 0.0
  %2148 = vmatprep.subr.mxu0 0.0
  %2149 = vmatpush1.msra.mxu0 0.0
  %2150 = vmatprep.subr.mxu0 0.0
  %2151 = vmatpush1.msra.mxu0 0.0
  %2152 = vmatprep.subr.mxu0 0.0
  %2153 = vmatpush1.msra.mxu0 0.0
  %2154 = vmatprep.subr.mxu0 0.0
  %2155 = vmatpush1.msra.mxu0 0.0
  %2156 = vmatprep.subr.mxu0 0.0
  %2157 = vmatpush1.msra.mxu0 0.0
  %2158 = vmatprep.subr.mxu0 0.0
  %2159 = vmatpush1.msra.mxu0 0.0
  %2160 = vmatprep.subr.mxu0 0.0
  %2161 = vmatpush1.msra.mxu0 0.0
  %2162 = vmatprep.subr.mxu0 0.0
  %2163 = vmatpush1.msra.mxu0 0.0
  %2164 = vmatprep.subr.mxu0 0.0
  %2165 = vmatpush1.msra.mxu0 0.0
  %2166 = vmatprep.subr.mxu0 0.0
  %2167 = vmatpush1.msra.mxu0 0.0
  %2168 = vmatprep.subr.mxu0 0.0
  %2169 = vmatpush1.msra.mxu0 0.0
  %2170 = vmatprep.subr.mxu0 0.0
  %2171 = vmatpush1.msra.mxu0 0.0
  %2172 = vmatprep.subr.mxu0 0.0
  %2173 = vmatpush1.msra.mxu0 0.0
  %2174 = vmatprep.subr.mxu0 0.0
  %2175 = vmatpush1.msra.mxu0 0.0
  %2176 = vmatprep.subr.mxu0 0.0
  %2177 = vmatpush1.msra.mxu0 0.0
  %2178 = vmatprep.subr.mxu0 0.0
  %2179 = vmatpush1.msra.mxu0 0.0
  %2180 = vmatprep.subr.mxu0 0.0
  %2181 = vmatpush1.msra.mxu0 0.0
  %2182 = vmatprep.subr.mxu0 0.0
  %2183 = vmatpush1.msra.mxu0 0.0
  %2184 = vmatprep.subr.mxu0 0.0
  %2185 = vmatpush1.msra.mxu0 0.0
  %2186 = vmatprep.mubr.f32.mxu0 0.0
  %2187 = vmatmul.mubr.f32.gmra.mrb[0].mxu0 %v2120
  %v2188 = vpop.f32.mrb[0].mxu0
  %v2189 = vadd.f32 %v2115, %v2188
  %v2190 = vpop.f32.mrb[0].mxu0
  %v2191 = vadd.f32 %v2116, %v2190
  %2192 = vdwg.mxu0
  %2193 = vmatprep.subr.mxu0 %v1953
  %2194 = vmatpush1.msra.mxu0 %v1952
  %2195 = vmatprep.subr.mxu0 0.0
  %2196 = vmatpush1.msra.mxu0 0.0
  %2197 = vmatprep.subr.mxu0 0.0
  %2198 = vmatpush1.msra.mxu0 0.0
  %2199 = vmatprep.subr.mxu0 0.0
  %2200 = vmatpush1.msra.mxu0 0.0
  %2201 = vmatprep.subr.mxu0 0.0
  %2202 = vmatpush1.msra.mxu0 0.0
  %2203 = vmatprep.subr.mxu0 0.0
  %2204 = vmatpush1.msra.mxu0 0.0
  %2205 = vmatprep.subr.mxu0 0.0
  %2206 = vmatpush1.msra.mxu0 0.0
  %2207 = vmatprep.subr.mxu0 0.0
  %2208 = vmatpush1.msra.mxu0 0.0
  %2209 = vmatprep.subr.mxu0 0.0
  %2210 = vmatpush1.msra.mxu0 0.0
  %2211 = vmatprep.subr.mxu0 0.0
  %2212 = vmatpush1.msra.mxu0 0.0
  %2213 = vmatprep.subr.mxu0 0.0
  %2214 = vmatpush1.msra.mxu0 0.0
  %2215 = vmatprep.subr.mxu0 0.0
  %2216 = vmatpush1.msra.mxu0 0.0
  %2217 = vmatprep.subr.mxu0 0.0
  %2218 = vmatpush1.msra.mxu0 0.0
  %2219 = vmatprep.subr.mxu0 0.0
  %2220 = vmatpush1.msra.mxu0 0.0
  %2221 = vmatprep.subr.mxu0 0.0
  %2222 = vmatpush1.msra.mxu0 0.0
  %2223 = vmatprep.subr.mxu0 0.0
  %2224 = vmatpush1.msra.mxu0 0.0
  %2225 = vmatprep.subr.mxu0 0.0
  %2226 = vmatpush1.msra.mxu0 0.0
  %2227 = vmatprep.subr.mxu0 0.0
  %2228 = vmatpush1.msra.mxu0 0.0
  %2229 = vmatprep.subr.mxu0 0.0
  %2230 = vmatpush1.msra.mxu0 0.0
  %2231 = vmatprep.subr.mxu0 0.0
  %2232 = vmatpush1.msra.mxu0 0.0
  %2233 = vmatprep.subr.mxu0 0.0
  %2234 = vmatpush1.msra.mxu0 0.0
  %2235 = vmatprep.subr.mxu0 0.0
  %2236 = vmatpush1.msra.mxu0 0.0
  %2237 = vmatprep.subr.mxu0 0.0
  %2238 = vmatpush1.msra.mxu0 0.0
  %2239 = vmatprep.subr.mxu0 0.0
  %2240 = vmatpush1.msra.mxu0 0.0
  %2241 = vmatprep.subr.mxu0 0.0
  %2242 = vmatpush1.msra.mxu0 0.0
  %2243 = vmatprep.subr.mxu0 0.0
  %2244 = vmatpush1.msra.mxu0 0.0
  %2245 = vmatprep.subr.mxu0 0.0
  %2246 = vmatpush1.msra.mxu0 0.0
  %2247 = vmatprep.subr.mxu0 0.0
  %2248 = vmatpush1.msra.mxu0 0.0
  %2249 = vmatprep.subr.mxu0 0.0
  %2250 = vmatpush1.msra.mxu0 0.0
  %2251 = vmatprep.subr.mxu0 0.0
  %2252 = vmatpush1.msra.mxu0 0.0
  %2253 = vmatprep.subr.mxu0 0.0
  %2254 = vmatpush1.msra.mxu0 0.0
  %2255 = vmatprep.subr.mxu0 0.0
  %2256 = vmatpush1.msra.mxu0 0.0
  %2257 = vmatprep.mubr.f32.mxu0 0.0
  %2258 = vmatmul.mubr.f32.gmra.mrb[0].mxu0 %v2120
  %v2259 = vpop.f32.mrb[0].mxu0
  %v2260 = vadd.f32 %v2117, %v2259
  %v2261 = vpop.f32.mrb[0].mxu0
  %v2262 = vadd.f32 %v2118, %v2261
  %2263 = vdwg.mxu0
  %2264 = vrot.lane.b32.xlu0 %v1950, 16
  %v2265 = vpop.permute.xlu0 %2264
  %2266 = vrot.lane.b32.xlu0 %v1951, 16
  %v2267 = vpop.permute.xlu0 %2266
  %2268 = vrot.lane.b32.xlu0 %v1952, 16
  %v2269 = vpop.permute.xlu0 %2268
  %2270 = vrot.lane.b32.xlu0 %v1953, 16
  %v2271 = vpop.permute.xlu0 %2270
  %v2272 = vsel %vm420, %v2269, %v2271
  %v2273 = vsel %vm420, %v2267, %v2269
  %v2274 = vsel %vm420, %v2265, %v2267
  %v2275 = vsel %vm420, %v2271, %v2265
  %s2276 = scalar_lea.vmem %s4, 8
  %v2277 = vld [vmem:[%s2276] sm:$0xff]
  %v2279 = vsel %vm1969, %v2277, 0
  %2281 = vmatprep.subr.mxu0 %v2274
  %2282 = vmatpush1.msra.mxu0 %v2275
  %2283 = vmatprep.subr.mxu0 0.0
  %2284 = vmatpush1.msra.mxu0 0.0
  %2285 = vmatprep.subr.mxu0 0.0
  %2286 = vmatpush1.msra.mxu0 0.0
  %2287 = vmatprep.subr.mxu0 0.0
  %2288 = vmatpush1.msra.mxu0 0.0
  %2289 = vmatprep.subr.mxu0 0.0
  %2290 = vmatpush1.msra.mxu0 0.0
  %2291 = vmatprep.subr.mxu0 0.0
  %2292 = vmatpush1.msra.mxu0 0.0
  %2293 = vmatprep.subr.mxu0 0.0
  %2294 = vmatpush1.msra.mxu0 0.0
  %2295 = vmatprep.subr.mxu0 0.0
  %2296 = vmatpush1.msra.mxu0 0.0
  %2297 = vmatprep.subr.mxu0 0.0
  %2298 = vmatpush1.msra.mxu0 0.0
  %2299 = vmatprep.subr.mxu0 0.0
  %2300 = vmatpush1.msra.mxu0 0.0
  %2301 = vmatprep.subr.mxu0 0.0
  %2302 = vmatpush1.msra.mxu0 0.0
  %2303 = vmatprep.subr.mxu0 0.0
  %2304 = vmatpush1.msra.mxu0 0.0
  %2305 = vmatprep.subr.mxu0 0.0
  %2306 = vmatpush1.msra.mxu0 0.0
  %2307 = vmatprep.subr.mxu0 0.0
  %2308 = vmatpush1.msra.mxu0 0.0
  %2309 = vmatprep.subr.mxu0 0.0
  %2310 = vmatpush1.msra.mxu0 0.0
  %2311 = vmatprep.subr.mxu0 0.0
  %2312 = vmatpush1.msra.mxu0 0.0
  %2313 = vmatprep.subr.mxu0 0.0
  %2314 = vmatpush1.msra.mxu0 0.0
  %2315 = vmatprep.subr.mxu0 0.0
  %2316 = vmatpush1.msra.mxu0 0.0
  %2317 = vmatprep.subr.mxu0 0.0
  %2318 = vmatpush1.msra.mxu0 0.0
  %2319 = vmatprep.subr.mxu0 0.0
  %2320 = vmatpush1.msra.mxu0 0.0
  %2321 = vmatprep.subr.mxu0 0.0
  %2322 = vmatpush1.msra.mxu0 0.0
  %2323 = vmatprep.subr.mxu0 0.0
  %2324 = vmatpush1.msra.mxu0 0.0
  %2325 = vmatprep.subr.mxu0 0.0
  %2326 = vmatpush1.msra.mxu0 0.0
  %2327 = vmatprep.subr.mxu0 0.0
  %2328 = vmatpush1.msra.mxu0 0.0
  %2329 = vmatprep.subr.mxu0 0.0
  %2330 = vmatpush1.msra.mxu0 0.0
  %2331 = vmatprep.subr.mxu0 0.0
  %2332 = vmatpush1.msra.mxu0 0.0
  %2333 = vmatprep.subr.mxu0 0.0
  %2334 = vmatpush1.msra.mxu0 0.0
  %2335 = vmatprep.subr.mxu0 0.0
  %2336 = vmatpush1.msra.mxu0 0.0
  %2337 = vmatprep.subr.mxu0 0.0
  %2338 = vmatpush1.msra.mxu0 0.0
  %2339 = vmatprep.subr.mxu0 0.0
  %2340 = vmatpush1.msra.mxu0 0.0
  %2341 = vmatprep.subr.mxu0 0.0
  %2342 = vmatpush1.msra.mxu0 0.0
  %2343 = vmatprep.subr.mxu0 0.0
  %2344 = vmatpush1.msra.mxu0 0.0
  %2345 = vmatprep.mubr.f32.mxu0 0.0
  %2346 = vmatmul.mubr.f32.gmra.mrb[0].mxu0 %v2279
  %v2347 = vpop.f32.mrb[0].mxu0
  %v2348 = vadd.f32 0.0, %v2347
  %v2349 = vpop.f32.mrb[0].mxu0
  %v2350 = vadd.f32 0.0, %v2349
  %2351 = vdwg.mxu0
  %2352 = vmatprep.subr.mxu0 %v2272
  %2353 = vmatpush1.msra.mxu0 %v2273
  %2354 = vmatprep.subr.mxu0 0.0
  %2355 = vmatpush1.msra.mxu0 0.0
  %2356 = vmatprep.subr.mxu0 0.0
  %2357 = vmatpush1.msra.mxu0 0.0
  %2358 = vmatprep.subr.mxu0 0.0
  %2359 = vmatpush1.msra.mxu0 0.0
  %2360 = vmatprep.subr.mxu0 0.0
  %2361 = vmatpush1.msra.mxu0 0.0
  %2362 = vmatprep.subr.mxu0 0.0
  %2363 = vmatpush1.msra.mxu0 0.0
  %2364 = vmatprep.subr.mxu0 0.0
  %2365 = vmatpush1.msra.mxu0 0.0
  %2366 = vmatprep.subr.mxu0 0.0
  %2367 = vmatpush1.msra.mxu0 0.0
  %2368 = vmatprep.subr.mxu0 0.0
  %2369 = vmatpush1.msra.mxu0 0.0
  %2370 = vmatprep.subr.mxu0 0.0
  %2371 = vmatpush1.msra.mxu0 0.0
  %2372 = vmatprep.subr.mxu0 0.0
  %2373 = vmatpush1.msra.mxu0 0.0
  %2374 = vmatprep.subr.mxu0 0.0
  %2375 = vmatpush1.msra.mxu0 0.0
  %2376 = vmatprep.subr.mxu0 0.0
  %2377 = vmatpush1.msra.mxu0 0.0
  %2378 = vmatprep.subr.mxu0 0.0
  %2379 = vmatpush1.msra.mxu0 0.0
  %2380 = vmatprep.subr.mxu0 0.0
  %2381 = vmatpush1.msra.mxu0 0.0
  %2382 = vmatprep.subr.mxu0 0.0
  %2383 = vmatpush1.msra.mxu0 0.0
  %2384 = vmatprep.subr.mxu0 0.0
  %2385 = vmatpush1.msra.mxu0 0.0
  %2386 = vmatprep.subr.mxu0 0.0
  %2387 = vmatpush1.msra.mxu0 0.0
  %2388 = vmatprep.subr.mxu0 0.0
  %2389 = vmatpush1.msra.mxu0 0.0
  %2390 = vmatprep.subr.mxu0 0.0
  %2391 = vmatpush1.msra.mxu0 0.0
  %2392 = vmatprep.subr.mxu0 0.0
  %2393 = vmatpush1.msra.mxu0 0.0
  %2394 = vmatprep.subr.mxu0 0.0
  %2395 = vmatpush1.msra.mxu0 0.0
  %2396 = vmatprep.subr.mxu0 0.0
  %2397 = vmatpush1.msra.mxu0 0.0
  %2398 = vmatprep.subr.mxu0 0.0
  %2399 = vmatpush1.msra.mxu0 0.0
  %2400 = vmatprep.subr.mxu0 0.0
  %2401 = vmatpush1.msra.mxu0 0.0
  %2402 = vmatprep.subr.mxu0 0.0
  %2403 = vmatpush1.msra.mxu0 0.0
  %2404 = vmatprep.subr.mxu0 0.0
  %2405 = vmatpush1.msra.mxu0 0.0
  %2406 = vmatprep.subr.mxu0 0.0
  %2407 = vmatpush1.msra.mxu0 0.0
  %2408 = vmatprep.subr.mxu0 0.0
  %2409 = vmatpush1.msra.mxu0 0.0
  %2410 = vmatprep.subr.mxu0 0.0
  %2411 = vmatpush1.msra.mxu0 0.0
  %2412 = vmatprep.subr.mxu0 0.0
  %2413 = vmatpush1.msra.mxu0 0.0
  %2414 = vmatprep.subr.mxu0 0.0
  %2415 = vmatpush1.msra.mxu0 0.0
  %2416 = vmatprep.mubr.f32.mxu0 0.0
  %2417 = vmatmul.mubr.f32.gmra.mrb[0].mxu0 %v2279
  %v2418 = vpop.f32.mrb[0].mxu0
  %v2419 = vadd.f32 0.0, %v2418
  %v2420 = vpop.f32.mrb[0].mxu0
  %v2421 = vadd.f32 0.0, %v2420
  %2422 = vdwg.mxu0
  %v2423 = vmul.f32 %v2348, %v583
  %v2424 = vmul.f32 %v2350, %v587
  %v2425 = vmul.f32 %v2419, %v591
  %v2426 = vmul.f32 %v2421, %v595
  %v2427 = vadd.f32 %v2189, %v2423
  %v2428 = vadd.f32 %v2191, %v2424
  %v2429 = vadd.f32 %v2260, %v2425
  %v2430 = vadd.f32 %v2262, %v2426
  %2431 = vrot.lane.b32.xlu0 %v1950, 15
  %v2432 = vpop.permute.xlu0 %2431
  %2433 = vrot.lane.b32.xlu0 %v1951, 15
  %v2434 = vpop.permute.xlu0 %2433
  %2435 = vrot.lane.b32.xlu0 %v1952, 15
  %v2436 = vpop.permute.xlu0 %2435
  %2437 = vrot.lane.b32.xlu0 %v1953, 15
  %v2438 = vpop.permute.xlu0 %2437
  %v2439 = vsel %vm628, %v2436, %v2438
  %v2440 = vsel %vm628, %v2434, %v2436
  %v2441 = vsel %vm628, %v2432, %v2434
  %v2442 = vsel %vm628, %v2438, %v2432
  %s2443 = scalar_lea.vmem %s4, 16
  %v2444 = vld [vmem:[%s2443] sm:$0xff]
  %v2446 = vsel %vm1969, %v2444, 0
  %2448 = vmatprep.subr.mxu0 %v2441
  %2449 = vmatpush1.msra.mxu0 %v2442
  %2450 = vmatprep.subr.mxu0 0.0
  %2451 = vmatpush1.msra.mxu0 0.0
  %2452 = vmatprep.subr.mxu0 0.0
  %2453 = vmatpush1.msra.mxu0 0.0
  %2454 = vmatprep.subr.mxu0 0.0
  %2455 = vmatpush1.msra.mxu0 0.0
  %2456 = vmatprep.subr.mxu0 0.0
  %2457 = vmatpush1.msra.mxu0 0.0
  %2458 = vmatprep.subr.mxu0 0.0
  %2459 = vmatpush1.msra.mxu0 0.0
  %2460 = vmatprep.subr.mxu0 0.0
  %2461 = vmatpush1.msra.mxu0 0.0
  %2462 = vmatprep.subr.mxu0 0.0
  %2463 = vmatpush1.msra.mxu0 0.0
  %2464 = vmatprep.subr.mxu0 0.0
  %2465 = vmatpush1.msra.mxu0 0.0
  %2466 = vmatprep.subr.mxu0 0.0
  %2467 = vmatpush1.msra.mxu0 0.0
  %2468 = vmatprep.subr.mxu0 0.0
  %2469 = vmatpush1.msra.mxu0 0.0
  %2470 = vmatprep.subr.mxu0 0.0
  %2471 = vmatpush1.msra.mxu0 0.0
  %2472 = vmatprep.subr.mxu0 0.0
  %2473 = vmatpush1.msra.mxu0 0.0
  %2474 = vmatprep.subr.mxu0 0.0
  %2475 = vmatpush1.msra.mxu0 0.0
  %2476 = vmatprep.subr.mxu0 0.0
  %2477 = vmatpush1.msra.mxu0 0.0
  %2478 = vmatprep.subr.mxu0 0.0
  %2479 = vmatpush1.msra.mxu0 0.0
  %2480 = vmatprep.subr.mxu0 0.0
  %2481 = vmatpush1.msra.mxu0 0.0
  %2482 = vmatprep.subr.mxu0 0.0
  %2483 = vmatpush1.msra.mxu0 0.0
  %2484 = vmatprep.subr.mxu0 0.0
  %2485 = vmatpush1.msra.mxu0 0.0
  %2486 = vmatprep.subr.mxu0 0.0
  %2487 = vmatpush1.msra.mxu0 0.0
  %2488 = vmatprep.subr.mxu0 0.0
  %2489 = vmatpush1.msra.mxu0 0.0
  %2490 = vmatprep.subr.mxu0 0.0
  %2491 = vmatpush1.msra.mxu0 0.0
  %2492 = vmatprep.subr.mxu0 0.0
  %2493 = vmatpush1.msra.mxu0 0.0
  %2494 = vmatprep.subr.mxu0 0.0
  %2495 = vmatpush1.msra.mxu0 0.0
  %2496 = vmatprep.subr.mxu0 0.0
  %2497 = vmatpush1.msra.mxu0 0.0
  %2498 = vmatprep.subr.mxu0 0.0
  %2499 = vmatpush1.msra.mxu0 0.0
  %2500 = vmatprep.subr.mxu0 0.0
  %2501 = vmatpush1.msra.mxu0 0.0
  %2502 = vmatprep.subr.mxu0 0.0
  %2503 = vmatpush1.msra.mxu0 0.0
  %2504 = vmatprep.subr.mxu0 0.0
  %2505 = vmatpush1.msra.mxu0 0.0
  %2506 = vmatprep.subr.mxu0 0.0
  %2507 = vmatpush1.msra.mxu0 0.0
  %2508 = vmatprep.subr.mxu0 0.0
  %2509 = vmatpush1.msra.mxu0 0.0
  %2510 = vmatprep.subr.mxu0 0.0
  %2511 = vmatpush1.msra.mxu0 0.0
  %2512 = vmatprep.mubr.f32.mxu0 0.0
  %2513 = vmatmul.mubr.f32.gmra.mrb[0].mxu0 %v2446
  %v2514 = vpop.f32.mrb[0].mxu0
  %v2515 = vadd.f32 0.0, %v2514
  %v2516 = vpop.f32.mrb[0].mxu0
  %v2517 = vadd.f32 0.0, %v2516
  %2518 = vdwg.mxu0
  %2519 = vmatprep.subr.mxu0 %v2439
  %2520 = vmatpush1.msra.mxu0 %v2440
  %2521 = vmatprep.subr.mxu0 0.0
  %2522 = vmatpush1.msra.mxu0 0.0
  %2523 = vmatprep.subr.mxu0 0.0
  %2524 = vmatpush1.msra.mxu0 0.0
  %2525 = vmatprep.subr.mxu0 0.0
  %2526 = vmatpush1.msra.mxu0 0.0
  %2527 = vmatprep.subr.mxu0 0.0
  %2528 = vmatpush1.msra.mxu0 0.0
  %2529 = vmatprep.subr.mxu0 0.0
  %2530 = vmatpush1.msra.mxu0 0.0
  %2531 = vmatprep.subr.mxu0 0.0
  %2532 = vmatpush1.msra.mxu0 0.0
  %2533 = vmatprep.subr.mxu0 0.0
  %2534 = vmatpush1.msra.mxu0 0.0
  %2535 = vmatprep.subr.mxu0 0.0
  %2536 = vmatpush1.msra.mxu0 0.0
  %2537 = vmatprep.subr.mxu0 0.0
  %2538 = vmatpush1.msra.mxu0 0.0
  %2539 = vmatprep.subr.mxu0 0.0
  %2540 = vmatpush1.msra.mxu0 0.0
  %2541 = vmatprep.subr.mxu0 0.0
  %2542 = vmatpush1.msra.mxu0 0.0
  %2543 = vmatprep.subr.mxu0 0.0
  %2544 = vmatpush1.msra.mxu0 0.0
  %2545 = vmatprep.subr.mxu0 0.0
  %2546 = vmatpush1.msra.mxu0 0.0
  %2547 = vmatprep.subr.mxu0 0.0
  %2548 = vmatpush1.msra.mxu0 0.0
  %2549 = vmatprep.subr.mxu0 0.0
  %2550 = vmatpush1.msra.mxu0 0.0
  %2551 = vmatprep.subr.mxu0 0.0
  %2552 = vmatpush1.msra.mxu0 0.0
  %2553 = vmatprep.subr.mxu0 0.0
  %2554 = vmatpush1.msra.mxu0 0.0
  %2555 = vmatprep.subr.mxu0 0.0
  %2556 = vmatpush1.msra.mxu0 0.0
  %2557 = vmatprep.subr.mxu0 0.0
  %2558 = vmatpush1.msra.mxu0 0.0
  %2559 = vmatprep.subr.mxu0 0.0
  %2560 = vmatpush1.msra.mxu0 0.0
  %2561 = vmatprep.subr.mxu0 0.0
  %2562 = vmatpush1.msra.mxu0 0.0
  %2563 = vmatprep.subr.mxu0 0.0
  %2564 = vmatpush1.msra.mxu0 0.0
  %2565 = vmatprep.subr.mxu0 0.0
  %2566 = vmatpush1.msra.mxu0 0.0
  %2567 = vmatprep.subr.mxu0 0.0
  %2568 = vmatpush1.msra.mxu0 0.0
  %2569 = vmatprep.subr.mxu0 0.0
  %2570 = vmatpush1.msra.mxu0 0.0
  %2571 = vmatprep.subr.mxu0 0.0
  %2572 = vmatpush1.msra.mxu0 0.0
  %2573 = vmatprep.subr.mxu0 0.0
  %2574 = vmatpush1.msra.mxu0 0.0
  %2575 = vmatprep.subr.mxu0 0.0
  %2576 = vmatpush1.msra.mxu0 0.0
  %2577 = vmatprep.subr.mxu0 0.0
  %2578 = vmatpush1.msra.mxu0 0.0
  %2579 = vmatprep.subr.mxu0 0.0
  %2580 = vmatpush1.msra.mxu0 0.0
  %2581 = vmatprep.subr.mxu0 0.0
  %2582 = vmatpush1.msra.mxu0 0.0
  %2583 = vmatprep.mubr.f32.mxu0 0.0
  %2584 = vmatmul.mubr.f32.gmra.mrb[0].mxu0 %v2446
  %v2585 = vpop.f32.mrb[0].mxu0
  %v2586 = vadd.f32 0.0, %v2585
  %v2587 = vpop.f32.mrb[0].mxu0
  %v2588 = vadd.f32 0.0, %v2587
  %2589 = vdwg.mxu0
  %v2590 = vmul.f32 %v2515, %v791
  %v2591 = vmul.f32 %v2517, %v795
  %v2592 = vmul.f32 %v2586, %v799
  %v2593 = vmul.f32 %v2588, %v803
  %v2594 = vadd.f32 %v2427, %v2590
  %v2595 = vadd.f32 %v2428, %v2591
  %v2596 = vadd.f32 %v2429, %v2592
  %v2597 = vadd.f32 %v2430, %v2593
  %2598 = vrot.lane.b32.xlu0 %v1950, 1
  %v2599 = vpop.permute.xlu0 %2598
  %2600 = vrot.lane.b32.xlu0 %v1951, 1
  %v2601 = vpop.permute.xlu0 %2600
  %2602 = vrot.lane.b32.xlu0 %v1952, 1
  %v2603 = vpop.permute.xlu0 %2602
  %2604 = vrot.lane.b32.xlu0 %v1953, 1
  %v2605 = vpop.permute.xlu0 %2604
  %v2606 = vsel %vm836, %v2603, %v2605
  %v2607 = vsel %vm836, %v2601, %v2603
  %v2608 = vsel %vm836, %v2599, %v2601
  %v2609 = vsel %vm836, %v2605, %v2599
  %s2610 = scalar_lea.vmem %s4, 24
  %v2611 = vld [vmem:[%s2610] sm:$0xff]
  %v2613 = vsel %vm1969, %v2611, 0
  %2615 = vmatprep.subr.mxu0 %v2608
  %2616 = vmatpush1.msra.mxu0 %v2609
  %2617 = vmatprep.subr.mxu0 0.0
  %2618 = vmatpush1.msra.mxu0 0.0
  %2619 = vmatprep.subr.mxu0 0.0
  %2620 = vmatpush1.msra.mxu0 0.0
  %2621 = vmatprep.subr.mxu0 0.0
  %2622 = vmatpush1.msra.mxu0 0.0
  %2623 = vmatprep.subr.mxu0 0.0
  %2624 = vmatpush1.msra.mxu0 0.0
  %2625 = vmatprep.subr.mxu0 0.0
  %2626 = vmatpush1.msra.mxu0 0.0
  %2627 = vmatprep.subr.mxu0 0.0
  %2628 = vmatpush1.msra.mxu0 0.0
  %2629 = vmatprep.subr.mxu0 0.0
  %2630 = vmatpush1.msra.mxu0 0.0
  %2631 = vmatprep.subr.mxu0 0.0
  %2632 = vmatpush1.msra.mxu0 0.0
  %2633 = vmatprep.subr.mxu0 0.0
  %2634 = vmatpush1.msra.mxu0 0.0
  %2635 = vmatprep.subr.mxu0 0.0
  %2636 = vmatpush1.msra.mxu0 0.0
  %2637 = vmatprep.subr.mxu0 0.0
  %2638 = vmatpush1.msra.mxu0 0.0
  %2639 = vmatprep.subr.mxu0 0.0
  %2640 = vmatpush1.msra.mxu0 0.0
  %2641 = vmatprep.subr.mxu0 0.0
  %2642 = vmatpush1.msra.mxu0 0.0
  %2643 = vmatprep.subr.mxu0 0.0
  %2644 = vmatpush1.msra.mxu0 0.0
  %2645 = vmatprep.subr.mxu0 0.0
  %2646 = vmatpush1.msra.mxu0 0.0
  %2647 = vmatprep.subr.mxu0 0.0
  %2648 = vmatpush1.msra.mxu0 0.0
  %2649 = vmatprep.subr.mxu0 0.0
  %2650 = vmatpush1.msra.mxu0 0.0
  %2651 = vmatprep.subr.mxu0 0.0
  %2652 = vmatpush1.msra.mxu0 0.0
  %2653 = vmatprep.subr.mxu0 0.0
  %2654 = vmatpush1.msra.mxu0 0.0
  %2655 = vmatprep.subr.mxu0 0.0
  %2656 = vmatpush1.msra.mxu0 0.0
  %2657 = vmatprep.subr.mxu0 0.0
  %2658 = vmatpush1.msra.mxu0 0.0
  %2659 = vmatprep.subr.mxu0 0.0
  %2660 = vmatpush1.msra.mxu0 0.0
  %2661 = vmatprep.subr.mxu0 0.0
  %2662 = vmatpush1.msra.mxu0 0.0
  %2663 = vmatprep.subr.mxu0 0.0
  %2664 = vmatpush1.msra.mxu0 0.0
  %2665 = vmatprep.subr.mxu0 0.0
  %2666 = vmatpush1.msra.mxu0 0.0
  %2667 = vmatprep.subr.mxu0 0.0
  %2668 = vmatpush1.msra.mxu0 0.0
  %2669 = vmatprep.subr.mxu0 0.0
  %2670 = vmatpush1.msra.mxu0 0.0
  %2671 = vmatprep.subr.mxu0 0.0
  %2672 = vmatpush1.msra.mxu0 0.0
  %2673 = vmatprep.subr.mxu0 0.0
  %2674 = vmatpush1.msra.mxu0 0.0
  %2675 = vmatprep.subr.mxu0 0.0
  %2676 = vmatpush1.msra.mxu0 0.0
  %2677 = vmatprep.subr.mxu0 0.0
  %2678 = vmatpush1.msra.mxu0 0.0
  %2679 = vmatprep.mubr.f32.mxu0 0.0
  %2680 = vmatmul.mubr.f32.gmra.mrb[0].mxu0 %v2613
  %v2681 = vpop.f32.mrb[0].mxu0
  %v2682 = vadd.f32 0.0, %v2681
  %v2683 = vpop.f32.mrb[0].mxu0
  %v2684 = vadd.f32 0.0, %v2683
  %2685 = vdwg.mxu0
  %2686 = vmatprep.subr.mxu0 %v2606
  %2687 = vmatpush1.msra.mxu0 %v2607
  %2688 = vmatprep.subr.mxu0 0.0
  %2689 = vmatpush1.msra.mxu0 0.0
  %2690 = vmatprep.subr.mxu0 0.0
  %2691 = vmatpush1.msra.mxu0 0.0
  %2692 = vmatprep.subr.mxu0 0.0
  %2693 = vmatpush1.msra.mxu0 0.0
  %2694 = vmatprep.subr.mxu0 0.0
  %2695 = vmatpush1.msra.mxu0 0.0
  %2696 = vmatprep.subr.mxu0 0.0
  %2697 = vmatpush1.msra.mxu0 0.0
  %2698 = vmatprep.subr.mxu0 0.0
  %2699 = vmatpush1.msra.mxu0 0.0
  %2700 = vmatprep.subr.mxu0 0.0
  %2701 = vmatpush1.msra.mxu0 0.0
  %2702 = vmatprep.subr.mxu0 0.0
  %2703 = vmatpush1.msra.mxu0 0.0
  %2704 = vmatprep.subr.mxu0 0.0
  %2705 = vmatpush1.msra.mxu0 0.0
  %2706 = vmatprep.subr.mxu0 0.0
  %2707 = vmatpush1.msra.mxu0 0.0
  %2708 = vmatprep.subr.mxu0 0.0
  %2709 = vmatpush1.msra.mxu0 0.0
  %2710 = vmatprep.subr.mxu0 0.0
  %2711 = vmatpush1.msra.mxu0 0.0
  %2712 = vmatprep.subr.mxu0 0.0
  %2713 = vmatpush1.msra.mxu0 0.0
  %2714 = vmatprep.subr.mxu0 0.0
  %2715 = vmatpush1.msra.mxu0 0.0
  %2716 = vmatprep.subr.mxu0 0.0
  %2717 = vmatpush1.msra.mxu0 0.0
  %2718 = vmatprep.subr.mxu0 0.0
  %2719 = vmatpush1.msra.mxu0 0.0
  %2720 = vmatprep.subr.mxu0 0.0
  %2721 = vmatpush1.msra.mxu0 0.0
  %2722 = vmatprep.subr.mxu0 0.0
  %2723 = vmatpush1.msra.mxu0 0.0
  %2724 = vmatprep.subr.mxu0 0.0
  %2725 = vmatpush1.msra.mxu0 0.0
  %2726 = vmatprep.subr.mxu0 0.0
  %2727 = vmatpush1.msra.mxu0 0.0
  %2728 = vmatprep.subr.mxu0 0.0
  %2729 = vmatpush1.msra.mxu0 0.0
  %2730 = vmatprep.subr.mxu0 0.0
  %2731 = vmatpush1.msra.mxu0 0.0
  %2732 = vmatprep.subr.mxu0 0.0
  %2733 = vmatpush1.msra.mxu0 0.0
  %2734 = vmatprep.subr.mxu0 0.0
  %2735 = vmatpush1.msra.mxu0 0.0
  %2736 = vmatprep.subr.mxu0 0.0
  %2737 = vmatpush1.msra.mxu0 0.0
  %2738 = vmatprep.subr.mxu0 0.0
  %2739 = vmatpush1.msra.mxu0 0.0
  %2740 = vmatprep.subr.mxu0 0.0
  %2741 = vmatpush1.msra.mxu0 0.0
  %2742 = vmatprep.subr.mxu0 0.0
  %2743 = vmatpush1.msra.mxu0 0.0
  %2744 = vmatprep.subr.mxu0 0.0
  %2745 = vmatpush1.msra.mxu0 0.0
  %2746 = vmatprep.subr.mxu0 0.0
  %2747 = vmatpush1.msra.mxu0 0.0
  %2748 = vmatprep.subr.mxu0 0.0
  %2749 = vmatpush1.msra.mxu0 0.0
  %2750 = vmatprep.mubr.f32.mxu0 0.0
  %2751 = vmatmul.mubr.f32.gmra.mrb[0].mxu0 %v2613
  %v2752 = vpop.f32.mrb[0].mxu0
  %v2753 = vadd.f32 0.0, %v2752
  %v2754 = vpop.f32.mrb[0].mxu0
  %v2755 = vadd.f32 0.0, %v2754
  %2756 = vdwg.mxu0
  %v2757 = vmul.f32 %v2682, %v999
  %v2758 = vmul.f32 %v2684, %v1003
  %v2759 = vmul.f32 %v2753, %v1007
  %v2760 = vmul.f32 %v2755, %v1011
  %v2761 = vadd.f32 %v2594, %v2757
  %v2762 = vadd.f32 %v2595, %v2758
  %v2763 = vadd.f32 %v2596, %v2759
  %v2764 = vadd.f32 %v2597, %v2760
  %2765 = vrot.lane.b32.xlu0 %v1950, 127
  %v2766 = vpop.permute.xlu0 %2765
  %2767 = vrot.lane.b32.xlu0 %v1951, 127
  %v2768 = vpop.permute.xlu0 %2767
  %2769 = vrot.lane.b32.xlu0 %v1952, 127
  %v2770 = vpop.permute.xlu0 %2769
  %2771 = vrot.lane.b32.xlu0 %v1953, 127
  %v2772 = vpop.permute.xlu0 %2771
  %v2773 = vsel %vm1044, %v2770, %v2772
  %v2774 = vsel %vm1044, %v2768, %v2770
  %v2775 = vsel %vm1044, %v2766, %v2768
  %v2776 = vsel %vm1044, %v2772, %v2766
  %s2777 = scalar_lea.vmem %s4, 40
  %v2778 = vld [vmem:[%s2777] sm:$0xff]
  %v2780 = vsel %vm1969, %v2778, 0
  %2782 = vmatprep.subr.mxu0 %v2774
  %2783 = vmatpush1.msra.mxu0 %v2775
  %2784 = vmatprep.subr.mxu0 0.0
  %2785 = vmatpush1.msra.mxu0 0.0
  %2786 = vmatprep.subr.mxu0 0.0
  %2787 = vmatpush1.msra.mxu0 0.0
  %2788 = vmatprep.subr.mxu0 0.0
  %2789 = vmatpush1.msra.mxu0 0.0
  %2790 = vmatprep.subr.mxu0 0.0
  %2791 = vmatpush1.msra.mxu0 0.0
  %2792 = vmatprep.subr.mxu0 0.0
  %2793 = vmatpush1.msra.mxu0 0.0
  %2794 = vmatprep.subr.mxu0 0.0
  %2795 = vmatpush1.msra.mxu0 0.0
  %2796 = vmatprep.subr.mxu0 0.0
  %2797 = vmatpush1.msra.mxu0 0.0
  %2798 = vmatprep.subr.mxu0 0.0
  %2799 = vmatpush1.msra.mxu0 0.0
  %2800 = vmatprep.subr.mxu0 0.0
  %2801 = vmatpush1.msra.mxu0 0.0
  %2802 = vmatprep.subr.mxu0 0.0
  %2803 = vmatpush1.msra.mxu0 0.0
  %2804 = vmatprep.subr.mxu0 0.0
  %2805 = vmatpush1.msra.mxu0 0.0
  %2806 = vmatprep.subr.mxu0 0.0
  %2807 = vmatpush1.msra.mxu0 0.0
  %2808 = vmatprep.subr.mxu0 0.0
  %2809 = vmatpush1.msra.mxu0 0.0
  %2810 = vmatprep.subr.mxu0 0.0
  %2811 = vmatpush1.msra.mxu0 0.0
  %2812 = vmatprep.subr.mxu0 0.0
  %2813 = vmatpush1.msra.mxu0 0.0
  %2814 = vmatprep.subr.mxu0 0.0
  %2815 = vmatpush1.msra.mxu0 0.0
  %2816 = vmatprep.subr.mxu0 0.0
  %2817 = vmatpush1.msra.mxu0 0.0
  %2818 = vmatprep.subr.mxu0 0.0
  %2819 = vmatpush1.msra.mxu0 0.0
  %2820 = vmatprep.subr.mxu0 0.0
  %2821 = vmatpush1.msra.mxu0 0.0
  %2822 = vmatprep.subr.mxu0 0.0
  %2823 = vmatpush1.msra.mxu0 0.0
  %2824 = vmatprep.subr.mxu0 0.0
  %2825 = vmatpush1.msra.mxu0 0.0
  %2826 = vmatprep.subr.mxu0 0.0
  %2827 = vmatpush1.msra.mxu0 0.0
  %2828 = vmatprep.subr.mxu0 0.0
  %2829 = vmatpush1.msra.mxu0 0.0
  %2830 = vmatprep.subr.mxu0 0.0
  %2831 = vmatpush1.msra.mxu0 0.0
  %2832 = vmatprep.subr.mxu0 0.0
  %2833 = vmatpush1.msra.mxu0 0.0
  %2834 = vmatprep.subr.mxu0 0.0
  %2835 = vmatpush1.msra.mxu0 0.0
  %2836 = vmatprep.subr.mxu0 0.0
  %2837 = vmatpush1.msra.mxu0 0.0
  %2838 = vmatprep.subr.mxu0 0.0
  %2839 = vmatpush1.msra.mxu0 0.0
  %2840 = vmatprep.subr.mxu0 0.0
  %2841 = vmatpush1.msra.mxu0 0.0
  %2842 = vmatprep.subr.mxu0 0.0
  %2843 = vmatpush1.msra.mxu0 0.0
  %2844 = vmatprep.subr.mxu0 0.0
  %2845 = vmatpush1.msra.mxu0 0.0
  %2846 = vmatprep.mubr.f32.mxu0 0.0
  %2847 = vmatmul.mubr.f32.gmra.mrb[0].mxu0 %v2780
  %v2848 = vpop.f32.mrb[0].mxu0
  %v2849 = vadd.f32 0.0, %v2848
  %v2850 = vpop.f32.mrb[0].mxu0
  %v2851 = vadd.f32 0.0, %v2850
  %2852 = vdwg.mxu0
  %2853 = vmatprep.subr.mxu0 %v2776
  %2854 = vmatpush1.msra.mxu0 %v2773
  %2855 = vmatprep.subr.mxu0 0.0
  %2856 = vmatpush1.msra.mxu0 0.0
  %2857 = vmatprep.subr.mxu0 0.0
  %2858 = vmatpush1.msra.mxu0 0.0
  %2859 = vmatprep.subr.mxu0 0.0
  %2860 = vmatpush1.msra.mxu0 0.0
  %2861 = vmatprep.subr.mxu0 0.0
  %2862 = vmatpush1.msra.mxu0 0.0
  %2863 = vmatprep.subr.mxu0 0.0
  %2864 = vmatpush1.msra.mxu0 0.0
  %2865 = vmatprep.subr.mxu0 0.0
  %2866 = vmatpush1.msra.mxu0 0.0
  %2867 = vmatprep.subr.mxu0 0.0
  %2868 = vmatpush1.msra.mxu0 0.0
  %2869 = vmatprep.subr.mxu0 0.0
  %2870 = vmatpush1.msra.mxu0 0.0
  %2871 = vmatprep.subr.mxu0 0.0
  %2872 = vmatpush1.msra.mxu0 0.0
  %2873 = vmatprep.subr.mxu0 0.0
  %2874 = vmatpush1.msra.mxu0 0.0
  %2875 = vmatprep.subr.mxu0 0.0
  %2876 = vmatpush1.msra.mxu0 0.0
  %2877 = vmatprep.subr.mxu0 0.0
  %2878 = vmatpush1.msra.mxu0 0.0
  %2879 = vmatprep.subr.mxu0 0.0
  %2880 = vmatpush1.msra.mxu0 0.0
  %2881 = vmatprep.subr.mxu0 0.0
  %2882 = vmatpush1.msra.mxu0 0.0
  %2883 = vmatprep.subr.mxu0 0.0
  %2884 = vmatpush1.msra.mxu0 0.0
  %2885 = vmatprep.subr.mxu0 0.0
  %2886 = vmatpush1.msra.mxu0 0.0
  %2887 = vmatprep.subr.mxu0 0.0
  %2888 = vmatpush1.msra.mxu0 0.0
  %2889 = vmatprep.subr.mxu0 0.0
  %2890 = vmatpush1.msra.mxu0 0.0
  %2891 = vmatprep.subr.mxu0 0.0
  %2892 = vmatpush1.msra.mxu0 0.0
  %2893 = vmatprep.subr.mxu0 0.0
  %2894 = vmatpush1.msra.mxu0 0.0
  %2895 = vmatprep.subr.mxu0 0.0
  %2896 = vmatpush1.msra.mxu0 0.0
  %2897 = vmatprep.subr.mxu0 0.0
  %2898 = vmatpush1.msra.mxu0 0.0
  %2899 = vmatprep.subr.mxu0 0.0
  %2900 = vmatpush1.msra.mxu0 0.0
  %2901 = vmatprep.subr.mxu0 0.0
  %2902 = vmatpush1.msra.mxu0 0.0
  %2903 = vmatprep.subr.mxu0 0.0
  %2904 = vmatpush1.msra.mxu0 0.0
  %2905 = vmatprep.subr.mxu0 0.0
  %2906 = vmatpush1.msra.mxu0 0.0
  %2907 = vmatprep.subr.mxu0 0.0
  %2908 = vmatpush1.msra.mxu0 0.0
  %2909 = vmatprep.subr.mxu0 0.0
  %2910 = vmatpush1.msra.mxu0 0.0
  %2911 = vmatprep.subr.mxu0 0.0
  %2912 = vmatpush1.msra.mxu0 0.0
  %2913 = vmatprep.subr.mxu0 0.0
  %2914 = vmatpush1.msra.mxu0 0.0
  %2915 = vmatprep.subr.mxu0 0.0
  %2916 = vmatpush1.msra.mxu0 0.0
  %2917 = vmatprep.mubr.f32.mxu0 0.0
  %2918 = vmatmul.mubr.f32.gmra.mrb[0].mxu0 %v2780
  %v2919 = vpop.f32.mrb[0].mxu0
  %v2920 = vadd.f32 0.0, %v2919
  %v2921 = vpop.f32.mrb[0].mxu0
  %v2922 = vadd.f32 0.0, %v2921
  %2923 = vdwg.mxu0
  %v2924 = vmul.f32 %v2849, %v1207
  %v2925 = vmul.f32 %v2851, %v1211
  %v2926 = vmul.f32 %v2920, %v1215
  %v2927 = vmul.f32 %v2922, %v1219
  %v2928 = vadd.f32 %v2761, %v2924
  %v2929 = vadd.f32 %v2762, %v2925
  %v2930 = vadd.f32 %v2763, %v2926
  %v2931 = vadd.f32 %v2764, %v2927
  %2932 = vrot.lane.b32.xlu0 %v1950, 113
  %v2933 = vpop.permute.xlu0 %2932
  %2934 = vrot.lane.b32.xlu0 %v1951, 113
  %v2935 = vpop.permute.xlu0 %2934
  %2936 = vrot.lane.b32.xlu0 %v1952, 113
  %v2937 = vpop.permute.xlu0 %2936
  %2938 = vrot.lane.b32.xlu0 %v1953, 113
  %v2939 = vpop.permute.xlu0 %2938
  %v2940 = vsel %vm1252, %v2937, %v2939
  %v2941 = vsel %vm1252, %v2935, %v2937
  %v2942 = vsel %vm1252, %v2933, %v2935
  %v2943 = vsel %vm1252, %v2939, %v2933
  %s2944 = scalar_lea.vmem %s4, 48
  %v2945 = vld [vmem:[%s2944] sm:$0xff]
  %v2947 = vsel %vm1969, %v2945, 0
  %2949 = vmatprep.subr.mxu0 %v2941
  %2950 = vmatpush1.msra.mxu0 %v2942
  %2951 = vmatprep.subr.mxu0 0.0
  %2952 = vmatpush1.msra.mxu0 0.0
  %2953 = vmatprep.subr.mxu0 0.0
  %2954 = vmatpush1.msra.mxu0 0.0
  %2955 = vmatprep.subr.mxu0 0.0
  %2956 = vmatpush1.msra.mxu0 0.0
  %2957 = vmatprep.subr.mxu0 0.0
  %2958 = vmatpush1.msra.mxu0 0.0
  %2959 = vmatprep.subr.mxu0 0.0
  %2960 = vmatpush1.msra.mxu0 0.0
  %2961 = vmatprep.subr.mxu0 0.0
  %2962 = vmatpush1.msra.mxu0 0.0
  %2963 = vmatprep.subr.mxu0 0.0
  %2964 = vmatpush1.msra.mxu0 0.0
  %2965 = vmatprep.subr.mxu0 0.0
  %2966 = vmatpush1.msra.mxu0 0.0
  %2967 = vmatprep.subr.mxu0 0.0
  %2968 = vmatpush1.msra.mxu0 0.0
  %2969 = vmatprep.subr.mxu0 0.0
  %2970 = vmatpush1.msra.mxu0 0.0
  %2971 = vmatprep.subr.mxu0 0.0
  %2972 = vmatpush1.msra.mxu0 0.0
  %2973 = vmatprep.subr.mxu0 0.0
  %2974 = vmatpush1.msra.mxu0 0.0
  %2975 = vmatprep.subr.mxu0 0.0
  %2976 = vmatpush1.msra.mxu0 0.0
  %2977 = vmatprep.subr.mxu0 0.0
  %2978 = vmatpush1.msra.mxu0 0.0
  %2979 = vmatprep.subr.mxu0 0.0
  %2980 = vmatpush1.msra.mxu0 0.0
  %2981 = vmatprep.subr.mxu0 0.0
  %2982 = vmatpush1.msra.mxu0 0.0
  %2983 = vmatprep.subr.mxu0 0.0
  %2984 = vmatpush1.msra.mxu0 0.0
  %2985 = vmatprep.subr.mxu0 0.0
  %2986 = vmatpush1.msra.mxu0 0.0
  %2987 = vmatprep.subr.mxu0 0.0
  %2988 = vmatpush1.msra.mxu0 0.0
  %2989 = vmatprep.subr.mxu0 0.0
  %2990 = vmatpush1.msra.mxu0 0.0
  %2991 = vmatprep.subr.mxu0 0.0
  %2992 = vmatpush1.msra.mxu0 0.0
  %2993 = vmatprep.subr.mxu0 0.0
  %2994 = vmatpush1.msra.mxu0 0.0
  %2995 = vmatprep.subr.mxu0 0.0
  %2996 = vmatpush1.msra.mxu0 0.0
  %2997 = vmatprep.subr.mxu0 0.0
  %2998 = vmatpush1.msra.mxu0 0.0
  %2999 = vmatprep.subr.mxu0 0.0
  %3000 = vmatpush1.msra.mxu0 0.0
  %3001 = vmatprep.subr.mxu0 0.0
  %3002 = vmatpush1.msra.mxu0 0.0
  %3003 = vmatprep.subr.mxu0 0.0
  %3004 = vmatpush1.msra.mxu0 0.0
  %3005 = vmatprep.subr.mxu0 0.0
  %3006 = vmatpush1.msra.mxu0 0.0
  %3007 = vmatprep.subr.mxu0 0.0
  %3008 = vmatpush1.msra.mxu0 0.0
  %3009 = vmatprep.subr.mxu0 0.0
  %3010 = vmatpush1.msra.mxu0 0.0
  %3011 = vmatprep.subr.mxu0 0.0
  %3012 = vmatpush1.msra.mxu0 0.0
  %3013 = vmatprep.mubr.f32.mxu0 0.0
  %3014 = vmatmul.mubr.f32.gmra.mrb[0].mxu0 %v2947
  %v3015 = vpop.f32.mrb[0].mxu0
  %v3016 = vadd.f32 0.0, %v3015
  %v3017 = vpop.f32.mrb[0].mxu0
  %v3018 = vadd.f32 0.0, %v3017
  %3019 = vdwg.mxu0
  %3020 = vmatprep.subr.mxu0 %v2943
  %3021 = vmatpush1.msra.mxu0 %v2940
  %3022 = vmatprep.subr.mxu0 0.0
  %3023 = vmatpush1.msra.mxu0 0.0
  %3024 = vmatprep.subr.mxu0 0.0
  %3025 = vmatpush1.msra.mxu0 0.0
  %3026 = vmatprep.subr.mxu0 0.0
  %3027 = vmatpush1.msra.mxu0 0.0
  %3028 = vmatprep.subr.mxu0 0.0
  %3029 = vmatpush1.msra.mxu0 0.0
  %3030 = vmatprep.subr.mxu0 0.0
  %3031 = vmatpush1.msra.mxu0 0.0
  %3032 = vmatprep.subr.mxu0 0.0
  %3033 = vmatpush1.msra.mxu0 0.0
  %3034 = vmatprep.subr.mxu0 0.0
  %3035 = vmatpush1.msra.mxu0 0.0
  %3036 = vmatprep.subr.mxu0 0.0
  %3037 = vmatpush1.msra.mxu0 0.0
  %3038 = vmatprep.subr.mxu0 0.0
  %3039 = vmatpush1.msra.mxu0 0.0
  %3040 = vmatprep.subr.mxu0 0.0
  %3041 = vmatpush1.msra.mxu0 0.0
  %3042 = vmatprep.subr.mxu0 0.0
  %3043 = vmatpush1.msra.mxu0 0.0
  %3044 = vmatprep.subr.mxu0 0.0
  %3045 = vmatpush1.msra.mxu0 0.0
  %3046 = vmatprep.subr.mxu0 0.0
  %3047 = vmatpush1.msra.mxu0 0.0
  %3048 = vmatprep.subr.mxu0 0.0
  %3049 = vmatpush1.msra.mxu0 0.0
  %3050 = vmatprep.subr.mxu0 0.0
  %3051 = vmatpush1.msra.mxu0 0.0
  %3052 = vmatprep.subr.mxu0 0.0
  %3053 = vmatpush1.msra.mxu0 0.0
  %3054 = vmatprep.subr.mxu0 0.0
  %3055 = vmatpush1.msra.mxu0 0.0
  %3056 = vmatprep.subr.mxu0 0.0
  %3057 = vmatpush1.msra.mxu0 0.0
  %3058 = vmatprep.subr.mxu0 0.0
  %3059 = vmatpush1.msra.mxu0 0.0
  %3060 = vmatprep.subr.mxu0 0.0
  %3061 = vmatpush1.msra.mxu0 0.0
  %3062 = vmatprep.subr.mxu0 0.0
  %3063 = vmatpush1.msra.mxu0 0.0
  %3064 = vmatprep.subr.mxu0 0.0
  %3065 = vmatpush1.msra.mxu0 0.0
  %3066 = vmatprep.subr.mxu0 0.0
  %3067 = vmatpush1.msra.mxu0 0.0
  %3068 = vmatprep.subr.mxu0 0.0
  %3069 = vmatpush1.msra.mxu0 0.0
  %3070 = vmatprep.subr.mxu0 0.0
  %3071 = vmatpush1.msra.mxu0 0.0
  %3072 = vmatprep.subr.mxu0 0.0
  %3073 = vmatpush1.msra.mxu0 0.0
  %3074 = vmatprep.subr.mxu0 0.0
  %3075 = vmatpush1.msra.mxu0 0.0
  %3076 = vmatprep.subr.mxu0 0.0
  %3077 = vmatpush1.msra.mxu0 0.0
  %3078 = vmatprep.subr.mxu0 0.0
  %3079 = vmatpush1.msra.mxu0 0.0
  %3080 = vmatprep.subr.mxu0 0.0
  %3081 = vmatpush1.msra.mxu0 0.0
  %3082 = vmatprep.subr.mxu0 0.0
  %3083 = vmatpush1.msra.mxu0 0.0
  %3084 = vmatprep.mubr.f32.mxu0 0.0
  %3085 = vmatmul.mubr.f32.gmra.mrb[0].mxu0 %v2947
  %v3086 = vpop.f32.mrb[0].mxu0
  %v3087 = vadd.f32 0.0, %v3086
  %v3088 = vpop.f32.mrb[0].mxu0
  %v3089 = vadd.f32 0.0, %v3088
  %3090 = vdwg.mxu0
  %v3091 = vmul.f32 %v3016, %v1415
  %v3092 = vmul.f32 %v3018, %v1419
  %v3093 = vmul.f32 %v3087, %v1423
  %v3094 = vmul.f32 %v3089, %v1427
  %v3095 = vadd.f32 %v2928, %v3091
  %v3096 = vadd.f32 %v2929, %v3092
  %v3097 = vadd.f32 %v2930, %v3093
  %v3098 = vadd.f32 %v2931, %v3094
  %3099 = vrot.lane.b32.xlu0 %v1950, 112
  %v3100 = vpop.permute.xlu0 %3099
  %3101 = vrot.lane.b32.xlu0 %v1951, 112
  %v3102 = vpop.permute.xlu0 %3101
  %3103 = vrot.lane.b32.xlu0 %v1952, 112
  %v3104 = vpop.permute.xlu0 %3103
  %3105 = vrot.lane.b32.xlu0 %v1953, 112
  %v3106 = vpop.permute.xlu0 %3105
  %v3107 = vsel %vm1460, %v3104, %v3106
  %v3108 = vsel %vm1460, %v3102, %v3104
  %v3109 = vsel %vm1460, %v3100, %v3102
  %v3110 = vsel %vm1460, %v3106, %v3100
  %s3111 = scalar_lea.vmem %s4, 56
  %v3112 = vld [vmem:[%s3111] sm:$0xff]
  %v3114 = vsel %vm1969, %v3112, 0
  %3116 = vmatprep.subr.mxu0 %v3108
  %3117 = vmatpush1.msra.mxu0 %v3109
  %3118 = vmatprep.subr.mxu0 0.0
  %3119 = vmatpush1.msra.mxu0 0.0
  %3120 = vmatprep.subr.mxu0 0.0
  %3121 = vmatpush1.msra.mxu0 0.0
  %3122 = vmatprep.subr.mxu0 0.0
  %3123 = vmatpush1.msra.mxu0 0.0
  %3124 = vmatprep.subr.mxu0 0.0
  %3125 = vmatpush1.msra.mxu0 0.0
  %3126 = vmatprep.subr.mxu0 0.0
  %3127 = vmatpush1.msra.mxu0 0.0
  %3128 = vmatprep.subr.mxu0 0.0
  %3129 = vmatpush1.msra.mxu0 0.0
  %3130 = vmatprep.subr.mxu0 0.0
  %3131 = vmatpush1.msra.mxu0 0.0
  %3132 = vmatprep.subr.mxu0 0.0
  %3133 = vmatpush1.msra.mxu0 0.0
  %3134 = vmatprep.subr.mxu0 0.0
  %3135 = vmatpush1.msra.mxu0 0.0
  %3136 = vmatprep.subr.mxu0 0.0
  %3137 = vmatpush1.msra.mxu0 0.0
  %3138 = vmatprep.subr.mxu0 0.0
  %3139 = vmatpush1.msra.mxu0 0.0
  %3140 = vmatprep.subr.mxu0 0.0
  %3141 = vmatpush1.msra.mxu0 0.0
  %3142 = vmatprep.subr.mxu0 0.0
  %3143 = vmatpush1.msra.mxu0 0.0
  %3144 = vmatprep.subr.mxu0 0.0
  %3145 = vmatpush1.msra.mxu0 0.0
  %3146 = vmatprep.subr.mxu0 0.0
  %3147 = vmatpush1.msra.mxu0 0.0
  %3148 = vmatprep.subr.mxu0 0.0
  %3149 = vmatpush1.msra.mxu0 0.0
  %3150 = vmatprep.subr.mxu0 0.0
  %3151 = vmatpush1.msra.mxu0 0.0
  %3152 = vmatprep.subr.mxu0 0.0
  %3153 = vmatpush1.msra.mxu0 0.0
  %3154 = vmatprep.subr.mxu0 0.0
  %3155 = vmatpush1.msra.mxu0 0.0
  %3156 = vmatprep.subr.mxu0 0.0
  %3157 = vmatpush1.msra.mxu0 0.0
  %3158 = vmatprep.subr.mxu0 0.0
  %3159 = vmatpush1.msra.mxu0 0.0
  %3160 = vmatprep.subr.mxu0 0.0
  %3161 = vmatpush1.msra.mxu0 0.0
  %3162 = vmatprep.subr.mxu0 0.0
  %3163 = vmatpush1.msra.mxu0 0.0
  %3164 = vmatprep.subr.mxu0 0.0
  %3165 = vmatpush1.msra.mxu0 0.0
  %3166 = vmatprep.subr.mxu0 0.0
  %3167 = vmatpush1.msra.mxu0 0.0
  %3168 = vmatprep.subr.mxu0 0.0
  %3169 = vmatpush1.msra.mxu0 0.0
  %3170 = vmatprep.subr.mxu0 0.0
  %3171 = vmatpush1.msra.mxu0 0.0
  %3172 = vmatprep.subr.mxu0 0.0
  %3173 = vmatpush1.msra.mxu0 0.0
  %3174 = vmatprep.subr.mxu0 0.0
  %3175 = vmatpush1.msra.mxu0 0.0
  %3176 = vmatprep.subr.mxu0 0.0
  %3177 = vmatpush1.msra.mxu0 0.0
  %3178 = vmatprep.subr.mxu0 0.0
  %3179 = vmatpush1.msra.mxu0 0.0
  %3180 = vmatprep.mubr.f32.mxu0 0.0
  %3181 = vmatmul.mubr.f32.gmra.mrb[0].mxu0 %v3114
  %v3182 = vpop.f32.mrb[0].mxu0
  %v3183 = vadd.f32 0.0, %v3182
  %v3184 = vpop.f32.mrb[0].mxu0
  %v3185 = vadd.f32 0.0, %v3184
  %3186 = vdwg.mxu0
  %3187 = vmatprep.subr.mxu0 %v3110
  %3188 = vmatpush1.msra.mxu0 %v3107
  %3189 = vmatprep.subr.mxu0 0.0
  %3190 = vmatpush1.msra.mxu0 0.0
  %3191 = vmatprep.subr.mxu0 0.0
  %3192 = vmatpush1.msra.mxu0 0.0
  %3193 = vmatprep.subr.mxu0 0.0
  %3194 = vmatpush1.msra.mxu0 0.0
  %3195 = vmatprep.subr.mxu0 0.0
  %3196 = vmatpush1.msra.mxu0 0.0
  %3197 = vmatprep.subr.mxu0 0.0
  %3198 = vmatpush1.msra.mxu0 0.0
  %3199 = vmatprep.subr.mxu0 0.0
  %3200 = vmatpush1.msra.mxu0 0.0
  %3201 = vmatprep.subr.mxu0 0.0
  %3202 = vmatpush1.msra.mxu0 0.0
  %3203 = vmatprep.subr.mxu0 0.0
  %3204 = vmatpush1.msra.mxu0 0.0
  %3205 = vmatprep.subr.mxu0 0.0
  %3206 = vmatpush1.msra.mxu0 0.0
  %3207 = vmatprep.subr.mxu0 0.0
  %3208 = vmatpush1.msra.mxu0 0.0
  %3209 = vmatprep.subr.mxu0 0.0
  %3210 = vmatpush1.msra.mxu0 0.0
  %3211 = vmatprep.subr.mxu0 0.0
  %3212 = vmatpush1.msra.mxu0 0.0
  %3213 = vmatprep.subr.mxu0 0.0
  %3214 = vmatpush1.msra.mxu0 0.0
  %3215 = vmatprep.subr.mxu0 0.0
  %3216 = vmatpush1.msra.mxu0 0.0
  %3217 = vmatprep.subr.mxu0 0.0
  %3218 = vmatpush1.msra.mxu0 0.0
  %3219 = vmatprep.subr.mxu0 0.0
  %3220 = vmatpush1.msra.mxu0 0.0
  %3221 = vmatprep.subr.mxu0 0.0
  %3222 = vmatpush1.msra.mxu0 0.0
  %3223 = vmatprep.subr.mxu0 0.0
  %3224 = vmatpush1.msra.mxu0 0.0
  %3225 = vmatprep.subr.mxu0 0.0
  %3226 = vmatpush1.msra.mxu0 0.0
  %3227 = vmatprep.subr.mxu0 0.0
  %3228 = vmatpush1.msra.mxu0 0.0
  %3229 = vmatprep.subr.mxu0 0.0
  %3230 = vmatpush1.msra.mxu0 0.0
  %3231 = vmatprep.subr.mxu0 0.0
  %3232 = vmatpush1.msra.mxu0 0.0
  %3233 = vmatprep.subr.mxu0 0.0
  %3234 = vmatpush1.msra.mxu0 0.0
  %3235 = vmatprep.subr.mxu0 0.0
  %3236 = vmatpush1.msra.mxu0 0.0
  %3237 = vmatprep.subr.mxu0 0.0
  %3238 = vmatpush1.msra.mxu0 0.0
  %3239 = vmatprep.subr.mxu0 0.0
  %3240 = vmatpush1.msra.mxu0 0.0
  %3241 = vmatprep.subr.mxu0 0.0
  %3242 = vmatpush1.msra.mxu0 0.0
  %3243 = vmatprep.subr.mxu0 0.0
  %3244 = vmatpush1.msra.mxu0 0.0
  %3245 = vmatprep.subr.mxu0 0.0
  %3246 = vmatpush1.msra.mxu0 0.0
  %3247 = vmatprep.subr.mxu0 0.0
  %3248 = vmatpush1.msra.mxu0 0.0
  %3249 = vmatprep.subr.mxu0 0.0
  %3250 = vmatpush1.msra.mxu0 0.0
  %3251 = vmatprep.mubr.f32.mxu0 0.0
  %3252 = vmatmul.mubr.f32.gmra.mrb[0].mxu0 %v3114
  %v3253 = vpop.f32.mrb[0].mxu0
  %v3254 = vadd.f32 0.0, %v3253
  %v3255 = vpop.f32.mrb[0].mxu0
  %v3256 = vadd.f32 0.0, %v3255
  %3257 = vdwg.mxu0
  %v3258 = vmul.f32 %v3183, %v1623
  %v3259 = vmul.f32 %v3185, %v1627
  %v3260 = vmul.f32 %v3254, %v1631
  %v3261 = vmul.f32 %v3256, %v1635
  %v3262 = vadd.f32 %v3095, %v3258
  %v3263 = vadd.f32 %v3096, %v3259
  %v3264 = vadd.f32 %v3097, %v3260
  %v3265 = vadd.f32 %v3098, %v3261
  %3266 = vrot.lane.b32.xlu0 %v1950, 111
  %v3267 = vpop.permute.xlu0 %3266
  %3268 = vrot.lane.b32.xlu0 %v1951, 111
  %v3269 = vpop.permute.xlu0 %3268
  %3270 = vrot.lane.b32.xlu0 %v1952, 111
  %v3271 = vpop.permute.xlu0 %3270
  %3272 = vrot.lane.b32.xlu0 %v1953, 111
  %v3273 = vpop.permute.xlu0 %3272
  %v3274 = vsel %vm1668, %v3271, %v3273
  %v3275 = vsel %vm1668, %v3269, %v3271
  %v3276 = vsel %vm1668, %v3267, %v3269
  %v3277 = vsel %vm1668, %v3273, %v3267
  %s3278 = scalar_lea.vmem %s4, 64
  %v3279 = vld [vmem:[%s3278] sm:$0xff]
  %v3281 = vsel %vm1969, %v3279, 0
  %3283 = vmatprep.subr.mxu0 %v3275
  %3284 = vmatpush1.msra.mxu0 %v3276
  %3285 = vmatprep.subr.mxu0 0.0
  %3286 = vmatpush1.msra.mxu0 0.0
  %3287 = vmatprep.subr.mxu0 0.0
  %3288 = vmatpush1.msra.mxu0 0.0
  %3289 = vmatprep.subr.mxu0 0.0
  %3290 = vmatpush1.msra.mxu0 0.0
  %3291 = vmatprep.subr.mxu0 0.0
  %3292 = vmatpush1.msra.mxu0 0.0
  %3293 = vmatprep.subr.mxu0 0.0
  %3294 = vmatpush1.msra.mxu0 0.0
  %3295 = vmatprep.subr.mxu0 0.0
  %3296 = vmatpush1.msra.mxu0 0.0
  %3297 = vmatprep.subr.mxu0 0.0
  %3298 = vmatpush1.msra.mxu0 0.0
  %3299 = vmatprep.subr.mxu0 0.0
  %3300 = vmatpush1.msra.mxu0 0.0
  %3301 = vmatprep.subr.mxu0 0.0
  %3302 = vmatpush1.msra.mxu0 0.0
  %3303 = vmatprep.subr.mxu0 0.0
  %3304 = vmatpush1.msra.mxu0 0.0
  %3305 = vmatprep.subr.mxu0 0.0
  %3306 = vmatpush1.msra.mxu0 0.0
  %3307 = vmatprep.subr.mxu0 0.0
  %3308 = vmatpush1.msra.mxu0 0.0
  %3309 = vmatprep.subr.mxu0 0.0
  %3310 = vmatpush1.msra.mxu0 0.0
  %3311 = vmatprep.subr.mxu0 0.0
  %3312 = vmatpush1.msra.mxu0 0.0
  %3313 = vmatprep.subr.mxu0 0.0
  %3314 = vmatpush1.msra.mxu0 0.0
  %3315 = vmatprep.subr.mxu0 0.0
  %3316 = vmatpush1.msra.mxu0 0.0
  %3317 = vmatprep.subr.mxu0 0.0
  %3318 = vmatpush1.msra.mxu0 0.0
  %3319 = vmatprep.subr.mxu0 0.0
  %3320 = vmatpush1.msra.mxu0 0.0
  %3321 = vmatprep.subr.mxu0 0.0
  %3322 = vmatpush1.msra.mxu0 0.0
  %3323 = vmatprep.subr.mxu0 0.0
  %3324 = vmatpush1.msra.mxu0 0.0
  %3325 = vmatprep.subr.mxu0 0.0
  %3326 = vmatpush1.msra.mxu0 0.0
  %3327 = vmatprep.subr.mxu0 0.0
  %3328 = vmatpush1.msra.mxu0 0.0
  %3329 = vmatprep.subr.mxu0 0.0
  %3330 = vmatpush1.msra.mxu0 0.0
  %3331 = vmatprep.subr.mxu0 0.0
  %3332 = vmatpush1.msra.mxu0 0.0
  %3333 = vmatprep.subr.mxu0 0.0
  %3334 = vmatpush1.msra.mxu0 0.0
  %3335 = vmatprep.subr.mxu0 0.0
  %3336 = vmatpush1.msra.mxu0 0.0
  %3337 = vmatprep.subr.mxu0 0.0
  %3338 = vmatpush1.msra.mxu0 0.0
  %3339 = vmatprep.subr.mxu0 0.0
  %3340 = vmatpush1.msra.mxu0 0.0
  %3341 = vmatprep.subr.mxu0 0.0
  %3342 = vmatpush1.msra.mxu0 0.0
  %3343 = vmatprep.subr.mxu0 0.0
  %3344 = vmatpush1.msra.mxu0 0.0
  %3345 = vmatprep.subr.mxu0 0.0
  %3346 = vmatpush1.msra.mxu0 0.0
  %3347 = vmatprep.mubr.f32.mxu0 0.0
  %3348 = vmatmul.mubr.f32.gmra.mrb[0].mxu0 %v3281
  %v3349 = vpop.f32.mrb[0].mxu0
  %v3350 = vadd.f32 0.0, %v3349
  %v3351 = vpop.f32.mrb[0].mxu0
  %v3352 = vadd.f32 0.0, %v3351
  %3353 = vdwg.mxu0
  %3354 = vmatprep.subr.mxu0 %v3277
  %3355 = vmatpush1.msra.mxu0 %v3274
  %3356 = vmatprep.subr.mxu0 0.0
  %3357 = vmatpush1.msra.mxu0 0.0
  %3358 = vmatprep.subr.mxu0 0.0
  %3359 = vmatpush1.msra.mxu0 0.0
  %3360 = vmatprep.subr.mxu0 0.0
  %3361 = vmatpush1.msra.mxu0 0.0
  %3362 = vmatprep.subr.mxu0 0.0
  %3363 = vmatpush1.msra.mxu0 0.0
  %3364 = vmatprep.subr.mxu0 0.0
  %3365 = vmatpush1.msra.mxu0 0.0
  %3366 = vmatprep.subr.mxu0 0.0
  %3367 = vmatpush1.msra.mxu0 0.0
  %3368 = vmatprep.subr.mxu0 0.0
  %3369 = vmatpush1.msra.mxu0 0.0
  %3370 = vmatprep.subr.mxu0 0.0
  %3371 = vmatpush1.msra.mxu0 0.0
  %3372 = vmatprep.subr.mxu0 0.0
  %3373 = vmatpush1.msra.mxu0 0.0
  %3374 = vmatprep.subr.mxu0 0.0
  %3375 = vmatpush1.msra.mxu0 0.0
  %3376 = vmatprep.subr.mxu0 0.0
  %3377 = vmatpush1.msra.mxu0 0.0
  %3378 = vmatprep.subr.mxu0 0.0
  %3379 = vmatpush1.msra.mxu0 0.0
  %3380 = vmatprep.subr.mxu0 0.0
  %3381 = vmatpush1.msra.mxu0 0.0
  %3382 = vmatprep.subr.mxu0 0.0
  %3383 = vmatpush1.msra.mxu0 0.0
  %3384 = vmatprep.subr.mxu0 0.0
  %3385 = vmatpush1.msra.mxu0 0.0
  %3386 = vmatprep.subr.mxu0 0.0
  %3387 = vmatpush1.msra.mxu0 0.0
  %3388 = vmatprep.subr.mxu0 0.0
  %3389 = vmatpush1.msra.mxu0 0.0
  %3390 = vmatprep.subr.mxu0 0.0
  %3391 = vmatpush1.msra.mxu0 0.0
  %3392 = vmatprep.subr.mxu0 0.0
  %3393 = vmatpush1.msra.mxu0 0.0
  %3394 = vmatprep.subr.mxu0 0.0
  %3395 = vmatpush1.msra.mxu0 0.0
  %3396 = vmatprep.subr.mxu0 0.0
  %3397 = vmatpush1.msra.mxu0 0.0
  %3398 = vmatprep.subr.mxu0 0.0
  %3399 = vmatpush1.msra.mxu0 0.0
  %3400 = vmatprep.subr.mxu0 0.0
  %3401 = vmatpush1.msra.mxu0 0.0
  %3402 = vmatprep.subr.mxu0 0.0
  %3403 = vmatpush1.msra.mxu0 0.0
  %3404 = vmatprep.subr.mxu0 0.0
  %3405 = vmatpush1.msra.mxu0 0.0
  %3406 = vmatprep.subr.mxu0 0.0
  %3407 = vmatpush1.msra.mxu0 0.0
  %3408 = vmatprep.subr.mxu0 0.0
  %3409 = vmatpush1.msra.mxu0 0.0
  %3410 = vmatprep.subr.mxu0 0.0
  %3411 = vmatpush1.msra.mxu0 0.0
  %3412 = vmatprep.subr.mxu0 0.0
  %3413 = vmatpush1.msra.mxu0 0.0
  %3414 = vmatprep.subr.mxu0 0.0
  %3415 = vmatpush1.msra.mxu0 0.0
  %3416 = vmatprep.subr.mxu0 0.0
  %3417 = vmatpush1.msra.mxu0 0.0
  %3418 = vmatprep.mubr.f32.mxu0 0.0
  %3419 = vmatmul.mubr.f32.gmra.mrb[0].mxu0 %v3281
  %v3420 = vpop.f32.mrb[0].mxu0
  %v3421 = vadd.f32 0.0, %v3420
  %v3422 = vpop.f32.mrb[0].mxu0
  %v3423 = vadd.f32 0.0, %v3422
  %3424 = vdwg.mxu0
  %v3425 = vmul.f32 %v3350, %v1831
  %v3426 = vmul.f32 %v3352, %v1835
  %v3427 = vmul.f32 %v3421, %v1839
  %v3428 = vmul.f32 %v3423, %v1843
  %v3429 = vadd.f32 %v3262, %v3425
  %v3430 = vadd.f32 %v3263, %v3426
  %v3431 = vadd.f32 %v3264, %v3427
  %v3432 = vadd.f32 %v3265, %v3428
  %v3433 = vld [vmem:[%s5] sm:$0xff]
  %3435 = vset.pattern.permute.xlu0 0
  %3436 = vperm.xlu0 %3435, %v3433
  %v3437 = vpop.permute.xlu0 %3436
  %v3439 = vadd.f32 %v3429, %v3437
  %v3440 = vadd.f32 %v3430, %v3437
  %v3441 = vadd.f32 %v3431, %v3437
  %v3442 = vadd.f32 %v3432, %v3437
  %v3443 = vmax.f32 %v3439, 0.0
  %v3444 = vmax.f32 %v3440, 0.0
  %v3445 = vmax.f32 %v3441, 0.0
  %v3446 = vmax.f32 %v3442, 0.0
  %v3447 = vadd.f32 %v3443, %v3444
  %3448 = vadd.xlane.f32.xlu0 %v3447
  %v3449 = vpop.xlane.xlu0 %3448
  %v3450 = vrot.slane %v3449, 4
  %v3451 = vadd.f32 %v3449, %v3450
  %v3452 = vrot.slane %v3451, 2
  %v3453 = vadd.f32 %v3451, %v3452
  %v3454 = vrot.slane %v3453, 1
  %v3455 = vadd.f32 %v3453, %v3454
  %s3456 = vtos %v3455
  %s3457 = smul.f32 %s3456, 0.00048828125
  %v3458 = vmul.f32 %v3443, %v3443
  %v3459 = vmul.f32 %v3444, %v3444
  %v3460 = vadd.f32 %v3458, %v3459
  %3461 = vadd.xlane.f32.xlu0 %v3460
  %v3462 = vpop.xlane.xlu0 %3461
  %v3463 = vrot.slane %v3462, 4
  %v3464 = vadd.f32 %v3462, %v3463
  %v3465 = vrot.slane %v3464, 2
  %v3466 = vadd.f32 %v3464, %v3465
  %v3467 = vrot.slane %v3466, 1
  %v3468 = vadd.f32 %v3466, %v3467
  %s3469 = vtos %v3468
  %s3470 = smul.f32 %s3469, 0.00048828125
  %s3471 = smul.f32 %s3457, %s3457
  %s3472 = ssub.f32 %s3470, %s3471
  %v3473 = vstv %s3457
  %v3474 = vsub.f32 %v3443, %v3473
  %v3475 = vsub.f32 %v3444, %v3473
  %s3476 = sadd.f32 %s3472, 1e-05
  %v3477 = vstv %s3476
  %v3478 = vrsqrt.pop %v3477
  %s3479 = vtos %v3478
  %v3480 = vstv %s3479
  %v3481 = vmul.f32 %v3474, %v3480
  %v3482 = vmul.f32 %v3475, %v3480
  %v3483 = vadd.f32 %v3445, %v3446
  %3484 = vadd.xlane.f32.xlu0 %v3483
  %v3485 = vpop.xlane.xlu0 %3484
  %v3486 = vrot.slane %v3485, 4
  %v3487 = vadd.f32 %v3485, %v3486
  %v3488 = vrot.slane %v3487, 2
  %v3489 = vadd.f32 %v3487, %v3488
  %v3490 = vrot.slane %v3489, 1
  %v3491 = vadd.f32 %v3489, %v3490
  %s3492 = vtos %v3491
  %s3493 = smul.f32 %s3492, 0.00048828125
  %v3494 = vmul.f32 %v3445, %v3445
  %v3495 = vmul.f32 %v3446, %v3446
  %v3496 = vadd.f32 %v3494, %v3495
  %3497 = vadd.xlane.f32.xlu0 %v3496
  %v3498 = vpop.xlane.xlu0 %3497
  %v3499 = vrot.slane %v3498, 4
  %v3500 = vadd.f32 %v3498, %v3499
  %v3501 = vrot.slane %v3500, 2
  %v3502 = vadd.f32 %v3500, %v3501
  %v3503 = vrot.slane %v3502, 1
  %v3504 = vadd.f32 %v3502, %v3503
  %s3505 = vtos %v3504
  %s3506 = smul.f32 %s3505, 0.00048828125
  %s3507 = smul.f32 %s3493, %s3493
  %s3508 = ssub.f32 %s3506, %s3507
  %v3509 = vstv %s3493
  %v3510 = vsub.f32 %v3445, %v3509
  %v3511 = vsub.f32 %v3446, %v3509
  %s3512 = sadd.f32 %s3508, 1e-05
  %v3513 = vstv %s3512
  %v3514 = vrsqrt.pop %v3513
  %s3515 = vtos %v3514
  %v3516 = vstv %s3515
  %v3517 = vmul.f32 %v3510, %v3516
  %v3518 = vmul.f32 %v3511, %v3516
  %3519 = vset.pattern.permute.xlu0 1
  %3520 = vperm.xlu0 %3519, %v3433
  %v3521 = vpop.permute.xlu0 %3520
  %v3523 = vmul.f32 %v3481, %v3521
  %v3524 = vmul.f32 %v3482, %v3521
  %v3525 = vmul.f32 %v3517, %v3521
  %v3526 = vmul.f32 %v3518, %v3521
  %3527 = vset.pattern.permute.xlu0 2
  %3528 = vperm.xlu0 %3527, %v3433
  %v3529 = vpop.permute.xlu0 %3528
  %v3531 = vadd.f32 %v3523, %v3529
  %v3532 = vadd.f32 %v3524, %v3529
  %v3533 = vadd.f32 %v3525, %v3529
  %v3534 = vadd.f32 %v3526, %v3529
  %3535 = vst [vmem:[%s6] sm:$0xff] %v3531
  %3536 = vst [vmem:[%s6 + $0x8] sm:$0xff] %v3532
  %s3537 = scalar_lea.vmem %s6, 16
  %3538 = vst [vmem:[%s3537] sm:$0xff] %v3533
  %3539 = vst [vmem:[%s3537 + $0x8] sm:$0xff] %v3534
  // Predicated region
  $region26: #{decoder_forward.1} parent=0 // pred_check
    _
  $region27: #{decoder_forward.1} parent=0 // pred_check_branch
    %3541 = sbr.rel (0) target = $region29
  $region28: #{decoder_forward.1} parent=0 // pred_region
    _
  $region29: #{decoder_forward.1} parent=0 // pred_fallthru
    _
  // Predicated region
  $region30: #{decoder_forward.1} parent=0 // pred_check
    _
  $region31: #{decoder_forward.1} parent=0 // pred_check_branch
    %3543 = sbr.rel (0) target = $region33
  $region32: #{decoder_forward.1} parent=0 // pred_region
    _
  $region33: #{decoder_forward.1} parent=0 // pred_fallthru
    _

</llo_original>
